<compile_context>
chip_gen: v7x
topology: tpu7x:2x2x1
jax: 0.10.0
libtpu: 0.0.40
codegen_flags: <defaults>
</compile_context>

<pallas_src>
import jax
import jax.numpy as jnp
from jax.experimental import pallas as pl
from jax.experimental.pallas import tpu as pltpu

# ---- model config (small, BERT-like) ----------------------------------------
B, S, H = 2, 8, 32          # batch, seq len, hidden
NH, DH = 4, 8               # num heads, head dim (NH * DH == H)
FFN = 64                    # intermediate FFN size
NUM_LAYERS = 2
VOCAB_Q, VOCAB_T = 97, 103  # "resized" vocab sizes of the two encoders
NUM_ENC = 2                 # question encoder + table encoder
EPS = 1e-12


# ---- in-kernel math helpers --------------------------------------------------
def _layernorm(x, g, b):
    mean = jnp.mean(x, axis=-1, keepdims=True)
    var = jnp.mean((x - mean) ** 2, axis=-1, keepdims=True)
    return (x - mean) * jax.lax.rsqrt(var + EPS) * g + b


def _gelu(x):
    # TODO(synk): BERT uses exact erf-GELU; tanh approximation used here.
    return 0.5 * x * (1.0 + jnp.tanh(0.7978845608028654 * (x + 0.044715 * x * x * x)))


def _mm(x, w, b):
    """(B,S,Din) f32 @ (Din,Dout) bf16 -> (B,S,Dout) f32; one flat MXU matmul."""
    y = jnp.dot(x.reshape(B * S, x.shape[-1]).astype(jnp.bfloat16), w,
                preferred_element_type=jnp.float32)
    return y.reshape(B, S, w.shape[-1]) + b


# ---- fused bi-encoder kernel -------------------------------------------------
def fused_encoder_kernel(x_ref, mask_ref, embg_ref, embb_ref,
                         wqkv_ref, bqkv_ref, woh_ref, bo_ref,
                         ln1g_ref, ln1b_ref,
                         w1_ref, b1_ref, w2_ref, b2_ref,
                         ln2g_ref, ln2b_ref,
                         poolw_ref, poolb_ref, o_ref):
    """One grid step == one full encoder (embedding-LN -> layers -> pooler)."""
    # Additive attention mask, computed and broadcast ONCE per encoder.
    neg = jnp.broadcast_to(((1.0 - mask_ref[...]) * (-1e9))[:, None, :],
                           (B, S, S))                               # (B, S, S)

    # Embedding layernorm (f32).
    x = _layernorm(x_ref[...], embg_ref[...], embb_ref[...])        # (B, S, H)

    for li in range(NUM_LAYERS):      # static unroll; weights stay VMEM-resident
        # Fused QKV projection: one (B*S, H) @ (H, 3H) matmul.
        # 1/sqrt(DH) is already folded into the Wq / bq slices at prep time.
        qkv = _mm(x, wqkv_ref[li], bqkv_ref[li])                    # (B, S, 3H) f32
        qkvb = qkv.astype(jnp.bfloat16)

        # TODO(synk): per-head unroll kept at DH=8 (safe lowering of small lane
        # slices); at real head dims use one batched contraction per layer.
        attn = jnp.zeros((B, S, H), jnp.float32)
        for hh in range(NH):
            qh = qkvb[:, :, hh * DH:(hh + 1) * DH]
            kh = qkvb[:, :, H + hh * DH:H + (hh + 1) * DH]
            vh = qkvb[:, :, 2 * H + hh * DH:2 * H + (hh + 1) * DH]
            sc = jnp.einsum('bqd,bkd->bqk', qh, kh,
                            preferred_element_type=jnp.float32) + neg
            sc = sc - jnp.max(sc, axis=-1, keepdims=True)
            p = jnp.exp(sc)
            p = p * pl.reciprocal(jnp.sum(p, axis=-1, keepdims=True), approx=True)
            ctx = jnp.einsum('bqk,bkd->bqd', p.astype(jnp.bfloat16), vh,
                             preferred_element_type=jnp.float32)    # (B, S, DH)
            # Per-head output projection: ctx_h @ Wo_h, accumulated
            # (== concat(ctx_heads) @ Wo, without the lane-axis concat).
            attn = attn + jnp.dot(
                ctx.reshape(B * S, DH).astype(jnp.bfloat16), woh_ref[li, hh],
                preferred_element_type=jnp.float32).reshape(B, S, H)

        h1 = _layernorm(x + attn + bo_ref[li], ln1g_ref[li], ln1b_ref[li])

        ff = _gelu(_mm(h1, w1_ref[li], b1_ref[li]))
        ff = _mm(ff, w2_ref[li], b2_ref[li])
        x = _layernorm(h1 + ff, ln2g_ref[li], ln2b_ref[li])

    # Pooler on the [CLS] token, 2-D (B, H) slab; only HBM write of the kernel.
    cls = x[:, 0, :]                                                 # (B, H)
    o_ref[...] = jnp.tanh(
        jnp.dot(cls.astype(jnp.bfloat16), poolw_ref[...],
                preferred_element_type=jnp.float32) + poolb_ref[...])


_STACKED_PARAM_ORDER = ('emb_ln_g', 'emb_ln_b', 'wqkv', 'bqkv', 'wo_h', 'bo',
                        'ln1_g', 'ln1_b', 'w1', 'b1', 'w2', 'b2',
                        'ln2_g', 'ln2_b', 'pool_w', 'pool_b')


def _stacked_spec(shape):
    """Full-array block per encoder; leading encoder axis is the grid axis."""
    nd = len(shape) - 1

    def idx(e):
        return (e,) + (0,) * nd

    return pl.BlockSpec((None,) + tuple(shape[1:]), idx)


def fused_biencoder_call(x_emb, mask, stacked):
    args = [x_emb, mask] + [stacked[k] for k in _STACKED_PARAM_ORDER]
    return pl.pallas_call(
        fused_encoder_kernel,
        out_shape=jax.ShapeDtypeStruct((NUM_ENC, B, H), jnp.float32),
        grid=(NUM_ENC,),
        in_specs=[_stacked_spec(a.shape) for a in args],
        out_specs=_stacked_spec((NUM_ENC, B, H)),
        compiler_params=pltpu.CompilerParams(
            # One encoder per TensorCore on v7x; no-op (serial 2-step loop) on
            # single-TC v5e/v6e.  Default scoped-VMEM limit is ample at this
            # size; set vmem_limit_bytes explicitly if H/S/layers grow.
            dimension_semantics=("parallel",)),
    )(*args)


# ---- parameter init (deterministic, BERT-shaped) -----------------------------
def init_encoder_params(key, vocab):
    keys = jax.random.split(key, 4 + NUM_LAYERS)

    def w(k, shape):
        return jax.random.normal(k, shape, jnp.float32) * 0.02

    params = {
        'tok_emb': w(keys[0], (vocab, H)),
        'pos_emb': w(keys[1], (S, H)),
        'emb_ln_g': jnp.ones((H,), jnp.float32),
        'emb_ln_b': jnp.zeros((H,), jnp.float32),
        'pool_w': w(keys[2], (H, H)),
        'pool_b': jnp.zeros((H,), jnp.float32),
        'layers': [],
    }
    # TODO(synk): token_type (segment) embeddings of BERT are omitted.
    for li in range(NUM_LAYERS):
        lk = jax.random.split(keys[4 + li], 6)
        params['layers'].append({
            'wq': w(lk[0], (H, H)), 'bq': jnp.zeros((H,), jnp.float32),
            'wk': w(lk[1], (H, H)), 'bk': jnp.zeros((H,), jnp.float32),
            'wv': w(lk[2], (H, H)), 'bv': jnp.zeros((H,), jnp.float32),
            'wo': w(lk[3], (H, H)), 'bo': jnp.zeros((H,), jnp.float32),
            'ln1_g': jnp.ones((H,), jnp.float32), 'ln1_b': jnp.zeros((H,), jnp.float32),
            'w1': w(lk[4], (H, FFN)), 'b1': jnp.zeros((FFN,), jnp.float32),
            'w2': w(lk[5], (FFN, H)), 'b2': jnp.zeros((H,), jnp.float32),
            'ln2_g': jnp.ones((H,), jnp.float32), 'ln2_b': jnp.zeros((H,), jnp.float32),
        })
    return params


def _prep_encoder(params):
    """Fuse QKV, fold 1/sqrt(DH) into Wq/bq, split Wo per head, cast matmul
    weights to bf16.  Runs ONCE at init (outside the jitted forward)."""
    scale = DH ** -0.5
    layers = params['layers']

    def st(name):
        return jnp.stack([l[name] for l in layers])

    wqkv = jnp.concatenate([st('wq') * scale, st('wk'), st('wv')], axis=-1)
    bqkv = jnp.concatenate([st('bq') * scale, st('bk'), st('bv')], axis=-1)

    return {
        'emb_ln_g': params['emb_ln_g'].reshape(1, H),
        'emb_ln_b': params['emb_ln_b'].reshape(1, H),
        'wqkv': wqkv.astype(jnp.bfloat16),                       # (L, H, 3H)
        'bqkv': bqkv.reshape(NUM_LAYERS, 1, 3 * H),              # (L, 1, 3H)
        'wo_h': st('wo').reshape(NUM_LAYERS, NH, DH, H).astype(jnp.bfloat16),
        'bo': st('bo').reshape(NUM_LAYERS, 1, H),
        'ln1_g': st('ln1_g').reshape(NUM_LAYERS, 1, H),
        'ln1_b': st('ln1_b').reshape(NUM_LAYERS, 1, H),
        'w1': st('w1').astype(jnp.bfloat16),
        'b1': st('b1').reshape(NUM_LAYERS, 1, FFN),
        'w2': st('w2').astype(jnp.bfloat16),
        'b2': st('b2').reshape(NUM_LAYERS, 1, H),
        'ln2_g': st('ln2_g').reshape(NUM_LAYERS, 1, H),
        'ln2_b': st('ln2_b').reshape(NUM_LAYERS, 1, H),
        'pool_w': params['pool_w'].astype(jnp.bfloat16),
        'pool_b': params['pool_b'].reshape(1, H),
    }


def stack_biencoder(q_params, t_params):
    """One-time prep: stacked (NUM_ENC, ...) weight pytree for the kernel."""
    qp, tp = _prep_encoder(q_params), _prep_encoder(t_params)
    return {k: jnp.stack([qp[k], tp[k]]) for k in _STACKED_PARAM_ORDER}


# ---- forward pass -------------------------------------------------------------
def bi_encoder_forward(stacked, q_tok, q_pos, t_tok, t_pos,
                       q_ids, q_mask, t_ids, t_mask):
    # Glue: token + position embedding gather (plain JAX; vocab sizes differ).
    # Everything downstream (embedding LN, all layers, pooler) is one fused
    # Pallas call over a grid of the two independent encoders.
    pos = jnp.arange(S)
    x_q = q_tok[q_ids] + q_pos[pos][None]
    x_t = t_tok[t_ids] + t_pos[pos][None]
    x_emb = jnp.stack([x_q, x_t])                 # (2, B, S, H)
    mask = jnp.stack([q_mask, t_mask])            # (2, B, S)

    pooled = fused_biencoder_call(x_emb, mask, stacked)   # (2, B, H)
    return pooled[0], pooled[1]


# ---- main ---------------------------------------------------------------------
if __name__ == "__main__":
    key = jax.random.PRNGKey(0)
    kq, kt, kd = jax.random.split(key, 3)
    q_params = init_encoder_params(kq, VOCAB_Q)
    t_params = init_encoder_params(kt, VOCAB_T)

    # Weight prep done ONCE, outside the jitted forward.
    stacked = stack_biencoder(q_params, t_params)
    stacked = jax.tree_util.tree_map(jax.block_until_ready, stacked)

    kd1, kd2 = jax.random.split(kd)
    q_ids = jax.random.randint(kd1, (B, S), 0, VOCAB_Q)
    t_ids = jax.random.randint(kd2, (B, S), 0, VOCAB_T)
    q_mask = jnp.ones((B, S), jnp.float32).at[1, -2:].set(0.0)
    t_mask = jnp.ones((B, S), jnp.float32).at[0, -3:].set(0.0)

    fwd = jax.jit(bi_encoder_forward)
    q_out, t_out = fwd(stacked,
                       q_params['tok_emb'], q_params['pos_emb'],
                       t_params['tok_emb'], t_params['pos_emb'],
                       q_ids, q_mask, t_ids, t_mask)
    jax.block_until_ready((q_out, t_out))

    assert q_out.shape == (B, H) and t_out.shape == (B, H)
    assert bool(jnp.all(jnp.isfinite(q_out))) and bool(jnp.all(jnp.isfinite(t_out)))
    print("KERNEL_OK")
</pallas_src>

<mosaic_0001>
module attributes {stable_mosaic.version = 11 : i64} {
  func.func @fused_encoder_kernel(%arg0: i32, %arg1: memref<1x2x8x32xf32, #tpu.memory_space<vmem>>, %arg2: memref<1x2x8xf32, #tpu.memory_space<vmem>>, %arg3: memref<1x1x32xf32, #tpu.memory_space<vmem>>, %arg4: memref<1x1x32xf32, #tpu.memory_space<vmem>>, %arg5: memref<1x2x32x96xbf16, #tpu.memory_space<vmem>>, %arg6: memref<1x2x1x96xf32, #tpu.memory_space<vmem>>, %arg7: memref<1x2x4x8x32xbf16, #tpu.memory_space<vmem>>, %arg8: memref<1x2x1x32xf32, #tpu.memory_space<vmem>>, %arg9: memref<1x2x1x32xf32, #tpu.memory_space<vmem>>, %arg10: memref<1x2x1x32xf32, #tpu.memory_space<vmem>>, %arg11: memref<1x2x32x64xbf16, #tpu.memory_space<vmem>>, %arg12: memref<1x2x1x64xf32, #tpu.memory_space<vmem>>, %arg13: memref<1x2x64x32xbf16, #tpu.memory_space<vmem>>, %arg14: memref<1x2x1x32xf32, #tpu.memory_space<vmem>>, %arg15: memref<1x2x1x32xf32, #tpu.memory_space<vmem>>, %arg16: memref<1x2x1x32xf32, #tpu.memory_space<vmem>>, %arg17: memref<1x32x32xbf16, #tpu.memory_space<vmem>>, %arg18: memref<1x1x32xf32, #tpu.memory_space<vmem>>, %arg19: memref<1x2x32xf32, #tpu.memory_space<vmem>>) attributes {dimension_semantics = [#tpu.dimension_semantics<parallel>], iteration_bounds = array<i64: 2>, scalar_prefetch = 0 : i64, scratch_operands = 0 : i64, tpu.core_type = #tpu.core_type<tc>, window_params = [{transform_indices = @transform_0, window_bounds = array<i64: 1, 2, 8, 32>}, {transform_indices = @transform_1, window_bounds = array<i64: 1, 2, 8>}, {transform_indices = @transform_2, window_bounds = array<i64: 1, 1, 32>}, {transform_indices = @transform_3, window_bounds = array<i64: 1, 1, 32>}, {transform_indices = @transform_4, window_bounds = array<i64: 1, 2, 32, 96>}, {transform_indices = @transform_5, window_bounds = array<i64: 1, 2, 1, 96>}, {transform_indices = @transform_6, window_bounds = array<i64: 1, 2, 4, 8, 32>}, {transform_indices = @transform_7, window_bounds = array<i64: 1, 2, 1, 32>}, {transform_indices = @transform_8, window_bounds = array<i64: 1, 2, 1, 32>}, {transform_indices = @transform_9, window_bounds = array<i64: 1, 2, 1, 32>}, {transform_indices = @transform_10, window_bounds = array<i64: 1, 2, 32, 64>}, {transform_indices = @transform_11, window_bounds = array<i64: 1, 2, 1, 64>}, {transform_indices = @transform_12, window_bounds = array<i64: 1, 2, 64, 32>}, {transform_indices = @transform_13, window_bounds = array<i64: 1, 2, 1, 32>}, {transform_indices = @transform_14, window_bounds = array<i64: 1, 2, 1, 32>}, {transform_indices = @transform_15, window_bounds = array<i64: 1, 2, 1, 32>}, {transform_indices = @transform_16, window_bounds = array<i64: 1, 32, 32>}, {transform_indices = @transform_17, window_bounds = array<i64: 1, 1, 32>}, {transform_indices = @transform_18, window_bounds = array<i64: 1, 2, 32>}]} {
    %c0 = arith.constant 0 : index
    %c0_0 = arith.constant 0 : index
    %c0_1 = arith.constant 0 : index
    %0 = vector.load %arg2[%c0, %c0_0, %c0_1] : memref<1x2x8xf32, #tpu.memory_space<vmem>>, vector<1x2x8xf32>
    %1 = vector.shape_cast %0 : vector<1x2x8xf32> to vector<2x8xf32>
    %cst = arith.constant 1.000000e+00 : f32
    %2 = vector.broadcast %cst : f32 to vector<2x8xf32>
    %3 = arith.subf %2, %1 : vector<2x8xf32>
    %cst_2 = arith.constant -1.000000e+09 : f32
    %4 = vector.broadcast %cst_2 : f32 to vector<2x8xf32>
    %5 = arith.mulf %3, %4 : vector<2x8xf32>
    %6 = vector.shape_cast %5 : vector<2x8xf32> to vector<2x1x8xf32>
    %7 = vector.shape_cast %6 : vector<2x1x8xf32> to vector<2x1x8xf32>
    %8 = vector.broadcast %7 : vector<2x1x8xf32> to vector<2x8x8xf32>
    %c0_3 = arith.constant 0 : index
    %c0_4 = arith.constant 0 : index
    %c0_5 = arith.constant 0 : index
    %c0_6 = arith.constant 0 : index
    %9 = vector.load %arg1[%c0_3, %c0_4, %c0_5, %c0_6] : memref<1x2x8x32xf32, #tpu.memory_space<vmem>>, vector<1x2x8x32xf32>
    %10 = vector.shape_cast %9 : vector<1x2x8x32xf32> to vector<2x8x32xf32>
    %c0_7 = arith.constant 0 : index
    %c0_8 = arith.constant 0 : index
    %c0_9 = arith.constant 0 : index
    %11 = vector.load %arg3[%c0_7, %c0_8, %c0_9] : memref<1x1x32xf32, #tpu.memory_space<vmem>>, vector<1x1x32xf32>
    %12 = vector.shape_cast %11 : vector<1x1x32xf32> to vector<1x32xf32>
    %c0_10 = arith.constant 0 : index
    %c0_11 = arith.constant 0 : index
    %c0_12 = arith.constant 0 : index
    %13 = vector.load %arg4[%c0_10, %c0_11, %c0_12] : memref<1x1x32xf32, #tpu.memory_space<vmem>>, vector<1x1x32xf32>
    %14 = vector.shape_cast %13 : vector<1x1x32xf32> to vector<1x32xf32>
    %cst_13 = arith.constant dense<0.000000e+00> : vector<2x8xf32>
    %15 = vector.multi_reduction <add>, %10, %cst_13 [2] : vector<2x8x32xf32> to vector<2x8xf32>
    %16 = vector.shape_cast %15 : vector<2x8xf32> to vector<2x8x1xf32>
    %cst_14 = arith.constant 3.200000e+01 : f32
    %17 = vector.broadcast %cst_14 : f32 to vector<2x8x1xf32>
    %18 = arith.divf %16, %17 : vector<2x8x1xf32>
    %19 = vector.broadcast %18 : vector<2x8x1xf32> to vector<2x8x32xf32>
    %20 = arith.subf %10, %19 : vector<2x8x32xf32>
    %21 = arith.mulf %20, %20 : vector<2x8x32xf32>
    %cst_15 = arith.constant dense<0.000000e+00> : vector<2x8xf32>
    %22 = vector.multi_reduction <add>, %21, %cst_15 [2] : vector<2x8x32xf32> to vector<2x8xf32>
    %23 = vector.shape_cast %22 : vector<2x8xf32> to vector<2x8x1xf32>
    %cst_16 = arith.constant 3.200000e+01 : f32
    %24 = vector.broadcast %cst_16 : f32 to vector<2x8x1xf32>
    %25 = arith.divf %23, %24 : vector<2x8x1xf32>
    %26 = vector.broadcast %18 : vector<2x8x1xf32> to vector<2x8x32xf32>
    %27 = arith.subf %10, %26 : vector<2x8x32xf32>
    %cst_17 = arith.constant 9.99999996E-13 : f32
    %28 = vector.broadcast %cst_17 : f32 to vector<2x8x1xf32>
    %29 = arith.addf %25, %28 : vector<2x8x1xf32>
    %30 = math.rsqrt %29 : vector<2x8x1xf32>
    %31 = vector.broadcast %30 : vector<2x8x1xf32> to vector<2x8x32xf32>
    %32 = arith.mulf %27, %31 : vector<2x8x32xf32>
    %33 = vector.shape_cast %12 : vector<1x32xf32> to vector<1x1x32xf32>
    %34 = vector.broadcast %33 : vector<1x1x32xf32> to vector<2x8x32xf32>
    %35 = arith.mulf %32, %34 : vector<2x8x32xf32>
    %36 = vector.shape_cast %14 : vector<1x32xf32> to vector<1x1x32xf32>
    %37 = vector.broadcast %36 : vector<1x1x32xf32> to vector<2x8x32xf32>
    %38 = arith.addf %35, %37 : vector<2x8x32xf32>
    %c0_18 = arith.constant 0 : index
    %c0_19 = arith.constant 0 : index
    %c0_20 = arith.constant 0 : index
    %c0_21 = arith.constant 0 : index
    %39 = vector.load %arg5[%c0_18, %c0_19, %c0_20, %c0_21] : memref<1x2x32x96xbf16, #tpu.memory_space<vmem>>, vector<1x1x32x96xbf16>
    %40 = vector.shape_cast %39 : vector<1x1x32x96xbf16> to vector<32x96xbf16>
    %c0_22 = arith.constant 0 : index
    %c0_23 = arith.constant 0 : index
    %c0_24 = arith.constant 0 : index
    %c0_25 = arith.constant 0 : index
    %41 = vector.load %arg6[%c0_22, %c0_23, %c0_24, %c0_25] : memref<1x2x1x96xf32, #tpu.memory_space<vmem>>, vector<1x1x1x96xf32>
    %42 = vector.shape_cast %41 : vector<1x1x1x96xf32> to vector<1x96xf32>
    %43 = vector.shape_cast %38 : vector<2x8x32xf32> to vector<16x32xf32>
    %44 = arith.truncf %43 : vector<16x32xf32> to vector<16x32xbf16>
    %cst_26 = arith.constant dense<0.000000e+00> : vector<16x96xf32>
    %45 = tpu.matmul %44, %40, %cst_26 {dimension_numbers = #tpu.dot_dimension_numbers<[1], [0], [0], [1], [0, 0, 1, 1], [], []>} : vector<16x32xbf16>, vector<32x96xbf16>, vector<16x96xf32> -> vector<16x96xf32>
    %46 = vector.shape_cast %45 : vector<16x96xf32> to vector<2x8x96xf32>
    %47 = vector.shape_cast %42 : vector<1x96xf32> to vector<1x1x96xf32>
    %48 = vector.broadcast %47 : vector<1x1x96xf32> to vector<2x8x96xf32>
    %49 = arith.addf %46, %48 : vector<2x8x96xf32>
    %50 = arith.truncf %49 : vector<2x8x96xf32> to vector<2x8x96xbf16>
    %cst_27 = arith.constant 0.000000e+00 : f32
    %51 = vector.broadcast %cst_27 : f32 to vector<2x8x32xf32>
    %52 = vector.extract_strided_slice %50 {offsets = [0, 0, 0], sizes = [2, 8, 8], strides = [1, 1, 1]} : vector<2x8x96xbf16> to vector<2x8x8xbf16>
    %53 = vector.extract_strided_slice %50 {offsets = [0, 0, 32], sizes = [2, 8, 8], strides = [1, 1, 1]} : vector<2x8x96xbf16> to vector<2x8x8xbf16>
    %54 = vector.extract_strided_slice %50 {offsets = [0, 0, 64], sizes = [2, 8, 8], strides = [1, 1, 1]} : vector<2x8x96xbf16> to vector<2x8x8xbf16>
    "tpu.trace_start"() <{level = 10 : i32, message = "bqd,bkd->bqk"}> : () -> ()
    %cst_28 = arith.constant dense<0.000000e+00> : vector<2x8x8xf32>
    %55 = tpu.matmul %52, %53, %cst_28 {dimension_numbers = #tpu.dot_dimension_numbers<[2], [2], [1], [1], [0, 0, 0, 1, 1, 1], [0], [0]>} : vector<2x8x8xbf16>, vector<2x8x8xbf16>, vector<2x8x8xf32> -> vector<2x8x8xf32>
    "tpu.trace_stop"() : () -> ()
    %56 = arith.addf %55, %8 : vector<2x8x8xf32>
    %cst_29 = arith.constant dense<0xFF800000> : vector<2x8xf32>
    %57 = vector.multi_reduction <maximumf>, %56, %cst_29 [2] : vector<2x8x8xf32> to vector<2x8xf32>
    %58 = vector.shape_cast %57 : vector<2x8xf32> to vector<2x8x1xf32>
    %59 = vector.broadcast %58 : vector<2x8x1xf32> to vector<2x8x8xf32>
    %60 = arith.subf %56, %59 : vector<2x8x8xf32>
    %61 = math.exp %60 : vector<2x8x8xf32>
    %cst_30 = arith.constant dense<0.000000e+00> : vector<2x8xf32>
    %62 = vector.multi_reduction <add>, %61, %cst_30 [2] : vector<2x8x8xf32> to vector<2x8xf32>
    %63 = vector.shape_cast %62 : vector<2x8xf32> to vector<2x8x1xf32>
    %64 = tpu.reciprocal %63 {approx = true} : vector<2x8x1xf32> -> vector<2x8x1xf32>
    %65 = vector.broadcast %64 : vector<2x8x1xf32> to vector<2x8x8xf32>
    %66 = arith.mulf %61, %65 : vector<2x8x8xf32>
    %67 = arith.truncf %66 : vector<2x8x8xf32> to vector<2x8x8xbf16>
    "tpu.trace_start"() <{level = 10 : i32, message = "bqk,bkd->bqd"}> : () -> ()
    %cst_31 = arith.constant dense<0.000000e+00> : vector<2x8x8xf32>
    %68 = tpu.matmul %67, %54, %cst_31 {dimension_numbers = #tpu.dot_dimension_numbers<[2], [1], [1], [2], [0, 0, 0, 1, 1, 2], [0], [0]>} : vector<2x8x8xbf16>, vector<2x8x8xbf16>, vector<2x8x8xf32> -> vector<2x8x8xf32>
    "tpu.trace_stop"() : () -> ()
    %69 = vector.shape_cast %68 : vector<2x8x8xf32> to vector<16x8xf32>
    %70 = arith.truncf %69 : vector<16x8xf32> to vector<16x8xbf16>
    %c0_32 = arith.constant 0 : index
    %c0_33 = arith.constant 0 : index
    %c0_34 = arith.constant 0 : index
    %c0_35 = arith.constant 0 : index
    %c0_36 = arith.constant 0 : index
    %71 = vector.load %arg7[%c0_32, %c0_33, %c0_34, %c0_35, %c0_36] : memref<1x2x4x8x32xbf16, #tpu.memory_space<vmem>>, vector<1x1x1x8x32xbf16>
    %72 = vector.shape_cast %71 : vector<1x1x1x8x32xbf16> to vector<8x32xbf16>
    %cst_37 = arith.constant dense<0.000000e+00> : vector<16x32xf32>
    %73 = tpu.matmul %70, %72, %cst_37 {dimension_numbers = #tpu.dot_dimension_numbers<[1], [0], [0], [1], [0, 0, 1, 1], [], []>} : vector<16x8xbf16>, vector<8x32xbf16>, vector<16x32xf32> -> vector<16x32xf32>
    %74 = vector.shape_cast %73 : vector<16x32xf32> to vector<2x8x32xf32>
    %75 = arith.addf %51, %74 : vector<2x8x32xf32>
    %76 = vector.extract_strided_slice %50 {offsets = [0, 0, 8], sizes = [2, 8, 8], strides = [1, 1, 1]} : vector<2x8x96xbf16> to vector<2x8x8xbf16>
    %77 = vector.extract_strided_slice %50 {offsets = [0, 0, 40], sizes = [2, 8, 8], strides = [1, 1, 1]} : vector<2x8x96xbf16> to vector<2x8x8xbf16>
    %78 = vector.extract_strided_slice %50 {offsets = [0, 0, 72], sizes = [2, 8, 8], strides = [1, 1, 1]} : vector<2x8x96xbf16> to vector<2x8x8xbf16>
    "tpu.trace_start"() <{level = 10 : i32, message = "bqd,bkd->bqk"}> : () -> ()
    %cst_38 = arith.constant dense<0.000000e+00> : vector<2x8x8xf32>
    %79 = tpu.matmul %76, %77, %cst_38 {dimension_numbers = #tpu.dot_dimension_numbers<[2], [2], [1], [1], [0, 0, 0, 1, 1, 1], [0], [0]>} : vector<2x8x8xbf16>, vector<2x8x8xbf16>, vector<2x8x8xf32> -> vector<2x8x8xf32>
    "tpu.trace_stop"() : () -> ()
    %80 = arith.addf %79, %8 : vector<2x8x8xf32>
    %cst_39 = arith.constant dense<0xFF800000> : vector<2x8xf32>
    %81 = vector.multi_reduction <maximumf>, %80, %cst_39 [2] : vector<2x8x8xf32> to vector<2x8xf32>
    %82 = vector.shape_cast %81 : vector<2x8xf32> to vector<2x8x1xf32>
    %83 = vector.broadcast %82 : vector<2x8x1xf32> to vector<2x8x8xf32>
    %84 = arith.subf %80, %83 : vector<2x8x8xf32>
    %85 = math.exp %84 : vector<2x8x8xf32>
    %cst_40 = arith.constant dense<0.000000e+00> : vector<2x8xf32>
    %86 = vector.multi_reduction <add>, %85, %cst_40 [2] : vector<2x8x8xf32> to vector<2x8xf32>
    %87 = vector.shape_cast %86 : vector<2x8xf32> to vector<2x8x1xf32>
    %88 = tpu.reciprocal %87 {approx = true} : vector<2x8x1xf32> -> vector<2x8x1xf32>
    %89 = vector.broadcast %88 : vector<2x8x1xf32> to vector<2x8x8xf32>
    %90 = arith.mulf %85, %89 : vector<2x8x8xf32>
    %91 = arith.truncf %90 : vector<2x8x8xf32> to vector<2x8x8xbf16>
    "tpu.trace_start"() <{level = 10 : i32, message = "bqk,bkd->bqd"}> : () -> ()
    %cst_41 = arith.constant dense<0.000000e+00> : vector<2x8x8xf32>
    %92 = tpu.matmul %91, %78, %cst_41 {dimension_numbers = #tpu.dot_dimension_numbers<[2], [1], [1], [2], [0, 0, 0, 1, 1, 2], [0], [0]>} : vector<2x8x8xbf16>, vector<2x8x8xbf16>, vector<2x8x8xf32> -> vector<2x8x8xf32>
    "tpu.trace_stop"() : () -> ()
    %93 = vector.shape_cast %92 : vector<2x8x8xf32> to vector<16x8xf32>
    %94 = arith.truncf %93 : vector<16x8xf32> to vector<16x8xbf16>
    %c0_42 = arith.constant 0 : index
    %c0_43 = arith.constant 0 : index
    %c1 = arith.constant 1 : index
    %c0_44 = arith.constant 0 : index
    %c0_45 = arith.constant 0 : index
    %95 = vector.load %arg7[%c0_42, %c0_43, %c1, %c0_44, %c0_45] : memref<1x2x4x8x32xbf16, #tpu.memory_space<vmem>>, vector<1x1x1x8x32xbf16>
    %96 = vector.shape_cast %95 : vector<1x1x1x8x32xbf16> to vector<8x32xbf16>
    %cst_46 = arith.constant dense<0.000000e+00> : vector<16x32xf32>
    %97 = tpu.matmul %94, %96, %cst_46 {dimension_numbers = #tpu.dot_dimension_numbers<[1], [0], [0], [1], [0, 0, 1, 1], [], []>} : vector<16x8xbf16>, vector<8x32xbf16>, vector<16x32xf32> -> vector<16x32xf32>
    %98 = vector.shape_cast %97 : vector<16x32xf32> to vector<2x8x32xf32>
    %99 = arith.addf %75, %98 : vector<2x8x32xf32>
    %100 = vector.extract_strided_slice %50 {offsets = [0, 0, 16], sizes = [2, 8, 8], strides = [1, 1, 1]} : vector<2x8x96xbf16> to vector<2x8x8xbf16>
    %101 = vector.extract_strided_slice %50 {offsets = [0, 0, 48], sizes = [2, 8, 8], strides = [1, 1, 1]} : vector<2x8x96xbf16> to vector<2x8x8xbf16>
    %102 = vector.extract_strided_slice %50 {offsets = [0, 0, 80], sizes = [2, 8, 8], strides = [1, 1, 1]} : vector<2x8x96xbf16> to vector<2x8x8xbf16>
    "tpu.trace_start"() <{level = 10 : i32, message = "bqd,bkd->bqk"}> : () -> ()
    %cst_47 = arith.constant dense<0.000000e+00> : vector<2x8x8xf32>
    %103 = tpu.matmul %100, %101, %cst_47 {dimension_numbers = #tpu.dot_dimension_numbers<[2], [2], [1], [1], [0, 0, 0, 1, 1, 1], [0], [0]>} : vector<2x8x8xbf16>, vector<2x8x8xbf16>, vector<2x8x8xf32> -> vector<2x8x8xf32>
    "tpu.trace_stop"() : () -> ()
    %104 = arith.addf %103, %8 : vector<2x8x8xf32>
    %cst_48 = arith.constant dense<0xFF800000> : vector<2x8xf32>
    %105 = vector.multi_reduction <maximumf>, %104, %cst_48 [2] : vector<2x8x8xf32> to vector<2x8xf32>
    %106 = vector.shape_cast %105 : vector<2x8xf32> to vector<2x8x1xf32>
    %107 = vector.broadcast %106 : vector<2x8x1xf32> to vector<2x8x8xf32>
    %108 = arith.subf %104, %107 : vector<2x8x8xf32>
    %109 = math.exp %108 : vector<2x8x8xf32>
    %cst_49 = arith.constant dense<0.000000e+00> : vector<2x8xf32>
    %110 = vector.multi_reduction <add>, %109, %cst_49 [2] : vector<2x8x8xf32> to vector<2x8xf32>
    %111 = vector.shape_cast %110 : vector<2x8xf32> to vector<2x8x1xf32>
    %112 = tpu.reciprocal %111 {approx = true} : vector<2x8x1xf32> -> vector<2x8x1xf32>
    %113 = vector.broadcast %112 : vector<2x8x1xf32> to vector<2x8x8xf32>
    %114 = arith.mulf %109, %113 : vector<2x8x8xf32>
    %115 = arith.truncf %114 : vector<2x8x8xf32> to vector<2x8x8xbf16>
    "tpu.trace_start"() <{level = 10 : i32, message = "bqk,bkd->bqd"}> : () -> ()
    %cst_50 = arith.constant dense<0.000000e+00> : vector<2x8x8xf32>
    %116 = tpu.matmul %115, %102, %cst_50 {dimension_numbers = #tpu.dot_dimension_numbers<[2], [1], [1], [2], [0, 0, 0, 1, 1, 2], [0], [0]>} : vector<2x8x8xbf16>, vector<2x8x8xbf16>, vector<2x8x8xf32> -> vector<2x8x8xf32>
    "tpu.trace_stop"() : () -> ()
    %117 = vector.shape_cast %116 : vector<2x8x8xf32> to vector<16x8xf32>
    %118 = arith.truncf %117 : vector<16x8xf32> to vector<16x8xbf16>
    %c0_51 = arith.constant 0 : index
    %c0_52 = arith.constant 0 : index
    %c2 = arith.constant 2 : index
    %c0_53 = arith.constant 0 : index
    %c0_54 = arith.constant 0 : index
    %119 = vector.load %arg7[%c0_51, %c0_52, %c2, %c0_53, %c0_54] : memref<1x2x4x8x32xbf16, #tpu.memory_space<vmem>>, vector<1x1x1x8x32xbf16>
    %120 = vector.shape_cast %119 : vector<1x1x1x8x32xbf16> to vector<8x32xbf16>
    %cst_55 = arith.constant dense<0.000000e+00> : vector<16x32xf32>
    %121 = tpu.matmul %118, %120, %cst_55 {dimension_numbers = #tpu.dot_dimension_numbers<[1], [0], [0], [1], [0, 0, 1, 1], [], []>} : vector<16x8xbf16>, vector<8x32xbf16>, vector<16x32xf32> -> vector<16x32xf32>
    %122 = vector.shape_cast %121 : vector<16x32xf32> to vector<2x8x32xf32>
    %123 = arith.addf %99, %122 : vector<2x8x32xf32>
    %124 = vector.extract_strided_slice %50 {offsets = [0, 0, 24], sizes = [2, 8, 8], strides = [1, 1, 1]} : vector<2x8x96xbf16> to vector<2x8x8xbf16>
    %125 = vector.extract_strided_slice %50 {offsets = [0, 0, 56], sizes = [2, 8, 8], strides = [1, 1, 1]} : vector<2x8x96xbf16> to vector<2x8x8xbf16>
    %126 = vector.extract_strided_slice %50 {offsets = [0, 0, 88], sizes = [2, 8, 8], strides = [1, 1, 1]} : vector<2x8x96xbf16> to vector<2x8x8xbf16>
    "tpu.trace_start"() <{level = 10 : i32, message = "bqd,bkd->bqk"}> : () -> ()
    %cst_56 = arith.constant dense<0.000000e+00> : vector<2x8x8xf32>
    %127 = tpu.matmul %124, %125, %cst_56 {dimension_numbers = #tpu.dot_dimension_numbers<[2], [2], [1], [1], [0, 0, 0, 1, 1, 1], [0], [0]>} : vector<2x8x8xbf16>, vector<2x8x8xbf16>, vector<2x8x8xf32> -> vector<2x8x8xf32>
    "tpu.trace_stop"() : () -> ()
    %128 = arith.addf %127, %8 : vector<2x8x8xf32>
    %cst_57 = arith.constant dense<0xFF800000> : vector<2x8xf32>
    %129 = vector.multi_reduction <maximumf>, %128, %cst_57 [2] : vector<2x8x8xf32> to vector<2x8xf32>
    %130 = vector.shape_cast %129 : vector<2x8xf32> to vector<2x8x1xf32>
    %131 = vector.broadcast %130 : vector<2x8x1xf32> to vector<2x8x8xf32>
    %132 = arith.subf %128, %131 : vector<2x8x8xf32>
    %133 = math.exp %132 : vector<2x8x8xf32>
    %cst_58 = arith.constant dense<0.000000e+00> : vector<2x8xf32>
    %134 = vector.multi_reduction <add>, %133, %cst_58 [2] : vector<2x8x8xf32> to vector<2x8xf32>
    %135 = vector.shape_cast %134 : vector<2x8xf32> to vector<2x8x1xf32>
    %136 = tpu.reciprocal %135 {approx = true} : vector<2x8x1xf32> -> vector<2x8x1xf32>
    %137 = vector.broadcast %136 : vector<2x8x1xf32> to vector<2x8x8xf32>
    %138 = arith.mulf %133, %137 : vector<2x8x8xf32>
    %139 = arith.truncf %138 : vector<2x8x8xf32> to vector<2x8x8xbf16>
    "tpu.trace_start"() <{level = 10 : i32, message = "bqk,bkd->bqd"}> : () -> ()
    %cst_59 = arith.constant dense<0.000000e+00> : vector<2x8x8xf32>
    %140 = tpu.matmul %139, %126, %cst_59 {dimension_numbers = #tpu.dot_dimension_numbers<[2], [1], [1], [2], [0, 0, 0, 1, 1, 2], [0], [0]>} : vector<2x8x8xbf16>, vector<2x8x8xbf16>, vector<2x8x8xf32> -> vector<2x8x8xf32>
    "tpu.trace_stop"() : () -> ()
    %141 = vector.shape_cast %140 : vector<2x8x8xf32> to vector<16x8xf32>
    %142 = arith.truncf %141 : vector<16x8xf32> to vector<16x8xbf16>
    %c0_60 = arith.constant 0 : index
    %c0_61 = arith.constant 0 : index
    %c3 = arith.constant 3 : index
    %c0_62 = arith.constant 0 : index
    %c0_63 = arith.constant 0 : index
    %143 = vector.load %arg7[%c0_60, %c0_61, %c3, %c0_62, %c0_63] : memref<1x2x4x8x32xbf16, #tpu.memory_space<vmem>>, vector<1x1x1x8x32xbf16>
    %144 = vector.shape_cast %143 : vector<1x1x1x8x32xbf16> to vector<8x32xbf16>
    %cst_64 = arith.constant dense<0.000000e+00> : vector<16x32xf32>
    %145 = tpu.matmul %142, %144, %cst_64 {dimension_numbers = #tpu.dot_dimension_numbers<[1], [0], [0], [1], [0, 0, 1, 1], [], []>} : vector<16x8xbf16>, vector<8x32xbf16>, vector<16x32xf32> -> vector<16x32xf32>
    %146 = vector.shape_cast %145 : vector<16x32xf32> to vector<2x8x32xf32>
    %147 = arith.addf %123, %146 : vector<2x8x32xf32>
    %148 = arith.addf %38, %147 : vector<2x8x32xf32>
    %c0_65 = arith.constant 0 : index
    %c0_66 = arith.constant 0 : index
    %c0_67 = arith.constant 0 : index
    %c0_68 = arith.constant 0 : index
    %149 = vector.load %arg8[%c0_65, %c0_66, %c0_67, %c0_68] : memref<1x2x1x32xf32, #tpu.memory_space<vmem>>, vector<1x1x1x32xf32>
    %150 = vector.shape_cast %149 : vector<1x1x1x32xf32> to vector<1x32xf32>
    %151 = vector.shape_cast %150 : vector<1x32xf32> to vector<1x1x32xf32>
    %152 = vector.broadcast %151 : vector<1x1x32xf32> to vector<2x8x32xf32>
    %153 = arith.addf %148, %152 : vector<2x8x32xf32>
    %c0_69 = arith.constant 0 : index
    %c0_70 = arith.constant 0 : index
    %c0_71 = arith.constant 0 : index
    %c0_72 = arith.constant 0 : index
    %154 = vector.load %arg9[%c0_69, %c0_70, %c0_71, %c0_72] : memref<1x2x1x32xf32, #tpu.memory_space<vmem>>, vector<1x1x1x32xf32>
    %155 = vector.shape_cast %154 : vector<1x1x1x32xf32> to vector<1x32xf32>
    %c0_73 = arith.constant 0 : index
    %c0_74 = arith.constant 0 : index
    %c0_75 = arith.constant 0 : index
    %c0_76 = arith.constant 0 : index
    %156 = vector.load %arg10[%c0_73, %c0_74, %c0_75, %c0_76] : memref<1x2x1x32xf32, #tpu.memory_space<vmem>>, vector<1x1x1x32xf32>
    %157 = vector.shape_cast %156 : vector<1x1x1x32xf32> to vector<1x32xf32>
    %cst_77 = arith.constant dense<0.000000e+00> : vector<2x8xf32>
    %158 = vector.multi_reduction <add>, %153, %cst_77 [2] : vector<2x8x32xf32> to vector<2x8xf32>
    %159 = vector.shape_cast %158 : vector<2x8xf32> to vector<2x8x1xf32>
    %cst_78 = arith.constant 3.200000e+01 : f32
    %160 = vector.broadcast %cst_78 : f32 to vector<2x8x1xf32>
    %161 = arith.divf %159, %160 : vector<2x8x1xf32>
    %162 = vector.broadcast %161 : vector<2x8x1xf32> to vector<2x8x32xf32>
    %163 = arith.subf %153, %162 : vector<2x8x32xf32>
    %164 = arith.mulf %163, %163 : vector<2x8x32xf32>
    %cst_79 = arith.constant dense<0.000000e+00> : vector<2x8xf32>
    %165 = vector.multi_reduction <add>, %164, %cst_79 [2] : vector<2x8x32xf32> to vector<2x8xf32>
    %166 = vector.shape_cast %165 : vector<2x8xf32> to vector<2x8x1xf32>
    %cst_80 = arith.constant 3.200000e+01 : f32
    %167 = vector.broadcast %cst_80 : f32 to vector<2x8x1xf32>
    %168 = arith.divf %166, %167 : vector<2x8x1xf32>
    %169 = vector.broadcast %161 : vector<2x8x1xf32> to vector<2x8x32xf32>
    %170 = arith.subf %153, %169 : vector<2x8x32xf32>
    %cst_81 = arith.constant 9.99999996E-13 : f32
    %171 = vector.broadcast %cst_81 : f32 to vector<2x8x1xf32>
    %172 = arith.addf %168, %171 : vector<2x8x1xf32>
    %173 = math.rsqrt %172 : vector<2x8x1xf32>
    %174 = vector.broadcast %173 : vector<2x8x1xf32> to vector<2x8x32xf32>
    %175 = arith.mulf %170, %174 : vector<2x8x32xf32>
    %176 = vector.shape_cast %155 : vector<1x32xf32> to vector<1x1x32xf32>
    %177 = vector.broadcast %176 : vector<1x1x32xf32> to vector<2x8x32xf32>
    %178 = arith.mulf %175, %177 : vector<2x8x32xf32>
    %179 = vector.shape_cast %157 : vector<1x32xf32> to vector<1x1x32xf32>
    %180 = vector.broadcast %179 : vector<1x1x32xf32> to vector<2x8x32xf32>
    %181 = arith.addf %178, %180 : vector<2x8x32xf32>
    %c0_82 = arith.constant 0 : index
    %c0_83 = arith.constant 0 : index
    %c0_84 = arith.constant 0 : index
    %c0_85 = arith.constant 0 : index
    %182 = vector.load %arg11[%c0_82, %c0_83, %c0_84, %c0_85] : memref<1x2x32x64xbf16, #tpu.memory_space<vmem>>, vector<1x1x32x64xbf16>
    %183 = vector.shape_cast %182 : vector<1x1x32x64xbf16> to vector<32x64xbf16>
    %c0_86 = arith.constant 0 : index
    %c0_87 = arith.constant 0 : index
    %c0_88 = arith.constant 0 : index
    %c0_89 = arith.constant 0 : index
    %184 = vector.load %arg12[%c0_86, %c0_87, %c0_88, %c0_89] : memref<1x2x1x64xf32, #tpu.memory_space<vmem>>, vector<1x1x1x64xf32>
    %185 = vector.shape_cast %184 : vector<1x1x1x64xf32> to vector<1x64xf32>
    %186 = vector.shape_cast %181 : vector<2x8x32xf32> to vector<16x32xf32>
    %187 = arith.truncf %186 : vector<16x32xf32> to vector<16x32xbf16>
    %cst_90 = arith.constant dense<0.000000e+00> : vector<16x64xf32>
    %188 = tpu.matmul %187, %183, %cst_90 {dimension_numbers = #tpu.dot_dimension_numbers<[1], [0], [0], [1], [0, 0, 1, 1], [], []>} : vector<16x32xbf16>, vector<32x64xbf16>, vector<16x64xf32> -> vector<16x64xf32>
    %189 = vector.shape_cast %188 : vector<16x64xf32> to vector<2x8x64xf32>
    %190 = vector.shape_cast %185 : vector<1x64xf32> to vector<1x1x64xf32>
    %191 = vector.broadcast %190 : vector<1x1x64xf32> to vector<2x8x64xf32>
    %192 = arith.addf %189, %191 : vector<2x8x64xf32>
    %cst_91 = arith.constant 5.000000e-01 : f32
    %193 = vector.broadcast %cst_91 : f32 to vector<2x8x64xf32>
    %194 = arith.mulf %193, %192 : vector<2x8x64xf32>
    %cst_92 = arith.constant 4.471500e-02 : f32
    %195 = vector.broadcast %cst_92 : f32 to vector<2x8x64xf32>
    %196 = arith.mulf %195, %192 : vector<2x8x64xf32>
    %197 = arith.mulf %196, %192 : vector<2x8x64xf32>
    %198 = arith.mulf %197, %192 : vector<2x8x64xf32>
    %199 = arith.addf %192, %198 : vector<2x8x64xf32>
    %cst_93 = arith.constant 0.797884583 : f32
    %200 = vector.broadcast %cst_93 : f32 to vector<2x8x64xf32>
    %201 = arith.mulf %200, %199 : vector<2x8x64xf32>
    %202 = math.tanh %201 : vector<2x8x64xf32>
    %cst_94 = arith.constant 1.000000e+00 : f32
    %203 = vector.broadcast %cst_94 : f32 to vector<2x8x64xf32>
    %204 = arith.addf %203, %202 : vector<2x8x64xf32>
    %205 = arith.mulf %194, %204 : vector<2x8x64xf32>
    %c0_95 = arith.constant 0 : index
    %c0_96 = arith.constant 0 : index
    %c0_97 = arith.constant 0 : index
    %c0_98 = arith.constant 0 : index
    %206 = vector.load %arg13[%c0_95, %c0_96, %c0_97, %c0_98] : memref<1x2x64x32xbf16, #tpu.memory_space<vmem>>, vector<1x1x64x32xbf16>
    %207 = vector.shape_cast %206 : vector<1x1x64x32xbf16> to vector<64x32xbf16>
    %c0_99 = arith.constant 0 : index
    %c0_100 = arith.constant 0 : index
    %c0_101 = arith.constant 0 : index
    %c0_102 = arith.constant 0 : index
    %208 = vector.load %arg14[%c0_99, %c0_100, %c0_101, %c0_102] : memref<1x2x1x32xf32, #tpu.memory_space<vmem>>, vector<1x1x1x32xf32>
    %209 = vector.shape_cast %208 : vector<1x1x1x32xf32> to vector<1x32xf32>
    %210 = vector.shape_cast %205 : vector<2x8x64xf32> to vector<16x64xf32>
    %211 = arith.truncf %210 : vector<16x64xf32> to vector<16x64xbf16>
    %cst_103 = arith.constant dense<0.000000e+00> : vector<16x32xf32>
    %212 = tpu.matmul %211, %207, %cst_103 {dimension_numbers = #tpu.dot_dimension_numbers<[1], [0], [0], [1], [0, 0, 1, 1], [], []>} : vector<16x64xbf16>, vector<64x32xbf16>, vector<16x32xf32> -> vector<16x32xf32>
    %213 = vector.shape_cast %212 : vector<16x32xf32> to vector<2x8x32xf32>
    %214 = vector.shape_cast %209 : vector<1x32xf32> to vector<1x1x32xf32>
    %215 = vector.broadcast %214 : vector<1x1x32xf32> to vector<2x8x32xf32>
    %216 = arith.addf %213, %215 : vector<2x8x32xf32>
    %217 = arith.addf %181, %216 : vector<2x8x32xf32>
    %c0_104 = arith.constant 0 : index
    %c0_105 = arith.constant 0 : index
    %c0_106 = arith.constant 0 : index
    %c0_107 = arith.constant 0 : index
    %218 = vector.load %arg15[%c0_104, %c0_105, %c0_106, %c0_107] : memref<1x2x1x32xf32, #tpu.memory_space<vmem>>, vector<1x1x1x32xf32>
    %219 = vector.shape_cast %218 : vector<1x1x1x32xf32> to vector<1x32xf32>
    %c0_108 = arith.constant 0 : index
    %c0_109 = arith.constant 0 : index
    %c0_110 = arith.constant 0 : index
    %c0_111 = arith.constant 0 : index
    %220 = vector.load %arg16[%c0_108, %c0_109, %c0_110, %c0_111] : memref<1x2x1x32xf32, #tpu.memory_space<vmem>>, vector<1x1x1x32xf32>
    %221 = vector.shape_cast %220 : vector<1x1x1x32xf32> to vector<1x32xf32>
    %cst_112 = arith.constant dense<0.000000e+00> : vector<2x8xf32>
    %222 = vector.multi_reduction <add>, %217, %cst_112 [2] : vector<2x8x32xf32> to vector<2x8xf32>
    %223 = vector.shape_cast %222 : vector<2x8xf32> to vector<2x8x1xf32>
    %cst_113 = arith.constant 3.200000e+01 : f32
    %224 = vector.broadcast %cst_113 : f32 to vector<2x8x1xf32>
    %225 = arith.divf %223, %224 : vector<2x8x1xf32>
    %226 = vector.broadcast %225 : vector<2x8x1xf32> to vector<2x8x32xf32>
    %227 = arith.subf %217, %226 : vector<2x8x32xf32>
    %228 = arith.mulf %227, %227 : vector<2x8x32xf32>
    %cst_114 = arith.constant dense<0.000000e+00> : vector<2x8xf32>
    %229 = vector.multi_reduction <add>, %228, %cst_114 [2] : vector<2x8x32xf32> to vector<2x8xf32>
    %230 = vector.shape_cast %229 : vector<2x8xf32> to vector<2x8x1xf32>
    %cst_115 = arith.constant 3.200000e+01 : f32
    %231 = vector.broadcast %cst_115 : f32 to vector<2x8x1xf32>
    %232 = arith.divf %230, %231 : vector<2x8x1xf32>
    %233 = vector.broadcast %225 : vector<2x8x1xf32> to vector<2x8x32xf32>
    %234 = arith.subf %217, %233 : vector<2x8x32xf32>
    %cst_116 = arith.constant 9.99999996E-13 : f32
    %235 = vector.broadcast %cst_116 : f32 to vector<2x8x1xf32>
    %236 = arith.addf %232, %235 : vector<2x8x1xf32>
    %237 = math.rsqrt %236 : vector<2x8x1xf32>
    %238 = vector.broadcast %237 : vector<2x8x1xf32> to vector<2x8x32xf32>
    %239 = arith.mulf %234, %238 : vector<2x8x32xf32>
    %240 = vector.shape_cast %219 : vector<1x32xf32> to vector<1x1x32xf32>
    %241 = vector.broadcast %240 : vector<1x1x32xf32> to vector<2x8x32xf32>
    %242 = arith.mulf %239, %241 : vector<2x8x32xf32>
    %243 = vector.shape_cast %221 : vector<1x32xf32> to vector<1x1x32xf32>
    %244 = vector.broadcast %243 : vector<1x1x32xf32> to vector<2x8x32xf32>
    %245 = arith.addf %242, %244 : vector<2x8x32xf32>
    %c0_117 = arith.constant 0 : index
    %c1_118 = arith.constant 1 : index
    %c0_119 = arith.constant 0 : index
    %c0_120 = arith.constant 0 : index
    %246 = vector.load %arg5[%c0_117, %c1_118, %c0_119, %c0_120] : memref<1x2x32x96xbf16, #tpu.memory_space<vmem>>, vector<1x1x32x96xbf16>
    %247 = vector.shape_cast %246 : vector<1x1x32x96xbf16> to vector<32x96xbf16>
    %c0_121 = arith.constant 0 : index
    %c1_122 = arith.constant 1 : index
    %c0_123 = arith.constant 0 : index
    %c0_124 = arith.constant 0 : index
    %248 = vector.load %arg6[%c0_121, %c1_122, %c0_123, %c0_124] : memref<1x2x1x96xf32, #tpu.memory_space<vmem>>, vector<1x1x1x96xf32>
    %249 = vector.shape_cast %248 : vector<1x1x1x96xf32> to vector<1x96xf32>
    %250 = vector.shape_cast %245 : vector<2x8x32xf32> to vector<16x32xf32>
    %251 = arith.truncf %250 : vector<16x32xf32> to vector<16x32xbf16>
    %cst_125 = arith.constant dense<0.000000e+00> : vector<16x96xf32>
    %252 = tpu.matmul %251, %247, %cst_125 {dimension_numbers = #tpu.dot_dimension_numbers<[1], [0], [0], [1], [0, 0, 1, 1], [], []>} : vector<16x32xbf16>, vector<32x96xbf16>, vector<16x96xf32> -> vector<16x96xf32>
    %253 = vector.shape_cast %252 : vector<16x96xf32> to vector<2x8x96xf32>
    %254 = vector.shape_cast %249 : vector<1x96xf32> to vector<1x1x96xf32>
    %255 = vector.broadcast %254 : vector<1x1x96xf32> to vector<2x8x96xf32>
    %256 = arith.addf %253, %255 : vector<2x8x96xf32>
    %257 = arith.truncf %256 : vector<2x8x96xf32> to vector<2x8x96xbf16>
    %cst_126 = arith.constant 0.000000e+00 : f32
    %258 = vector.broadcast %cst_126 : f32 to vector<2x8x32xf32>
    %259 = vector.extract_strided_slice %257 {offsets = [0, 0, 0], sizes = [2, 8, 8], strides = [1, 1, 1]} : vector<2x8x96xbf16> to vector<2x8x8xbf16>
    %260 = vector.extract_strided_slice %257 {offsets = [0, 0, 32], sizes = [2, 8, 8], strides = [1, 1, 1]} : vector<2x8x96xbf16> to vector<2x8x8xbf16>
    %261 = vector.extract_strided_slice %257 {offsets = [0, 0, 64], sizes = [2, 8, 8], strides = [1, 1, 1]} : vector<2x8x96xbf16> to vector<2x8x8xbf16>
    "tpu.trace_start"() <{level = 10 : i32, message = "bqd,bkd->bqk"}> : () -> ()
    %cst_127 = arith.constant dense<0.000000e+00> : vector<2x8x8xf32>
    %262 = tpu.matmul %259, %260, %cst_127 {dimension_numbers = #tpu.dot_dimension_numbers<[2], [2], [1], [1], [0, 0, 0, 1, 1, 1], [0], [0]>} : vector<2x8x8xbf16>, vector<2x8x8xbf16>, vector<2x8x8xf32> -> vector<2x8x8xf32>
    "tpu.trace_stop"() : () -> ()
    %263 = arith.addf %262, %8 : vector<2x8x8xf32>
    %cst_128 = arith.constant dense<0xFF800000> : vector<2x8xf32>
    %264 = vector.multi_reduction <maximumf>, %263, %cst_128 [2] : vector<2x8x8xf32> to vector<2x8xf32>
    %265 = vector.shape_cast %264 : vector<2x8xf32> to vector<2x8x1xf32>
    %266 = vector.broadcast %265 : vector<2x8x1xf32> to vector<2x8x8xf32>
    %267 = arith.subf %263, %266 : vector<2x8x8xf32>
    %268 = math.exp %267 : vector<2x8x8xf32>
    %cst_129 = arith.constant dense<0.000000e+00> : vector<2x8xf32>
    %269 = vector.multi_reduction <add>, %268, %cst_129 [2] : vector<2x8x8xf32> to vector<2x8xf32>
    %270 = vector.shape_cast %269 : vector<2x8xf32> to vector<2x8x1xf32>
    %271 = tpu.reciprocal %270 {approx = true} : vector<2x8x1xf32> -> vector<2x8x1xf32>
    %272 = vector.broadcast %271 : vector<2x8x1xf32> to vector<2x8x8xf32>
    %273 = arith.mulf %268, %272 : vector<2x8x8xf32>
    %274 = arith.truncf %273 : vector<2x8x8xf32> to vector<2x8x8xbf16>
    "tpu.trace_start"() <{level = 10 : i32, message = "bqk,bkd->bqd"}> : () -> ()
    %cst_130 = arith.constant dense<0.000000e+00> : vector<2x8x8xf32>
    %275 = tpu.matmul %274, %261, %cst_130 {dimension_numbers = #tpu.dot_dimension_numbers<[2], [1], [1], [2], [0, 0, 0, 1, 1, 2], [0], [0]>} : vector<2x8x8xbf16>, vector<2x8x8xbf16>, vector<2x8x8xf32> -> vector<2x8x8xf32>
    "tpu.trace_stop"() : () -> ()
    %276 = vector.shape_cast %275 : vector<2x8x8xf32> to vector<16x8xf32>
    %277 = arith.truncf %276 : vector<16x8xf32> to vector<16x8xbf16>
    %c0_131 = arith.constant 0 : index
    %c1_132 = arith.constant 1 : index
    %c0_133 = arith.constant 0 : index
    %c0_134 = arith.constant 0 : index
    %c0_135 = arith.constant 0 : index
    %278 = vector.load %arg7[%c0_131, %c1_132, %c0_133, %c0_134, %c0_135] : memref<1x2x4x8x32xbf16, #tpu.memory_space<vmem>>, vector<1x1x1x8x32xbf16>
    %279 = vector.shape_cast %278 : vector<1x1x1x8x32xbf16> to vector<8x32xbf16>
    %cst_136 = arith.constant dense<0.000000e+00> : vector<16x32xf32>
    %280 = tpu.matmul %277, %279, %cst_136 {dimension_numbers = #tpu.dot_dimension_numbers<[1], [0], [0], [1], [0, 0, 1, 1], [], []>} : vector<16x8xbf16>, vector<8x32xbf16>, vector<16x32xf32> -> vector<16x32xf32>
    %281 = vector.shape_cast %280 : vector<16x32xf32> to vector<2x8x32xf32>
    %282 = arith.addf %258, %281 : vector<2x8x32xf32>
    %283 = vector.extract_strided_slice %257 {offsets = [0, 0, 8], sizes = [2, 8, 8], strides = [1, 1, 1]} : vector<2x8x96xbf16> to vector<2x8x8xbf16>
    %284 = vector.extract_strided_slice %257 {offsets = [0, 0, 40], sizes = [2, 8, 8], strides = [1, 1, 1]} : vector<2x8x96xbf16> to vector<2x8x8xbf16>
    %285 = vector.extract_strided_slice %257 {offsets = [0, 0, 72], sizes = [2, 8, 8], strides = [1, 1, 1]} : vector<2x8x96xbf16> to vector<2x8x8xbf16>
    "tpu.trace_start"() <{level = 10 : i32, message = "bqd,bkd->bqk"}> : () -> ()
    %cst_137 = arith.constant dense<0.000000e+00> : vector<2x8x8xf32>
    %286 = tpu.matmul %283, %284, %cst_137 {dimension_numbers = #tpu.dot_dimension_numbers<[2], [2], [1], [1], [0, 0, 0, 1, 1, 1], [0], [0]>} : vector<2x8x8xbf16>, vector<2x8x8xbf16>, vector<2x8x8xf32> -> vector<2x8x8xf32>
    "tpu.trace_stop"() : () -> ()
    %287 = arith.addf %286, %8 : vector<2x8x8xf32>
    %cst_138 = arith.constant dense<0xFF800000> : vector<2x8xf32>
    %288 = vector.multi_reduction <maximumf>, %287, %cst_138 [2] : vector<2x8x8xf32> to vector<2x8xf32>
    %289 = vector.shape_cast %288 : vector<2x8xf32> to vector<2x8x1xf32>
    %290 = vector.broadcast %289 : vector<2x8x1xf32> to vector<2x8x8xf32>
    %291 = arith.subf %287, %290 : vector<2x8x8xf32>
    %292 = math.exp %291 : vector<2x8x8xf32>
    %cst_139 = arith.constant dense<0.000000e+00> : vector<2x8xf32>
    %293 = vector.multi_reduction <add>, %292, %cst_139 [2] : vector<2x8x8xf32> to vector<2x8xf32>
    %294 = vector.shape_cast %293 : vector<2x8xf32> to vector<2x8x1xf32>
    %295 = tpu.reciprocal %294 {approx = true} : vector<2x8x1xf32> -> vector<2x8x1xf32>
    %296 = vector.broadcast %295 : vector<2x8x1xf32> to vector<2x8x8xf32>
    %297 = arith.mulf %292, %296 : vector<2x8x8xf32>
    %298 = arith.truncf %297 : vector<2x8x8xf32> to vector<2x8x8xbf16>
    "tpu.trace_start"() <{level = 10 : i32, message = "bqk,bkd->bqd"}> : () -> ()
    %cst_140 = arith.constant dense<0.000000e+00> : vector<2x8x8xf32>
    %299 = tpu.matmul %298, %285, %cst_140 {dimension_numbers = #tpu.dot_dimension_numbers<[2], [1], [1], [2], [0, 0, 0, 1, 1, 2], [0], [0]>} : vector<2x8x8xbf16>, vector<2x8x8xbf16>, vector<2x8x8xf32> -> vector<2x8x8xf32>
    "tpu.trace_stop"() : () -> ()
    %300 = vector.shape_cast %299 : vector<2x8x8xf32> to vector<16x8xf32>
    %301 = arith.truncf %300 : vector<16x8xf32> to vector<16x8xbf16>
    %c0_141 = arith.constant 0 : index
    %c1_142 = arith.constant 1 : index
    %c1_143 = arith.constant 1 : index
    %c0_144 = arith.constant 0 : index
    %c0_145 = arith.constant 0 : index
    %302 = vector.load %arg7[%c0_141, %c1_142, %c1_143, %c0_144, %c0_145] : memref<1x2x4x8x32xbf16, #tpu.memory_space<vmem>>, vector<1x1x1x8x32xbf16>
    %303 = vector.shape_cast %302 : vector<1x1x1x8x32xbf16> to vector<8x32xbf16>
    %cst_146 = arith.constant dense<0.000000e+00> : vector<16x32xf32>
    %304 = tpu.matmul %301, %303, %cst_146 {dimension_numbers = #tpu.dot_dimension_numbers<[1], [0], [0], [1], [0, 0, 1, 1], [], []>} : vector<16x8xbf16>, vector<8x32xbf16>, vector<16x32xf32> -> vector<16x32xf32>
    %305 = vector.shape_cast %304 : vector<16x32xf32> to vector<2x8x32xf32>
    %306 = arith.addf %282, %305 : vector<2x8x32xf32>
    %307 = vector.extract_strided_slice %257 {offsets = [0, 0, 16], sizes = [2, 8, 8], strides = [1, 1, 1]} : vector<2x8x96xbf16> to vector<2x8x8xbf16>
    %308 = vector.extract_strided_slice %257 {offsets = [0, 0, 48], sizes = [2, 8, 8], strides = [1, 1, 1]} : vector<2x8x96xbf16> to vector<2x8x8xbf16>
    %309 = vector.extract_strided_slice %257 {offsets = [0, 0, 80], sizes = [2, 8, 8], strides = [1, 1, 1]} : vector<2x8x96xbf16> to vector<2x8x8xbf16>
    "tpu.trace_start"() <{level = 10 : i32, message = "bqd,bkd->bqk"}> : () -> ()
    %cst_147 = arith.constant dense<0.000000e+00> : vector<2x8x8xf32>
    %310 = tpu.matmul %307, %308, %cst_147 {dimension_numbers = #tpu.dot_dimension_numbers<[2], [2], [1], [1], [0, 0, 0, 1, 1, 1], [0], [0]>} : vector<2x8x8xbf16>, vector<2x8x8xbf16>, vector<2x8x8xf32> -> vector<2x8x8xf32>
    "tpu.trace_stop"() : () -> ()
    %311 = arith.addf %310, %8 : vector<2x8x8xf32>
    %cst_148 = arith.constant dense<0xFF800000> : vector<2x8xf32>
    %312 = vector.multi_reduction <maximumf>, %311, %cst_148 [2] : vector<2x8x8xf32> to vector<2x8xf32>
    %313 = vector.shape_cast %312 : vector<2x8xf32> to vector<2x8x1xf32>
    %314 = vector.broadcast %313 : vector<2x8x1xf32> to vector<2x8x8xf32>
    %315 = arith.subf %311, %314 : vector<2x8x8xf32>
    %316 = math.exp %315 : vector<2x8x8xf32>
    %cst_149 = arith.constant dense<0.000000e+00> : vector<2x8xf32>
    %317 = vector.multi_reduction <add>, %316, %cst_149 [2] : vector<2x8x8xf32> to vector<2x8xf32>
    %318 = vector.shape_cast %317 : vector<2x8xf32> to vector<2x8x1xf32>
    %319 = tpu.reciprocal %318 {approx = true} : vector<2x8x1xf32> -> vector<2x8x1xf32>
    %320 = vector.broadcast %319 : vector<2x8x1xf32> to vector<2x8x8xf32>
    %321 = arith.mulf %316, %320 : vector<2x8x8xf32>
    %322 = arith.truncf %321 : vector<2x8x8xf32> to vector<2x8x8xbf16>
    "tpu.trace_start"() <{level = 10 : i32, message = "bqk,bkd->bqd"}> : () -> ()
    %cst_150 = arith.constant dense<0.000000e+00> : vector<2x8x8xf32>
    %323 = tpu.matmul %322, %309, %cst_150 {dimension_numbers = #tpu.dot_dimension_numbers<[2], [1], [1], [2], [0, 0, 0, 1, 1, 2], [0], [0]>} : vector<2x8x8xbf16>, vector<2x8x8xbf16>, vector<2x8x8xf32> -> vector<2x8x8xf32>
    "tpu.trace_stop"() : () -> ()
    %324 = vector.shape_cast %323 : vector<2x8x8xf32> to vector<16x8xf32>
    %325 = arith.truncf %324 : vector<16x8xf32> to vector<16x8xbf16>
    %c0_151 = arith.constant 0 : index
    %c1_152 = arith.constant 1 : index
    %c2_153 = arith.constant 2 : index
    %c0_154 = arith.constant 0 : index
    %c0_155 = arith.constant 0 : index
    %326 = vector.load %arg7[%c0_151, %c1_152, %c2_153, %c0_154, %c0_155] : memref<1x2x4x8x32xbf16, #tpu.memory_space<vmem>>, vector<1x1x1x8x32xbf16>
    %327 = vector.shape_cast %326 : vector<1x1x1x8x32xbf16> to vector<8x32xbf16>
    %cst_156 = arith.constant dense<0.000000e+00> : vector<16x32xf32>
    %328 = tpu.matmul %325, %327, %cst_156 {dimension_numbers = #tpu.dot_dimension_numbers<[1], [0], [0], [1], [0, 0, 1, 1], [], []>} : vector<16x8xbf16>, vector<8x32xbf16>, vector<16x32xf32> -> vector<16x32xf32>
    %329 = vector.shape_cast %328 : vector<16x32xf32> to vector<2x8x32xf32>
    %330 = arith.addf %306, %329 : vector<2x8x32xf32>
    %331 = vector.extract_strided_slice %257 {offsets = [0, 0, 24], sizes = [2, 8, 8], strides = [1, 1, 1]} : vector<2x8x96xbf16> to vector<2x8x8xbf16>
    %332 = vector.extract_strided_slice %257 {offsets = [0, 0, 56], sizes = [2, 8, 8], strides = [1, 1, 1]} : vector<2x8x96xbf16> to vector<2x8x8xbf16>
    %333 = vector.extract_strided_slice %257 {offsets = [0, 0, 88], sizes = [2, 8, 8], strides = [1, 1, 1]} : vector<2x8x96xbf16> to vector<2x8x8xbf16>
    "tpu.trace_start"() <{level = 10 : i32, message = "bqd,bkd->bqk"}> : () -> ()
    %cst_157 = arith.constant dense<0.000000e+00> : vector<2x8x8xf32>
    %334 = tpu.matmul %331, %332, %cst_157 {dimension_numbers = #tpu.dot_dimension_numbers<[2], [2], [1], [1], [0, 0, 0, 1, 1, 1], [0], [0]>} : vector<2x8x8xbf16>, vector<2x8x8xbf16>, vector<2x8x8xf32> -> vector<2x8x8xf32>
    "tpu.trace_stop"() : () -> ()
    %335 = arith.addf %334, %8 : vector<2x8x8xf32>
    %cst_158 = arith.constant dense<0xFF800000> : vector<2x8xf32>
    %336 = vector.multi_reduction <maximumf>, %335, %cst_158 [2] : vector<2x8x8xf32> to vector<2x8xf32>
    %337 = vector.shape_cast %336 : vector<2x8xf32> to vector<2x8x1xf32>
    %338 = vector.broadcast %337 : vector<2x8x1xf32> to vector<2x8x8xf32>
    %339 = arith.subf %335, %338 : vector<2x8x8xf32>
    %340 = math.exp %339 : vector<2x8x8xf32>
    %cst_159 = arith.constant dense<0.000000e+00> : vector<2x8xf32>
    %341 = vector.multi_reduction <add>, %340, %cst_159 [2] : vector<2x8x8xf32> to vector<2x8xf32>
    %342 = vector.shape_cast %341 : vector<2x8xf32> to vector<2x8x1xf32>
    %343 = tpu.reciprocal %342 {approx = true} : vector<2x8x1xf32> -> vector<2x8x1xf32>
    %344 = vector.broadcast %343 : vector<2x8x1xf32> to vector<2x8x8xf32>
    %345 = arith.mulf %340, %344 : vector<2x8x8xf32>
    %346 = arith.truncf %345 : vector<2x8x8xf32> to vector<2x8x8xbf16>
    "tpu.trace_start"() <{level = 10 : i32, message = "bqk,bkd->bqd"}> : () -> ()
    %cst_160 = arith.constant dense<0.000000e+00> : vector<2x8x8xf32>
    %347 = tpu.matmul %346, %333, %cst_160 {dimension_numbers = #tpu.dot_dimension_numbers<[2], [1], [1], [2], [0, 0, 0, 1, 1, 2], [0], [0]>} : vector<2x8x8xbf16>, vector<2x8x8xbf16>, vector<2x8x8xf32> -> vector<2x8x8xf32>
    "tpu.trace_stop"() : () -> ()
    %348 = vector.shape_cast %347 : vector<2x8x8xf32> to vector<16x8xf32>
    %349 = arith.truncf %348 : vector<16x8xf32> to vector<16x8xbf16>
    %c0_161 = arith.constant 0 : index
    %c1_162 = arith.constant 1 : index
    %c3_163 = arith.constant 3 : index
    %c0_164 = arith.constant 0 : index
    %c0_165 = arith.constant 0 : index
    %350 = vector.load %arg7[%c0_161, %c1_162, %c3_163, %c0_164, %c0_165] : memref<1x2x4x8x32xbf16, #tpu.memory_space<vmem>>, vector<1x1x1x8x32xbf16>
    %351 = vector.shape_cast %350 : vector<1x1x1x8x32xbf16> to vector<8x32xbf16>
    %cst_166 = arith.constant dense<0.000000e+00> : vector<16x32xf32>
    %352 = tpu.matmul %349, %351, %cst_166 {dimension_numbers = #tpu.dot_dimension_numbers<[1], [0], [0], [1], [0, 0, 1, 1], [], []>} : vector<16x8xbf16>, vector<8x32xbf16>, vector<16x32xf32> -> vector<16x32xf32>
    %353 = vector.shape_cast %352 : vector<16x32xf32> to vector<2x8x32xf32>
    %354 = arith.addf %330, %353 : vector<2x8x32xf32>
    %355 = arith.addf %245, %354 : vector<2x8x32xf32>
    %c0_167 = arith.constant 0 : index
    %c1_168 = arith.constant 1 : index
    %c0_169 = arith.constant 0 : index
    %c0_170 = arith.constant 0 : index
    %356 = vector.load %arg8[%c0_167, %c1_168, %c0_169, %c0_170] : memref<1x2x1x32xf32, #tpu.memory_space<vmem>>, vector<1x1x1x32xf32>
    %357 = vector.shape_cast %356 : vector<1x1x1x32xf32> to vector<1x32xf32>
    %358 = vector.shape_cast %357 : vector<1x32xf32> to vector<1x1x32xf32>
    %359 = vector.broadcast %358 : vector<1x1x32xf32> to vector<2x8x32xf32>
    %360 = arith.addf %355, %359 : vector<2x8x32xf32>
    %c0_171 = arith.constant 0 : index
    %c1_172 = arith.constant 1 : index
    %c0_173 = arith.constant 0 : index
    %c0_174 = arith.constant 0 : index
    %361 = vector.load %arg9[%c0_171, %c1_172, %c0_173, %c0_174] : memref<1x2x1x32xf32, #tpu.memory_space<vmem>>, vector<1x1x1x32xf32>
    %362 = vector.shape_cast %361 : vector<1x1x1x32xf32> to vector<1x32xf32>
    %c0_175 = arith.constant 0 : index
    %c1_176 = arith.constant 1 : index
    %c0_177 = arith.constant 0 : index
    %c0_178 = arith.constant 0 : index
    %363 = vector.load %arg10[%c0_175, %c1_176, %c0_177, %c0_178] : memref<1x2x1x32xf32, #tpu.memory_space<vmem>>, vector<1x1x1x32xf32>
    %364 = vector.shape_cast %363 : vector<1x1x1x32xf32> to vector<1x32xf32>
    %cst_179 = arith.constant dense<0.000000e+00> : vector<2x8xf32>
    %365 = vector.multi_reduction <add>, %360, %cst_179 [2] : vector<2x8x32xf32> to vector<2x8xf32>
    %366 = vector.shape_cast %365 : vector<2x8xf32> to vector<2x8x1xf32>
    %cst_180 = arith.constant 3.200000e+01 : f32
    %367 = vector.broadcast %cst_180 : f32 to vector<2x8x1xf32>
    %368 = arith.divf %366, %367 : vector<2x8x1xf32>
    %369 = vector.broadcast %368 : vector<2x8x1xf32> to vector<2x8x32xf32>
    %370 = arith.subf %360, %369 : vector<2x8x32xf32>
    %371 = arith.mulf %370, %370 : vector<2x8x32xf32>
    %cst_181 = arith.constant dense<0.000000e+00> : vector<2x8xf32>
    %372 = vector.multi_reduction <add>, %371, %cst_181 [2] : vector<2x8x32xf32> to vector<2x8xf32>
    %373 = vector.shape_cast %372 : vector<2x8xf32> to vector<2x8x1xf32>
    %cst_182 = arith.constant 3.200000e+01 : f32
    %374 = vector.broadcast %cst_182 : f32 to vector<2x8x1xf32>
    %375 = arith.divf %373, %374 : vector<2x8x1xf32>
    %376 = vector.broadcast %368 : vector<2x8x1xf32> to vector<2x8x32xf32>
    %377 = arith.subf %360, %376 : vector<2x8x32xf32>
    %cst_183 = arith.constant 9.99999996E-13 : f32
    %378 = vector.broadcast %cst_183 : f32 to vector<2x8x1xf32>
    %379 = arith.addf %375, %378 : vector<2x8x1xf32>
    %380 = math.rsqrt %379 : vector<2x8x1xf32>
    %381 = vector.broadcast %380 : vector<2x8x1xf32> to vector<2x8x32xf32>
    %382 = arith.mulf %377, %381 : vector<2x8x32xf32>
    %383 = vector.shape_cast %362 : vector<1x32xf32> to vector<1x1x32xf32>
    %384 = vector.broadcast %383 : vector<1x1x32xf32> to vector<2x8x32xf32>
    %385 = arith.mulf %382, %384 : vector<2x8x32xf32>
    %386 = vector.shape_cast %364 : vector<1x32xf32> to vector<1x1x32xf32>
    %387 = vector.broadcast %386 : vector<1x1x32xf32> to vector<2x8x32xf32>
    %388 = arith.addf %385, %387 : vector<2x8x32xf32>
    %c0_184 = arith.constant 0 : index
    %c1_185 = arith.constant 1 : index
    %c0_186 = arith.constant 0 : index
    %c0_187 = arith.constant 0 : index
    %389 = vector.load %arg11[%c0_184, %c1_185, %c0_186, %c0_187] : memref<1x2x32x64xbf16, #tpu.memory_space<vmem>>, vector<1x1x32x64xbf16>
    %390 = vector.shape_cast %389 : vector<1x1x32x64xbf16> to vector<32x64xbf16>
    %c0_188 = arith.constant 0 : index
    %c1_189 = arith.constant 1 : index
    %c0_190 = arith.constant 0 : index
    %c0_191 = arith.constant 0 : index
    %391 = vector.load %arg12[%c0_188, %c1_189, %c0_190, %c0_191] : memref<1x2x1x64xf32, #tpu.memory_space<vmem>>, vector<1x1x1x64xf32>
    %392 = vector.shape_cast %391 : vector<1x1x1x64xf32> to vector<1x64xf32>
    %393 = vector.shape_cast %388 : vector<2x8x32xf32> to vector<16x32xf32>
    %394 = arith.truncf %393 : vector<16x32xf32> to vector<16x32xbf16>
    %cst_192 = arith.constant dense<0.000000e+00> : vector<16x64xf32>
    %395 = tpu.matmul %394, %390, %cst_192 {dimension_numbers = #tpu.dot_dimension_numbers<[1], [0], [0], [1], [0, 0, 1, 1], [], []>} : vector<16x32xbf16>, vector<32x64xbf16>, vector<16x64xf32> -> vector<16x64xf32>
    %396 = vector.shape_cast %395 : vector<16x64xf32> to vector<2x8x64xf32>
    %397 = vector.shape_cast %392 : vector<1x64xf32> to vector<1x1x64xf32>
    %398 = vector.broadcast %397 : vector<1x1x64xf32> to vector<2x8x64xf32>
    %399 = arith.addf %396, %398 : vector<2x8x64xf32>
    %cst_193 = arith.constant 5.000000e-01 : f32
    %400 = vector.broadcast %cst_193 : f32 to vector<2x8x64xf32>
    %401 = arith.mulf %400, %399 : vector<2x8x64xf32>
    %cst_194 = arith.constant 4.471500e-02 : f32
    %402 = vector.broadcast %cst_194 : f32 to vector<2x8x64xf32>
    %403 = arith.mulf %402, %399 : vector<2x8x64xf32>
    %404 = arith.mulf %403, %399 : vector<2x8x64xf32>
    %405 = arith.mulf %404, %399 : vector<2x8x64xf32>
    %406 = arith.addf %399, %405 : vector<2x8x64xf32>
    %cst_195 = arith.constant 0.797884583 : f32
    %407 = vector.broadcast %cst_195 : f32 to vector<2x8x64xf32>
    %408 = arith.mulf %407, %406 : vector<2x8x64xf32>
    %409 = math.tanh %408 : vector<2x8x64xf32>
    %cst_196 = arith.constant 1.000000e+00 : f32
    %410 = vector.broadcast %cst_196 : f32 to vector<2x8x64xf32>
    %411 = arith.addf %410, %409 : vector<2x8x64xf32>
    %412 = arith.mulf %401, %411 : vector<2x8x64xf32>
    %c0_197 = arith.constant 0 : index
    %c1_198 = arith.constant 1 : index
    %c0_199 = arith.constant 0 : index
    %c0_200 = arith.constant 0 : index
    %413 = vector.load %arg13[%c0_197, %c1_198, %c0_199, %c0_200] : memref<1x2x64x32xbf16, #tpu.memory_space<vmem>>, vector<1x1x64x32xbf16>
    %414 = vector.shape_cast %413 : vector<1x1x64x32xbf16> to vector<64x32xbf16>
    %c0_201 = arith.constant 0 : index
    %c1_202 = arith.constant 1 : index
    %c0_203 = arith.constant 0 : index
    %c0_204 = arith.constant 0 : index
    %415 = vector.load %arg14[%c0_201, %c1_202, %c0_203, %c0_204] : memref<1x2x1x32xf32, #tpu.memory_space<vmem>>, vector<1x1x1x32xf32>
    %416 = vector.shape_cast %415 : vector<1x1x1x32xf32> to vector<1x32xf32>
    %417 = vector.shape_cast %412 : vector<2x8x64xf32> to vector<16x64xf32>
    %418 = arith.truncf %417 : vector<16x64xf32> to vector<16x64xbf16>
    %cst_205 = arith.constant dense<0.000000e+00> : vector<16x32xf32>
    %419 = tpu.matmul %418, %414, %cst_205 {dimension_numbers = #tpu.dot_dimension_numbers<[1], [0], [0], [1], [0, 0, 1, 1], [], []>} : vector<16x64xbf16>, vector<64x32xbf16>, vector<16x32xf32> -> vector<16x32xf32>
    %420 = vector.shape_cast %419 : vector<16x32xf32> to vector<2x8x32xf32>
    %421 = vector.shape_cast %416 : vector<1x32xf32> to vector<1x1x32xf32>
    %422 = vector.broadcast %421 : vector<1x1x32xf32> to vector<2x8x32xf32>
    %423 = arith.addf %420, %422 : vector<2x8x32xf32>
    %424 = arith.addf %388, %423 : vector<2x8x32xf32>
    %c0_206 = arith.constant 0 : index
    %c1_207 = arith.constant 1 : index
    %c0_208 = arith.constant 0 : index
    %c0_209 = arith.constant 0 : index
    %425 = vector.load %arg15[%c0_206, %c1_207, %c0_208, %c0_209] : memref<1x2x1x32xf32, #tpu.memory_space<vmem>>, vector<1x1x1x32xf32>
    %426 = vector.shape_cast %425 : vector<1x1x1x32xf32> to vector<1x32xf32>
    %c0_210 = arith.constant 0 : index
    %c1_211 = arith.constant 1 : index
    %c0_212 = arith.constant 0 : index
    %c0_213 = arith.constant 0 : index
    %427 = vector.load %arg16[%c0_210, %c1_211, %c0_212, %c0_213] : memref<1x2x1x32xf32, #tpu.memory_space<vmem>>, vector<1x1x1x32xf32>
    %428 = vector.shape_cast %427 : vector<1x1x1x32xf32> to vector<1x32xf32>
    %cst_214 = arith.constant dense<0.000000e+00> : vector<2x8xf32>
    %429 = vector.multi_reduction <add>, %424, %cst_214 [2] : vector<2x8x32xf32> to vector<2x8xf32>
    %430 = vector.shape_cast %429 : vector<2x8xf32> to vector<2x8x1xf32>
    %cst_215 = arith.constant 3.200000e+01 : f32
    %431 = vector.broadcast %cst_215 : f32 to vector<2x8x1xf32>
    %432 = arith.divf %430, %431 : vector<2x8x1xf32>
    %433 = vector.broadcast %432 : vector<2x8x1xf32> to vector<2x8x32xf32>
    %434 = arith.subf %424, %433 : vector<2x8x32xf32>
    %435 = arith.mulf %434, %434 : vector<2x8x32xf32>
    %cst_216 = arith.constant dense<0.000000e+00> : vector<2x8xf32>
    %436 = vector.multi_reduction <add>, %435, %cst_216 [2] : vector<2x8x32xf32> to vector<2x8xf32>
    %437 = vector.shape_cast %436 : vector<2x8xf32> to vector<2x8x1xf32>
    %cst_217 = arith.constant 3.200000e+01 : f32
    %438 = vector.broadcast %cst_217 : f32 to vector<2x8x1xf32>
    %439 = arith.divf %437, %438 : vector<2x8x1xf32>
    %440 = vector.broadcast %432 : vector<2x8x1xf32> to vector<2x8x32xf32>
    %441 = arith.subf %424, %440 : vector<2x8x32xf32>
    %cst_218 = arith.constant 9.99999996E-13 : f32
    %442 = vector.broadcast %cst_218 : f32 to vector<2x8x1xf32>
    %443 = arith.addf %439, %442 : vector<2x8x1xf32>
    %444 = math.rsqrt %443 : vector<2x8x1xf32>
    %445 = vector.broadcast %444 : vector<2x8x1xf32> to vector<2x8x32xf32>
    %446 = arith.mulf %441, %445 : vector<2x8x32xf32>
    %447 = vector.shape_cast %426 : vector<1x32xf32> to vector<1x1x32xf32>
    %448 = vector.broadcast %447 : vector<1x1x32xf32> to vector<2x8x32xf32>
    %449 = arith.mulf %446, %448 : vector<2x8x32xf32>
    %450 = vector.shape_cast %428 : vector<1x32xf32> to vector<1x1x32xf32>
    %451 = vector.broadcast %450 : vector<1x1x32xf32> to vector<2x8x32xf32>
    %452 = arith.addf %449, %451 : vector<2x8x32xf32>
    %453 = vector.extract_strided_slice %452 {offsets = [0, 0, 0], sizes = [2, 1, 32], strides = [1, 1, 1]} : vector<2x8x32xf32> to vector<2x1x32xf32>
    %454 = vector.shape_cast %453 : vector<2x1x32xf32> to vector<2x32xf32>
    %455 = arith.truncf %454 : vector<2x32xf32> to vector<2x32xbf16>
    %c0_219 = arith.constant 0 : index
    %c0_220 = arith.constant 0 : index
    %c0_221 = arith.constant 0 : index
    %456 = vector.load %arg17[%c0_219, %c0_220, %c0_221] : memref<1x32x32xbf16, #tpu.memory_space<vmem>>, vector<1x32x32xbf16>
    %457 = vector.shape_cast %456 : vector<1x32x32xbf16> to vector<32x32xbf16>
    %cst_222 = arith.constant dense<0.000000e+00> : vector<2x32xf32>
    %458 = tpu.matmul %455, %457, %cst_222 {dimension_numbers = #tpu.dot_dimension_numbers<[1], [0], [0], [1], [0, 0, 1, 1], [], []>} : vector<2x32xbf16>, vector<32x32xbf16>, vector<2x32xf32> -> vector<2x32xf32>
    %c0_223 = arith.constant 0 : index
    %c0_224 = arith.constant 0 : index
    %c0_225 = arith.constant 0 : index
    %459 = vector.load %arg18[%c0_223, %c0_224, %c0_225] : memref<1x1x32xf32, #tpu.memory_space<vmem>>, vector<1x1x32xf32>
    %460 = vector.shape_cast %459 : vector<1x1x32xf32> to vector<1x32xf32>
    %461 = vector.broadcast %460 : vector<1x32xf32> to vector<2x32xf32>
    %462 = arith.addf %458, %461 : vector<2x32xf32>
    %463 = math.tanh %462 : vector<2x32xf32>
    %c0_226 = arith.constant 0 : index
    %c0_227 = arith.constant 0 : index
    %c0_228 = arith.constant 0 : index
    %464 = vector.load %arg19[%c0_226, %c0_227, %c0_228] : memref<1x2x32xf32, #tpu.memory_space<vmem>>, vector<1x2x32xf32>
    %465 = vector.shape_cast %464 : vector<1x2x32xf32> to vector<2x32xf32>
    %466 = vector.shape_cast %463 : vector<2x32xf32> to vector<1x2x32xf32>
    tpu.vector_store %arg19[%c0_226, %c0_227, %c0_228], %466 {strides = array<i32>} : memref<1x2x32xf32, #tpu.memory_space<vmem>>, vector<1x2x32xf32>,
    return
  }
  func.func @transform_0(%arg0: i32) -> (i32, i32, i32, i32) {
    %c0_i32 = arith.constant 0 : i32
    %c0_i32_0 = arith.constant 0 : i32
    %c0_i32_1 = arith.constant 0 : i32
    %c0_i32_2 = arith.constant 0 : i32
    return %arg0, %c0_i32, %c0_i32_0, %c0_i32_1 : i32, i32, i32, i32
  }
  func.func @transform_1(%arg0: i32) -> (i32, i32, i32) {
    %c0_i32 = arith.constant 0 : i32
    %c0_i32_0 = arith.constant 0 : i32
    %c0_i32_1 = arith.constant 0 : i32
    return %arg0, %c0_i32, %c0_i32_0 : i32, i32, i32
  }
  func.func @transform_2(%arg0: i32) -> (i32, i32, i32) {
    %c0_i32 = arith.constant 0 : i32
    %c0_i32_0 = arith.constant 0 : i32
    %c0_i32_1 = arith.constant 0 : i32
    return %arg0, %c0_i32, %c0_i32_0 : i32, i32, i32
  }
  func.func @transform_3(%arg0: i32) -> (i32, i32, i32) {
    %c0_i32 = arith.constant 0 : i32
    %c0_i32_0 = arith.constant 0 : i32
    %c0_i32_1 = arith.constant 0 : i32
    return %arg0, %c0_i32, %c0_i32_0 : i32, i32, i32
  }
  func.func @transform_4(%arg0: i32) -> (i32, i32, i32, i32) {
    %c0_i32 = arith.constant 0 : i32
    %c0_i32_0 = arith.constant 0 : i32
    %c0_i32_1 = arith.constant 0 : i32
    %c0_i32_2 = arith.constant 0 : i32
    return %arg0, %c0_i32, %c0_i32_0, %c0_i32_1 : i32, i32, i32, i32
  }
  func.func @transform_5(%arg0: i32) -> (i32, i32, i32, i32) {
    %c0_i32 = arith.constant 0 : i32
    %c0_i32_0 = arith.constant 0 : i32
    %c0_i32_1 = arith.constant 0 : i32
    %c0_i32_2 = arith.constant 0 : i32
    return %arg0, %c0_i32, %c0_i32_0, %c0_i32_1 : i32, i32, i32, i32
  }
  func.func @transform_6(%arg0: i32) -> (i32, i32, i32, i32, i32) {
    %c0_i32 = arith.constant 0 : i32
    %c0_i32_0 = arith.constant 0 : i32
    %c0_i32_1 = arith.constant 0 : i32
    %c0_i32_2 = arith.constant 0 : i32
    %c0_i32_3 = arith.constant 0 : i32
    return %arg0, %c0_i32, %c0_i32_0, %c0_i32_1, %c0_i32_2 : i32, i32, i32, i32, i32
  }
  func.func @transform_7(%arg0: i32) -> (i32, i32, i32, i32) {
    %c0_i32 = arith.constant 0 : i32
    %c0_i32_0 = arith.constant 0 : i32
    %c0_i32_1 = arith.constant 0 : i32
    %c0_i32_2 = arith.constant 0 : i32
    return %arg0, %c0_i32, %c0_i32_0, %c0_i32_1 : i32, i32, i32, i32
  }
  func.func @transform_8(%arg0: i32) -> (i32, i32, i32, i32) {
    %c0_i32 = arith.constant 0 : i32
    %c0_i32_0 = arith.constant 0 : i32
    %c0_i32_1 = arith.constant 0 : i32
    %c0_i32_2 = arith.constant 0 : i32
    return %arg0, %c0_i32, %c0_i32_0, %c0_i32_1 : i32, i32, i32, i32
  }
  func.func @transform_9(%arg0: i32) -> (i32, i32, i32, i32) {
    %c0_i32 = arith.constant 0 : i32
    %c0_i32_0 = arith.constant 0 : i32
    %c0_i32_1 = arith.constant 0 : i32
    %c0_i32_2 = arith.constant 0 : i32
    return %arg0, %c0_i32, %c0_i32_0, %c0_i32_1 : i32, i32, i32, i32
  }
  func.func @transform_10(%arg0: i32) -> (i32, i32, i32, i32) {
    %c0_i32 = arith.constant 0 : i32
    %c0_i32_0 = arith.constant 0 : i32
    %c0_i32_1 = arith.constant 0 : i32
    %c0_i32_2 = arith.constant 0 : i32
    return %arg0, %c0_i32, %c0_i32_0, %c0_i32_1 : i32, i32, i32, i32
  }
  func.func @transform_11(%arg0: i32) -> (i32, i32, i32, i32) {
    %c0_i32 = arith.constant 0 : i32
    %c0_i32_0 = arith.constant 0 : i32
    %c0_i32_1 = arith.constant 0 : i32
    %c0_i32_2 = arith.constant 0 : i32
    return %arg0, %c0_i32, %c0_i32_0, %c0_i32_1 : i32, i32, i32, i32
  }
  func.func @transform_12(%arg0: i32) -> (i32, i32, i32, i32) {
    %c0_i32 = arith.constant 0 : i32
    %c0_i32_0 = arith.constant 0 : i32
    %c0_i32_1 = arith.constant 0 : i32
    %c0_i32_2 = arith.constant 0 : i32
    return %arg0, %c0_i32, %c0_i32_0, %c0_i32_1 : i32, i32, i32, i32
  }
  func.func @transform_13(%arg0: i32) -> (i32, i32, i32, i32) {
    %c0_i32 = arith.constant 0 : i32
    %c0_i32_0 = arith.constant 0 : i32
    %c0_i32_1 = arith.constant 0 : i32
    %c0_i32_2 = arith.constant 0 : i32
    return %arg0, %c0_i32, %c0_i32_0, %c0_i32_1 : i32, i32, i32, i32
  }
  func.func @transform_14(%arg0: i32) -> (i32, i32, i32, i32) {
    %c0_i32 = arith.constant 0 : i32
    %c0_i32_0 = arith.constant 0 : i32
    %c0_i32_1 = arith.constant 0 : i32
    %c0_i32_2 = arith.constant 0 : i32
    return %arg0, %c0_i32, %c0_i32_0, %c0_i32_1 : i32, i32, i32, i32
  }
  func.func @transform_15(%arg0: i32) -> (i32, i32, i32, i32) {
    %c0_i32 = arith.constant 0 : i32
    %c0_i32_0 = arith.constant 0 : i32
    %c0_i32_1 = arith.constant 0 : i32
    %c0_i32_2 = arith.constant 0 : i32
    return %arg0, %c0_i32, %c0_i32_0, %c0_i32_1 : i32, i32, i32, i32
  }
  func.func @transform_16(%arg0: i32) -> (i32, i32, i32) {
    %c0_i32 = arith.constant 0 : i32
    %c0_i32_0 = arith.constant 0 : i32
    %c0_i32_1 = arith.constant 0 : i32
    return %arg0, %c0_i32, %c0_i32_0 : i32, i32, i32
  }
  func.func @transform_17(%arg0: i32) -> (i32, i32, i32) {
    %c0_i32 = arith.constant 0 : i32
    %c0_i32_0 = arith.constant 0 : i32
    %c0_i32_1 = arith.constant 0 : i32
    return %arg0, %c0_i32, %c0_i32_0 : i32, i32, i32
  }
  func.func @transform_18(%arg0: i32) -> (i32, i32, i32) {
    %c0_i32 = arith.constant 0 : i32
    %c0_i32_0 = arith.constant 0 : i32
    %c0_i32_1 = arith.constant 0 : i32
    return %arg0, %c0_i32, %c0_i32_0 : i32, i32, i32
  }
}

</mosaic_0001>

<llo_original>
// kernel: bi_encoder_forward.1
$region0: #{bi_encoder_forward.1}
  #allocation0 [shape = 'u32[]', space=smem, size = 0x4, offset = 0x4, fixed_abs, tag = 'smem constant byte address 0x4 - core index']
  #allocation1 [shape = 'u32[144,128]{1,0:T(1,128)}', space=vmem, size = 0x12000, scoped, tag = 'internal scratch']
  %s0 = inlined_call_operand.vmem [shape: f32[2,2,8,32], index: 0, kind: input, shape index: {}]
  %s1 = inlined_call_operand.vmem [shape: f32[2,2,8], index: 1, kind: input, shape index: {}]
  %s2 = inlined_call_operand.vmem [shape: f32[2,1,32], index: 2, kind: input, shape index: {}]
  %s3 = inlined_call_operand.vmem [shape: f32[2,1,32], index: 3, kind: input, shape index: {}]
  %s4 = inlined_call_operand.vmem [shape: bf16[2,2,32,96], index: 4, kind: input, shape index: {}]
  %s5 = inlined_call_operand.vmem [shape: f32[2,2,1,96], index: 5, kind: input, shape index: {}]
  %s6 = inlined_call_operand.vmem [shape: bf16[2,2,4,8,32], index: 6, kind: input, shape index: {}]
  %s7 = inlined_call_operand.vmem [shape: f32[2,2,1,32], index: 7, kind: input, shape index: {}]
  %s8 = inlined_call_operand.vmem [shape: f32[2,2,1,32], index: 8, kind: input, shape index: {}]
  %s9 = inlined_call_operand.vmem [shape: f32[2,2,1,32], index: 9, kind: input, shape index: {}]
  %s10 = inlined_call_operand.vmem [shape: bf16[2,2,32,64], index: 10, kind: input, shape index: {}]
  %s11 = inlined_call_operand.vmem [shape: f32[2,2,1,64], index: 11, kind: input, shape index: {}]
  %s12 = inlined_call_operand.vmem [shape: bf16[2,2,64,32], index: 12, kind: input, shape index: {}]
  %s13 = inlined_call_operand.vmem [shape: f32[2,2,1,32], index: 13, kind: input, shape index: {}]
  %s14 = inlined_call_operand.vmem [shape: f32[2,2,1,32], index: 14, kind: input, shape index: {}]
  %s15 = inlined_call_operand.vmem [shape: f32[2,2,1,32], index: 15, kind: input, shape index: {}]
  %s16 = inlined_call_operand.vmem [shape: bf16[2,32,32], index: 16, kind: input, shape index: {}]
  %s17 = inlined_call_operand.vmem [shape: f32[2,1,32], index: 17, kind: input, shape index: {}]
  %s18 = inlined_call_operand.vmem [shape: f32[2,2,32], index: 18, kind: output, shape index: {}]
  %s19 = sld [smem:[#allocation0]]
  $region105: #{bi_encoder_forward.1} parent=0
    _
  %s21 = ssub.s32 1, %s19
  %s22 = scalar_select 0, %s21, %s19
  loop: start=0, step=1, limit=4
  $region2: #{bi_encoder_forward.1} parent=0 // loop_pre_header
    _
  $region3: #{bi_encoder_forward.1} parent=0 // loop_header
    %s24 = sphi 0, %s28
    %p25 = scmp.ge.s32.totalorder %s24, 4
    %s34 = sphi 0, %s36
    %s37 = sphi 0, %s34
    %s38 = sphi 0, %s37
    %s54 = sphi 0, %s38
    %s60 = sphi 0, %s62
    %s63 = sphi 0, %s60
    %s64 = sphi 0, %s63
    %s80 = sphi 0, %s64
    %s86 = sphi 0, %s88
    %s89 = sphi 0, %s86
    %s90 = sphi 0, %s89
    %s106 = sphi 0, %s90
    %s112 = sphi 0, %s114
    %s115 = sphi 0, %s112
    %s116 = sphi 0, %s115
    %s132 = sphi 0, %s116
    %s138 = sphi 0, %s140
    %s141 = sphi 0, %s138
    %s142 = sphi 0, %s141
    %s158 = sphi 0, %s142
    %s164 = sphi 0, %s166
    %s167 = sphi 0, %s164
    %s168 = sphi 0, %s167
    %s184 = sphi 0, %s168
    %s190 = sphi 0, %s192
    %s193 = sphi 0, %s190
    %s194 = sphi 0, %s193
    %s210 = sphi 0, %s194
    %s216 = sphi 0, %s218
    %s219 = sphi 0, %s216
    %s220 = sphi 0, %s219
    %s236 = sphi 0, %s220
    %s242 = sphi 0, %s244
    %s245 = sphi 0, %s242
    %s246 = sphi 0, %s245
    %s262 = sphi 0, %s246
    %s268 = sphi 0, %s270
    %s271 = sphi 0, %s268
    %s272 = sphi 0, %s271
    %s288 = sphi 0, %s272
    %s294 = sphi 0, %s296
    %s297 = sphi 0, %s294
    %s298 = sphi 0, %s297
    %s314 = sphi 0, %s298
    %s320 = sphi 0, %s322
    %s323 = sphi 0, %s320
    %s324 = sphi 0, %s323
    %s340 = sphi 0, %s324
    %s346 = sphi 0, %s348
    %s349 = sphi 0, %s346
    %s350 = sphi 0, %s349
    %s366 = sphi 0, %s350
    %s372 = sphi 0, %s374
    %s375 = sphi 0, %s372
    %s376 = sphi 0, %s375
    %s392 = sphi 0, %s376
    %s398 = sphi 0, %s400
    %s401 = sphi 0, %s398
    %s402 = sphi 0, %s401
    %s418 = sphi 0, %s402
    %s424 = sphi 0, %s426
    %s427 = sphi 0, %s424
    %s428 = sphi 0, %s427
    %s444 = sphi 0, %s428
    %s450 = sphi 0, %s452
    %s453 = sphi 0, %s450
    %s454 = sphi 0, %s453
    %s470 = sphi 0, %s454
    %s476 = sphi 0, %s478
    %s479 = sphi 0, %s476
    %s480 = sphi 0, %s479
    %s496 = sphi 0, %s480
    %s502 = sphi 0, %s504
    %s505 = sphi 0, %s502
    %s506 = sphi 0, %s505
    %s522 = sphi 0, %s506
  $region4: #{bi_encoder_forward.1} parent=0 // loop_header_branch
    %27 = sbr.rel (%p25) target = $region8
  $region5: #{bi_encoder_forward.1} parent=0 // loop_body
    %s29 = ssub.s32 %s24, 1
    %s30 = ssub.s32 %s24, 2
    %s31 = sadd.s32 %s24, 1
    %s32 = ssub.s32 %s24, %s31
    %p33 = scmp.eq.s32.totalorder %s32, 0
    %s35 = sadd.s32 %s34, 1
    %s36 = scalar_select %p33, %s34, %s35
    %p39 = pneg %p33
    %p40 = scmp.eq.s32.totalorder %s24, 1
    %p41 = por %p39, %p40
    %p42 = scmp.ne.s32.totalorder %s34, %s37
    %p43 = scmp.eq.s32.totalorder %s24, 0
    %p44 = por %p42, %p43
    %p45 = scmp.ne.s32.totalorder %s34, %s37
    %p46 = scmp.eq.s32.totalorder %s29, 1
    %p47 = por %p45, %p46
    %p48 = scmp.ne.s32.totalorder %s37, %s38
    %p49 = scmp.eq.s32.totalorder %s29, 0
    %p50 = por %p48, %p49
    %p51 = scmp.ne.s32.totalorder %s37, %s38
    %p52 = scmp.eq.s32.totalorder %s30, 1
    %p53 = por %p51, %p52
    %p55 = scmp.ne.s32.totalorder %s38, %s54
    %p56 = scmp.eq.s32.totalorder %s30, 0
    %p57 = por %p55, %p56
    %s58 = ssub.s32 %s24, %s31
    %p59 = scmp.eq.s32.totalorder %s58, 0
    %s61 = sadd.s32 %s60, 1
    %s62 = scalar_select %p59, %s60, %s61
    %p65 = pneg %p59
    %p66 = scmp.eq.s32.totalorder %s24, 1
    %p67 = por %p65, %p66
    %p68 = scmp.ne.s32.totalorder %s60, %s63
    %p69 = scmp.eq.s32.totalorder %s24, 0
    %p70 = por %p68, %p69
    %p71 = scmp.ne.s32.totalorder %s60, %s63
    %p72 = scmp.eq.s32.totalorder %s29, 1
    %p73 = por %p71, %p72
    %p74 = scmp.ne.s32.totalorder %s63, %s64
    %p75 = scmp.eq.s32.totalorder %s29, 0
    %p76 = por %p74, %p75
    %p77 = scmp.ne.s32.totalorder %s63, %s64
    %p78 = scmp.eq.s32.totalorder %s30, 1
    %p79 = por %p77, %p78
    %p81 = scmp.ne.s32.totalorder %s64, %s80
    %p82 = scmp.eq.s32.totalorder %s30, 0
    %p83 = por %p81, %p82
    %s84 = ssub.s32 %s24, %s31
    %p85 = scmp.eq.s32.totalorder %s84, 0
    %s87 = sadd.s32 %s86, 1
    %s88 = scalar_select %p85, %s86, %s87
    %p91 = pneg %p85
    %p92 = scmp.eq.s32.totalorder %s24, 1
    %p93 = por %p91, %p92
    %p94 = scmp.ne.s32.totalorder %s86, %s89
    %p95 = scmp.eq.s32.totalorder %s24, 0
    %p96 = por %p94, %p95
    %p97 = scmp.ne.s32.totalorder %s86, %s89
    %p98 = scmp.eq.s32.totalorder %s29, 1
    %p99 = por %p97, %p98
    %p100 = scmp.ne.s32.totalorder %s89, %s90
    %p101 = scmp.eq.s32.totalorder %s29, 0
    %p102 = por %p100, %p101
    %p103 = scmp.ne.s32.totalorder %s89, %s90
    %p104 = scmp.eq.s32.totalorder %s30, 1
    %p105 = por %p103, %p104
    %p107 = scmp.ne.s32.totalorder %s90, %s106
    %p108 = scmp.eq.s32.totalorder %s30, 0
    %p109 = por %p107, %p108
    %s110 = ssub.s32 %s24, %s31
    %p111 = scmp.eq.s32.totalorder %s110, 0
    %s113 = sadd.s32 %s112, 1
    %s114 = scalar_select %p111, %s112, %s113
    %p117 = pneg %p111
    %p118 = scmp.eq.s32.totalorder %s24, 1
    %p119 = por %p117, %p118
    %p120 = scmp.ne.s32.totalorder %s112, %s115
    %p121 = scmp.eq.s32.totalorder %s24, 0
    %p122 = por %p120, %p121
    %p123 = scmp.ne.s32.totalorder %s112, %s115
    %p124 = scmp.eq.s32.totalorder %s29, 1
    %p125 = por %p123, %p124
    %p126 = scmp.ne.s32.totalorder %s115, %s116
    %p127 = scmp.eq.s32.totalorder %s29, 0
    %p128 = por %p126, %p127
    %p129 = scmp.ne.s32.totalorder %s115, %s116
    %p130 = scmp.eq.s32.totalorder %s30, 1
    %p131 = por %p129, %p130
    %p133 = scmp.ne.s32.totalorder %s116, %s132
    %p134 = scmp.eq.s32.totalorder %s30, 0
    %p135 = por %p133, %p134
    %s136 = ssub.s32 %s24, %s31
    %p137 = scmp.eq.s32.totalorder %s136, 0
    %s139 = sadd.s32 %s138, 1
    %s140 = scalar_select %p137, %s138, %s139
    %p143 = pneg %p137
    %p144 = scmp.eq.s32.totalorder %s24, 1
    %p145 = por %p143, %p144
    %p146 = scmp.ne.s32.totalorder %s138, %s141
    %p147 = scmp.eq.s32.totalorder %s24, 0
    %p148 = por %p146, %p147
    %p149 = scmp.ne.s32.totalorder %s138, %s141
    %p150 = scmp.eq.s32.totalorder %s29, 1
    %p151 = por %p149, %p150
    %p152 = scmp.ne.s32.totalorder %s141, %s142
    %p153 = scmp.eq.s32.totalorder %s29, 0
    %p154 = por %p152, %p153
    %p155 = scmp.ne.s32.totalorder %s141, %s142
    %p156 = scmp.eq.s32.totalorder %s30, 1
    %p157 = por %p155, %p156
    %p159 = scmp.ne.s32.totalorder %s142, %s158
    %p160 = scmp.eq.s32.totalorder %s30, 0
    %p161 = por %p159, %p160
    %s162 = ssub.s32 %s24, %s31
    %p163 = scmp.eq.s32.totalorder %s162, 0
    %s165 = sadd.s32 %s164, 1
    %s166 = scalar_select %p163, %s164, %s165
    %p169 = pneg %p163
    %p170 = scmp.eq.s32.totalorder %s24, 1
    %p171 = por %p169, %p170
    %p172 = scmp.ne.s32.totalorder %s164, %s167
    %p173 = scmp.eq.s32.totalorder %s24, 0
    %p174 = por %p172, %p173
    %p175 = scmp.ne.s32.totalorder %s164, %s167
    %p176 = scmp.eq.s32.totalorder %s29, 1
    %p177 = por %p175, %p176
    %p178 = scmp.ne.s32.totalorder %s167, %s168
    %p179 = scmp.eq.s32.totalorder %s29, 0
    %p180 = por %p178, %p179
    %p181 = scmp.ne.s32.totalorder %s167, %s168
    %p182 = scmp.eq.s32.totalorder %s30, 1
    %p183 = por %p181, %p182
    %p185 = scmp.ne.s32.totalorder %s168, %s184
    %p186 = scmp.eq.s32.totalorder %s30, 0
    %p187 = por %p185, %p186
    %s188 = ssub.s32 %s24, %s31
    %p189 = scmp.eq.s32.totalorder %s188, 0
    %s191 = sadd.s32 %s190, 1
    %s192 = scalar_select %p189, %s190, %s191
    %p195 = pneg %p189
    %p196 = scmp.eq.s32.totalorder %s24, 1
    %p197 = por %p195, %p196
    %p198 = scmp.ne.s32.totalorder %s190, %s193
    %p199 = scmp.eq.s32.totalorder %s24, 0
    %p200 = por %p198, %p199
    %p201 = scmp.ne.s32.totalorder %s190, %s193
    %p202 = scmp.eq.s32.totalorder %s29, 1
    %p203 = por %p201, %p202
    %p204 = scmp.ne.s32.totalorder %s193, %s194
    %p205 = scmp.eq.s32.totalorder %s29, 0
    %p206 = por %p204, %p205
    %p207 = scmp.ne.s32.totalorder %s193, %s194
    %p208 = scmp.eq.s32.totalorder %s30, 1
    %p209 = por %p207, %p208
    %p211 = scmp.ne.s32.totalorder %s194, %s210
    %p212 = scmp.eq.s32.totalorder %s30, 0
    %p213 = por %p211, %p212
    %s214 = ssub.s32 %s24, %s31
    %p215 = scmp.eq.s32.totalorder %s214, 0
    %s217 = sadd.s32 %s216, 1
    %s218 = scalar_select %p215, %s216, %s217
    %p221 = pneg %p215
    %p222 = scmp.eq.s32.totalorder %s24, 1
    %p223 = por %p221, %p222
    %p224 = scmp.ne.s32.totalorder %s216, %s219
    %p225 = scmp.eq.s32.totalorder %s24, 0
    %p226 = por %p224, %p225
    %p227 = scmp.ne.s32.totalorder %s216, %s219
    %p228 = scmp.eq.s32.totalorder %s29, 1
    %p229 = por %p227, %p228
    %p230 = scmp.ne.s32.totalorder %s219, %s220
    %p231 = scmp.eq.s32.totalorder %s29, 0
    %p232 = por %p230, %p231
    %p233 = scmp.ne.s32.totalorder %s219, %s220
    %p234 = scmp.eq.s32.totalorder %s30, 1
    %p235 = por %p233, %p234
    %p237 = scmp.ne.s32.totalorder %s220, %s236
    %p238 = scmp.eq.s32.totalorder %s30, 0
    %p239 = por %p237, %p238
    %s240 = ssub.s32 %s24, %s31
    %p241 = scmp.eq.s32.totalorder %s240, 0
    %s243 = sadd.s32 %s242, 1
    %s244 = scalar_select %p241, %s242, %s243
    %p247 = pneg %p241
    %p248 = scmp.eq.s32.totalorder %s24, 1
    %p249 = por %p247, %p248
    %p250 = scmp.ne.s32.totalorder %s242, %s245
    %p251 = scmp.eq.s32.totalorder %s24, 0
    %p252 = por %p250, %p251
    %p253 = scmp.ne.s32.totalorder %s242, %s245
    %p254 = scmp.eq.s32.totalorder %s29, 1
    %p255 = por %p253, %p254
    %p256 = scmp.ne.s32.totalorder %s245, %s246
    %p257 = scmp.eq.s32.totalorder %s29, 0
    %p258 = por %p256, %p257
    %p259 = scmp.ne.s32.totalorder %s245, %s246
    %p260 = scmp.eq.s32.totalorder %s30, 1
    %p261 = por %p259, %p260
    %p263 = scmp.ne.s32.totalorder %s246, %s262
    %p264 = scmp.eq.s32.totalorder %s30, 0
    %p265 = por %p263, %p264
    %s266 = ssub.s32 %s24, %s31
    %p267 = scmp.eq.s32.totalorder %s266, 0
    %s269 = sadd.s32 %s268, 1
    %s270 = scalar_select %p267, %s268, %s269
    %p273 = pneg %p267
    %p274 = scmp.eq.s32.totalorder %s24, 1
    %p275 = por %p273, %p274
    %p276 = scmp.ne.s32.totalorder %s268, %s271
    %p277 = scmp.eq.s32.totalorder %s24, 0
    %p278 = por %p276, %p277
    %p279 = scmp.ne.s32.totalorder %s268, %s271
    %p280 = scmp.eq.s32.totalorder %s29, 1
    %p281 = por %p279, %p280
    %p282 = scmp.ne.s32.totalorder %s271, %s272
    %p283 = scmp.eq.s32.totalorder %s29, 0
    %p284 = por %p282, %p283
    %p285 = scmp.ne.s32.totalorder %s271, %s272
    %p286 = scmp.eq.s32.totalorder %s30, 1
    %p287 = por %p285, %p286
    %p289 = scmp.ne.s32.totalorder %s272, %s288
    %p290 = scmp.eq.s32.totalorder %s30, 0
    %p291 = por %p289, %p290
    %s292 = ssub.s32 %s24, %s31
    %p293 = scmp.eq.s32.totalorder %s292, 0
    %s295 = sadd.s32 %s294, 1
    %s296 = scalar_select %p293, %s294, %s295
    %p299 = pneg %p293
    %p300 = scmp.eq.s32.totalorder %s24, 1
    %p301 = por %p299, %p300
    %p302 = scmp.ne.s32.totalorder %s294, %s297
    %p303 = scmp.eq.s32.totalorder %s24, 0
    %p304 = por %p302, %p303
    %p305 = scmp.ne.s32.totalorder %s294, %s297
    %p306 = scmp.eq.s32.totalorder %s29, 1
    %p307 = por %p305, %p306
    %p308 = scmp.ne.s32.totalorder %s297, %s298
    %p309 = scmp.eq.s32.totalorder %s29, 0
    %p310 = por %p308, %p309
    %p311 = scmp.ne.s32.totalorder %s297, %s298
    %p312 = scmp.eq.s32.totalorder %s30, 1
    %p313 = por %p311, %p312
    %p315 = scmp.ne.s32.totalorder %s298, %s314
    %p316 = scmp.eq.s32.totalorder %s30, 0
    %p317 = por %p315, %p316
    %s318 = ssub.s32 %s24, %s31
    %p319 = scmp.eq.s32.totalorder %s318, 0
    %s321 = sadd.s32 %s320, 1
    %s322 = scalar_select %p319, %s320, %s321
    %p325 = pneg %p319
    %p326 = scmp.eq.s32.totalorder %s24, 1
    %p327 = por %p325, %p326
    %p328 = scmp.ne.s32.totalorder %s320, %s323
    %p329 = scmp.eq.s32.totalorder %s24, 0
    %p330 = por %p328, %p329
    %p331 = scmp.ne.s32.totalorder %s320, %s323
    %p332 = scmp.eq.s32.totalorder %s29, 1
    %p333 = por %p331, %p332
    %p334 = scmp.ne.s32.totalorder %s323, %s324
    %p335 = scmp.eq.s32.totalorder %s29, 0
    %p336 = por %p334, %p335
    %p337 = scmp.ne.s32.totalorder %s323, %s324
    %p338 = scmp.eq.s32.totalorder %s30, 1
    %p339 = por %p337, %p338
    %p341 = scmp.ne.s32.totalorder %s324, %s340
    %p342 = scmp.eq.s32.totalorder %s30, 0
    %p343 = por %p341, %p342
    %s344 = ssub.s32 %s24, %s31
    %p345 = scmp.eq.s32.totalorder %s344, 0
    %s347 = sadd.s32 %s346, 1
    %s348 = scalar_select %p345, %s346, %s347
    %p351 = pneg %p345
    %p352 = scmp.eq.s32.totalorder %s24, 1
    %p353 = por %p351, %p352
    %p354 = scmp.ne.s32.totalorder %s346, %s349
    %p355 = scmp.eq.s32.totalorder %s24, 0
    %p356 = por %p354, %p355
    %p357 = scmp.ne.s32.totalorder %s346, %s349
    %p358 = scmp.eq.s32.totalorder %s29, 1
    %p359 = por %p357, %p358
    %p360 = scmp.ne.s32.totalorder %s349, %s350
    %p361 = scmp.eq.s32.totalorder %s29, 0
    %p362 = por %p360, %p361
    %p363 = scmp.ne.s32.totalorder %s349, %s350
    %p364 = scmp.eq.s32.totalorder %s30, 1
    %p365 = por %p363, %p364
    %p367 = scmp.ne.s32.totalorder %s350, %s366
    %p368 = scmp.eq.s32.totalorder %s30, 0
    %p369 = por %p367, %p368
    %s370 = ssub.s32 %s24, %s31
    %p371 = scmp.eq.s32.totalorder %s370, 0
    %s373 = sadd.s32 %s372, 1
    %s374 = scalar_select %p371, %s372, %s373
    %p377 = pneg %p371
    %p378 = scmp.eq.s32.totalorder %s24, 1
    %p379 = por %p377, %p378
    %p380 = scmp.ne.s32.totalorder %s372, %s375
    %p381 = scmp.eq.s32.totalorder %s24, 0
    %p382 = por %p380, %p381
    %p383 = scmp.ne.s32.totalorder %s372, %s375
    %p384 = scmp.eq.s32.totalorder %s29, 1
    %p385 = por %p383, %p384
    %p386 = scmp.ne.s32.totalorder %s375, %s376
    %p387 = scmp.eq.s32.totalorder %s29, 0
    %p388 = por %p386, %p387
    %p389 = scmp.ne.s32.totalorder %s375, %s376
    %p390 = scmp.eq.s32.totalorder %s30, 1
    %p391 = por %p389, %p390
    %p393 = scmp.ne.s32.totalorder %s376, %s392
    %p394 = scmp.eq.s32.totalorder %s30, 0
    %p395 = por %p393, %p394
    %s396 = ssub.s32 %s24, %s31
    %p397 = scmp.eq.s32.totalorder %s396, 0
    %s399 = sadd.s32 %s398, 1
    %s400 = scalar_select %p397, %s398, %s399
    %p403 = pneg %p397
    %p404 = scmp.eq.s32.totalorder %s24, 1
    %p405 = por %p403, %p404
    %p406 = scmp.ne.s32.totalorder %s398, %s401
    %p407 = scmp.eq.s32.totalorder %s24, 0
    %p408 = por %p406, %p407
    %p409 = scmp.ne.s32.totalorder %s398, %s401
    %p410 = scmp.eq.s32.totalorder %s29, 1
    %p411 = por %p409, %p410
    %p412 = scmp.ne.s32.totalorder %s401, %s402
    %p413 = scmp.eq.s32.totalorder %s29, 0
    %p414 = por %p412, %p413
    %p415 = scmp.ne.s32.totalorder %s401, %s402
    %p416 = scmp.eq.s32.totalorder %s30, 1
    %p417 = por %p415, %p416
    %p419 = scmp.ne.s32.totalorder %s402, %s418
    %p420 = scmp.eq.s32.totalorder %s30, 0
    %p421 = por %p419, %p420
    %s422 = ssub.s32 %s24, %s31
    %p423 = scmp.eq.s32.totalorder %s422, 0
    %s425 = sadd.s32 %s424, 1
    %s426 = scalar_select %p423, %s424, %s425
    %p429 = pneg %p423
    %p430 = scmp.eq.s32.totalorder %s24, 1
    %p431 = por %p429, %p430
    %p432 = scmp.ne.s32.totalorder %s424, %s427
    %p433 = scmp.eq.s32.totalorder %s24, 0
    %p434 = por %p432, %p433
    %p435 = scmp.ne.s32.totalorder %s424, %s427
    %p436 = scmp.eq.s32.totalorder %s29, 1
    %p437 = por %p435, %p436
    %p438 = scmp.ne.s32.totalorder %s427, %s428
    %p439 = scmp.eq.s32.totalorder %s29, 0
    %p440 = por %p438, %p439
    %p441 = scmp.ne.s32.totalorder %s427, %s428
    %p442 = scmp.eq.s32.totalorder %s30, 1
    %p443 = por %p441, %p442
    %p445 = scmp.ne.s32.totalorder %s428, %s444
    %p446 = scmp.eq.s32.totalorder %s30, 0
    %p447 = por %p445, %p446
    %s448 = ssub.s32 %s24, %s31
    %p449 = scmp.eq.s32.totalorder %s448, 0
    %s451 = sadd.s32 %s450, 1
    %s452 = scalar_select %p449, %s450, %s451
    %p455 = pneg %p449
    %p456 = scmp.eq.s32.totalorder %s24, 1
    %p457 = por %p455, %p456
    %p458 = scmp.ne.s32.totalorder %s450, %s453
    %p459 = scmp.eq.s32.totalorder %s24, 0
    %p460 = por %p458, %p459
    %p461 = scmp.ne.s32.totalorder %s450, %s453
    %p462 = scmp.eq.s32.totalorder %s29, 1
    %p463 = por %p461, %p462
    %p464 = scmp.ne.s32.totalorder %s453, %s454
    %p465 = scmp.eq.s32.totalorder %s29, 0
    %p466 = por %p464, %p465
    %p467 = scmp.ne.s32.totalorder %s453, %s454
    %p468 = scmp.eq.s32.totalorder %s30, 1
    %p469 = por %p467, %p468
    %p471 = scmp.ne.s32.totalorder %s454, %s470
    %p472 = scmp.eq.s32.totalorder %s30, 0
    %p473 = por %p471, %p472
    %s474 = ssub.s32 %s24, %s31
    %p475 = scmp.eq.s32.totalorder %s474, 0
    %s477 = sadd.s32 %s476, 1
    %s478 = scalar_select %p475, %s476, %s477
    %p481 = pneg %p475
    %p482 = scmp.eq.s32.totalorder %s24, 1
    %p483 = por %p481, %p482
    %p484 = scmp.ne.s32.totalorder %s476, %s479
    %p485 = scmp.eq.s32.totalorder %s24, 0
    %p486 = por %p484, %p485
    %p487 = scmp.ne.s32.totalorder %s476, %s479
    %p488 = scmp.eq.s32.totalorder %s29, 1
    %p489 = por %p487, %p488
    %p490 = scmp.ne.s32.totalorder %s479, %s480
    %p491 = scmp.eq.s32.totalorder %s29, 0
    %p492 = por %p490, %p491
    %p493 = scmp.ne.s32.totalorder %s479, %s480
    %p494 = scmp.eq.s32.totalorder %s30, 1
    %p495 = por %p493, %p494
    %p497 = scmp.ne.s32.totalorder %s480, %s496
    %p498 = scmp.eq.s32.totalorder %s30, 0
    %p499 = por %p497, %p498
    %s500 = ssub.s32 %s24, %s31
    %p501 = scmp.eq.s32.totalorder %s500, 0
    %s503 = sadd.s32 %s502, 1
    %s504 = scalar_select %p501, %s502, %s503
    %p507 = pneg %p501
    %p508 = scmp.eq.s32.totalorder %s24, 1
    %p509 = por %p507, %p508
    %p510 = scmp.ne.s32.totalorder %s502, %s505
    %p511 = scmp.eq.s32.totalorder %s24, 0
    %p512 = por %p510, %p511
    %p513 = scmp.ne.s32.totalorder %s502, %s505
    %p514 = scmp.eq.s32.totalorder %s29, 1
    %p515 = por %p513, %p514
    %p516 = scmp.ne.s32.totalorder %s505, %s506
    %p517 = scmp.eq.s32.totalorder %s29, 0
    %p518 = por %p516, %p517
    %p519 = scmp.ne.s32.totalorder %s505, %s506
    %p520 = scmp.eq.s32.totalorder %s30, 1
    %p521 = por %p519, %p520
    %p523 = scmp.ne.s32.totalorder %s506, %s522
    %p524 = scmp.eq.s32.totalorder %s30, 0
    %p525 = por %p523, %p524
    %p526 = scmp.le.s32.totalorder 1, %s24
    %p527 = scmp.lt.s32.totalorder %s24, 3
    %p528 = pnand %p526, %p527
    %p529 = pneg %p528
    // Predicated region
    $region9: #{bi_encoder_forward.1} parent=5 // pred_check
      _
    $region10: #{bi_encoder_forward.1} parent=5 // pred_check_branch
      %531 = sbr.rel (%p528) target = $region12
    $region11: #{bi_encoder_forward.1} parent=5 // pred_region
      %s532 = ssub.s32 %s24, 1
    $region12: #{bi_encoder_forward.1} parent=5 // pred_fallthru
      _
    %p533 = scmp.lt.s32.totalorder %s24, 2
    // Predicated region
    $region13: #{bi_encoder_forward.1} parent=5 // pred_check
      %p534 = pneg %p533
    $region14: #{bi_encoder_forward.1} parent=5 // pred_check_branch
      %536 = sbr.rel (%p534) target = $region16
    $region15: #{bi_encoder_forward.1} parent=5 // pred_region
      // Predicated region
      $region17: #{bi_encoder_forward.1} parent=15 // pred_check
        %p537 = pneg %p44
      $region18: #{bi_encoder_forward.1} parent=15 // pred_check_branch
        %539 = sbr.rel (%p537) target = $region20
      $region19: #{bi_encoder_forward.1} parent=15 // pred_region
        %p540 = scmp.lt.s32.totalorder %s24, 1
        %s541 = scalar_select %p540, %s24, 1
        %s542 = smul.addr %s541, 2
        %s543 = smul.addr %s542, 8
        %s544 = scalar_lea.vmem %s0, %s543
      $region20: #{bi_encoder_forward.1} parent=15 // pred_fallthru
        _
      // Predicated region
      $region21: #{bi_encoder_forward.1} parent=15 // pred_check
        %p545 = pneg %p70
      $region22: #{bi_encoder_forward.1} parent=15 // pred_check_branch
        %547 = sbr.rel (%p545) target = $region24
      $region23: #{bi_encoder_forward.1} parent=15 // pred_region
        %p548 = scmp.lt.s32.totalorder %s24, 1
        %s549 = scalar_select %p548, %s24, 1
        %s550 = smul.addr %s549, 2
        %s551 = scalar_lea.vmem %s1, %s550
      $region24: #{bi_encoder_forward.1} parent=15 // pred_fallthru
        _
      // Predicated region
      $region25: #{bi_encoder_forward.1} parent=15 // pred_check
        %p552 = pneg %p96
      $region26: #{bi_encoder_forward.1} parent=15 // pred_check_branch
        %554 = sbr.rel (%p552) target = $region28
      $region27: #{bi_encoder_forward.1} parent=15 // pred_region
        %p555 = scmp.lt.s32.totalorder %s24, 1
        %s556 = scalar_select %p555, %s24, 1
        %s557 = scalar_lea.vmem %s2, %s556
      $region28: #{bi_encoder_forward.1} parent=15 // pred_fallthru
        _
      // Predicated region
      $region29: #{bi_encoder_forward.1} parent=15 // pred_check
        %p558 = pneg %p122
      $region30: #{bi_encoder_forward.1} parent=15 // pred_check_branch
        %560 = sbr.rel (%p558) target = $region32
      $region31: #{bi_encoder_forward.1} parent=15 // pred_region
        %p561 = scmp.lt.s32.totalorder %s24, 1
        %s562 = scalar_select %p561, %s24, 1
        %s563 = scalar_lea.vmem %s3, %s562
      $region32: #{bi_encoder_forward.1} parent=15 // pred_fallthru
        _
      // Predicated region
      $region33: #{bi_encoder_forward.1} parent=15 // pred_check
        %p564 = pneg %p148
      $region34: #{bi_encoder_forward.1} parent=15 // pred_check_branch
        %566 = sbr.rel (%p564) target = $region36
      $region35: #{bi_encoder_forward.1} parent=15 // pred_region
        %p567 = scmp.lt.s32.totalorder %s24, 1
        %s568 = scalar_select %p567, %s24, 1
        %s569 = smul.addr %s568, 8
        %s570 = smul.addr %s569, 4
        %s571 = scalar_lea.vmem %s4, %s570
      $region36: #{bi_encoder_forward.1} parent=15 // pred_fallthru
        _
      // Predicated region
      $region37: #{bi_encoder_forward.1} parent=15 // pred_check
        %p572 = pneg %p174
      $region38: #{bi_encoder_forward.1} parent=15 // pred_check_branch
        %574 = sbr.rel (%p572) target = $region40
      $region39: #{bi_encoder_forward.1} parent=15 // pred_region
        %p575 = scmp.lt.s32.totalorder %s24, 1
        %s576 = scalar_select %p575, %s24, 1
        %s577 = smul.addr %s576, 2
        %s578 = scalar_lea.vmem %s5, %s577
      $region40: #{bi_encoder_forward.1} parent=15 // pred_fallthru
        _
      // Predicated region
      $region41: #{bi_encoder_forward.1} parent=15 // pred_check
        %p579 = pneg %p200
      $region42: #{bi_encoder_forward.1} parent=15 // pred_check_branch
        %581 = sbr.rel (%p579) target = $region44
      $region43: #{bi_encoder_forward.1} parent=15 // pred_region
        %p582 = scmp.lt.s32.totalorder %s24, 1
        %s583 = scalar_select %p582, %s24, 1
        %s584 = smul.addr %s583, 8
        %s585 = smul.addr %s584, 4
        %s586 = scalar_lea.vmem %s6, %s585
      $region44: #{bi_encoder_forward.1} parent=15 // pred_fallthru
        _
      // Predicated region
      $region45: #{bi_encoder_forward.1} parent=15 // pred_check
        %p587 = pneg %p226
      $region46: #{bi_encoder_forward.1} parent=15 // pred_check_branch
        %589 = sbr.rel (%p587) target = $region48
      $region47: #{bi_encoder_forward.1} parent=15 // pred_region
        %p590 = scmp.lt.s32.totalorder %s24, 1
        %s591 = scalar_select %p590, %s24, 1
        %s592 = smul.addr %s591, 2
        %s593 = scalar_lea.vmem %s7, %s592
      $region48: #{bi_encoder_forward.1} parent=15 // pred_fallthru
        _
      // Predicated region
      $region49: #{bi_encoder_forward.1} parent=15 // pred_check
        %p594 = pneg %p252
      $region50: #{bi_encoder_forward.1} parent=15 // pred_check_branch
        %596 = sbr.rel (%p594) target = $region52
      $region51: #{bi_encoder_forward.1} parent=15 // pred_region
        %p597 = scmp.lt.s32.totalorder %s24, 1
        %s598 = scalar_select %p597, %s24, 1
        %s599 = smul.addr %s598, 2
        %s600 = scalar_lea.vmem %s8, %s599
      $region52: #{bi_encoder_forward.1} parent=15 // pred_fallthru
        _
      // Predicated region
      $region53: #{bi_encoder_forward.1} parent=15 // pred_check
        %p601 = pneg %p278
      $region54: #{bi_encoder_forward.1} parent=15 // pred_check_branch
        %603 = sbr.rel (%p601) target = $region56
      $region55: #{bi_encoder_forward.1} parent=15 // pred_region
        %p604 = scmp.lt.s32.totalorder %s24, 1
        %s605 = scalar_select %p604, %s24, 1
        %s606 = smul.addr %s605, 2
        %s607 = scalar_lea.vmem %s9, %s606
      $region56: #{bi_encoder_forward.1} parent=15 // pred_fallthru
        _
      // Predicated region
      $region57: #{bi_encoder_forward.1} parent=15 // pred_check
        %p608 = pneg %p304
      $region58: #{bi_encoder_forward.1} parent=15 // pred_check_branch
        %610 = sbr.rel (%p608) target = $region60
      $region59: #{bi_encoder_forward.1} parent=15 // pred_region
        %p611 = scmp.lt.s32.totalorder %s24, 1
        %s612 = scalar_select %p611, %s24, 1
        %s613 = smul.addr %s612, 8
        %s614 = smul.addr %s613, 4
        %s615 = scalar_lea.vmem %s10, %s614
      $region60: #{bi_encoder_forward.1} parent=15 // pred_fallthru
        _
      // Predicated region
      $region61: #{bi_encoder_forward.1} parent=15 // pred_check
        %p616 = pneg %p330
      $region62: #{bi_encoder_forward.1} parent=15 // pred_check_branch
        %618 = sbr.rel (%p616) target = $region64
      $region63: #{bi_encoder_forward.1} parent=15 // pred_region
        %p619 = scmp.lt.s32.totalorder %s24, 1
        %s620 = scalar_select %p619, %s24, 1
        %s621 = smul.addr %s620, 2
        %s622 = scalar_lea.vmem %s11, %s621
      $region64: #{bi_encoder_forward.1} parent=15 // pred_fallthru
        _
      // Predicated region
      $region65: #{bi_encoder_forward.1} parent=15 // pred_check
        %p623 = pneg %p356
      $region66: #{bi_encoder_forward.1} parent=15 // pred_check_branch
        %625 = sbr.rel (%p623) target = $region68
      $region67: #{bi_encoder_forward.1} parent=15 // pred_region
        %p626 = scmp.lt.s32.totalorder %s24, 1
        %s627 = scalar_select %p626, %s24, 1
        %s628 = smul.addr %s627, 16
        %s629 = smul.addr %s628, 4
        %s630 = scalar_lea.vmem %s12, %s629
      $region68: #{bi_encoder_forward.1} parent=15 // pred_fallthru
        _
      // Predicated region
      $region69: #{bi_encoder_forward.1} parent=15 // pred_check
        %p631 = pneg %p382
      $region70: #{bi_encoder_forward.1} parent=15 // pred_check_branch
        %633 = sbr.rel (%p631) target = $region72
      $region71: #{bi_encoder_forward.1} parent=15 // pred_region
        %p634 = scmp.lt.s32.totalorder %s24, 1
        %s635 = scalar_select %p634, %s24, 1
        %s636 = smul.addr %s635, 2
        %s637 = scalar_lea.vmem %s13, %s636
      $region72: #{bi_encoder_forward.1} parent=15 // pred_fallthru
        _
      // Predicated region
      $region73: #{bi_encoder_forward.1} parent=15 // pred_check
        %p638 = pneg %p408
      $region74: #{bi_encoder_forward.1} parent=15 // pred_check_branch
        %640 = sbr.rel (%p638) target = $region76
      $region75: #{bi_encoder_forward.1} parent=15 // pred_region
        %p641 = scmp.lt.s32.totalorder %s24, 1
        %s642 = scalar_select %p641, %s24, 1
        %s643 = smul.addr %s642, 2
        %s644 = scalar_lea.vmem %s14, %s643
      $region76: #{bi_encoder_forward.1} parent=15 // pred_fallthru
        _
      // Predicated region
      $region77: #{bi_encoder_forward.1} parent=15 // pred_check
        %p645 = pneg %p434
      $region78: #{bi_encoder_forward.1} parent=15 // pred_check_branch
        %647 = sbr.rel (%p645) target = $region80
      $region79: #{bi_encoder_forward.1} parent=15 // pred_region
        %p648 = scmp.lt.s32.totalorder %s24, 1
        %s649 = scalar_select %p648, %s24, 1
        %s650 = smul.addr %s649, 2
        %s651 = scalar_lea.vmem %s15, %s650
      $region80: #{bi_encoder_forward.1} parent=15 // pred_fallthru
        _
      // Predicated region
      $region81: #{bi_encoder_forward.1} parent=15 // pred_check
        %p652 = pneg %p460
      $region82: #{bi_encoder_forward.1} parent=15 // pred_check_branch
        %654 = sbr.rel (%p652) target = $region84
      $region83: #{bi_encoder_forward.1} parent=15 // pred_region
        %p655 = scmp.lt.s32.totalorder %s24, 1
        %s656 = scalar_select %p655, %s24, 1
        %s657 = smul.addr %s656, 4
        %s658 = smul.addr %s657, 4
        %s659 = scalar_lea.vmem %s16, %s658
      $region84: #{bi_encoder_forward.1} parent=15 // pred_fallthru
        _
      // Predicated region
      $region85: #{bi_encoder_forward.1} parent=15 // pred_check
        %p660 = pneg %p486
      $region86: #{bi_encoder_forward.1} parent=15 // pred_check_branch
        %662 = sbr.rel (%p660) target = $region88
      $region87: #{bi_encoder_forward.1} parent=15 // pred_region
        %p663 = scmp.lt.s32.totalorder %s24, 1
        %s664 = scalar_select %p663, %s24, 1
        %s665 = scalar_lea.vmem %s17, %s664
      $region88: #{bi_encoder_forward.1} parent=15 // pred_fallthru
        _
    $region16: #{bi_encoder_forward.1} parent=5 // pred_fallthru
      _
    %p666 = scmp.le.s32.totalorder 1, %s24
    %p667 = scmp.lt.s32.totalorder %s24, 3
    %p668 = pnand %p666, %p667
    %p669 = pneg %p668
    // Predicated region
    $region89: #{bi_encoder_forward.1} parent=5 // pred_check
      _
    $region90: #{bi_encoder_forward.1} parent=5 // pred_check_branch
      %671 = sbr.rel (%p668) target = $region92
    $region91: #{bi_encoder_forward.1} parent=5 // pred_region
      %s672 = ssub.s32 %s24, 1
      %p673 = scmp.lt.s32.totalorder %s29, 1
      %s674 = scalar_select %p673, %s29, 1
      %s675 = smul.addr %s674, 2
      %s676 = smul.addr %s675, 8
      %s677 = scalar_lea.vmem %s0, %s676
      %p678 = pneg %p50
      %p679 = pneg %p47
      %p680 = scmp.lt.s32.totalorder %s29, 1
      %s681 = scalar_select %p680, %s29, 1
      %s682 = smul.addr %s681, 2
      %s683 = scalar_lea.vmem %s1, %s682
      %p684 = pneg %p76
      %p685 = pneg %p73
      %p686 = scmp.lt.s32.totalorder %s29, 1
      %s687 = scalar_select %p686, %s29, 1
      %s688 = scalar_lea.vmem %s2, %s687
      %p689 = pneg %p102
      %p690 = pneg %p99
      %p691 = scmp.lt.s32.totalorder %s29, 1
      %s692 = scalar_select %p691, %s29, 1
      %s693 = scalar_lea.vmem %s3, %s692
      %p694 = pneg %p128
      %p695 = pneg %p125
      %p696 = scmp.lt.s32.totalorder %s29, 1
      %s697 = scalar_select %p696, %s29, 1
      %s698 = smul.addr %s697, 8
      %s699 = smul.addr %s698, 4
      %s700 = scalar_lea.vmem %s4, %s699
      %p701 = pneg %p154
      %p702 = pneg %p151
      %p703 = scmp.lt.s32.totalorder %s29, 1
      %s704 = scalar_select %p703, %s29, 1
      %s705 = smul.addr %s704, 2
      %s706 = scalar_lea.vmem %s5, %s705
      %p707 = pneg %p180
      %p708 = pneg %p177
      %p709 = scmp.lt.s32.totalorder %s29, 1
      %s710 = scalar_select %p709, %s29, 1
      %s711 = smul.addr %s710, 8
      %s712 = smul.addr %s711, 4
      %s713 = scalar_lea.vmem %s6, %s712
      %p714 = pneg %p206
      %p715 = pneg %p203
      %p716 = scmp.lt.s32.totalorder %s29, 1
      %s717 = scalar_select %p716, %s29, 1
      %s718 = smul.addr %s717, 2
      %s719 = scalar_lea.vmem %s7, %s718
      %p720 = pneg %p232
      %p721 = pneg %p229
      %p722 = scmp.lt.s32.totalorder %s29, 1
      %s723 = scalar_select %p722, %s29, 1
      %s724 = smul.addr %s723, 2
      %s725 = scalar_lea.vmem %s8, %s724
      %p726 = pneg %p258
      %p727 = pneg %p255
      %p728 = scmp.lt.s32.totalorder %s29, 1
      %s729 = scalar_select %p728, %s29, 1
      %s730 = smul.addr %s729, 2
      %s731 = scalar_lea.vmem %s9, %s730
      %p732 = pneg %p284
      %p733 = pneg %p281
      %p734 = scmp.lt.s32.totalorder %s29, 1
      %s735 = scalar_select %p734, %s29, 1
      %s736 = smul.addr %s735, 8
      %s737 = smul.addr %s736, 4
      %s738 = scalar_lea.vmem %s10, %s737
      %p739 = pneg %p310
      %p740 = pneg %p307
      %p741 = scmp.lt.s32.totalorder %s29, 1
      %s742 = scalar_select %p741, %s29, 1
      %s743 = smul.addr %s742, 2
      %s744 = scalar_lea.vmem %s11, %s743
      %p745 = pneg %p336
      %p746 = pneg %p333
      %p747 = scmp.lt.s32.totalorder %s29, 1
      %s748 = scalar_select %p747, %s29, 1
      %s749 = smul.addr %s748, 16
      %s750 = smul.addr %s749, 4
      %s751 = scalar_lea.vmem %s12, %s750
      %p752 = pneg %p362
      %p753 = pneg %p359
      %p754 = scmp.lt.s32.totalorder %s29, 1
      %s755 = scalar_select %p754, %s29, 1
      %s756 = smul.addr %s755, 2
      %s757 = scalar_lea.vmem %s13, %s756
      %p758 = pneg %p388
      %p759 = pneg %p385
      %p760 = scmp.lt.s32.totalorder %s29, 1
      %s761 = scalar_select %p760, %s29, 1
      %s762 = smul.addr %s761, 2
      %s763 = scalar_lea.vmem %s14, %s762
      %p764 = pneg %p414
      %p765 = pneg %p411
      %p766 = scmp.lt.s32.totalorder %s29, 1
      %s767 = scalar_select %p766, %s29, 1
      %s768 = smul.addr %s767, 2
      %s769 = scalar_lea.vmem %s15, %s768
      %p770 = pneg %p440
      %p771 = pneg %p437
      %p772 = scmp.lt.s32.totalorder %s29, 1
      %s773 = scalar_select %p772, %s29, 1
      %s774 = smul.addr %s773, 4
      %s775 = smul.addr %s774, 4
      %s776 = scalar_lea.vmem %s16, %s775
      %p777 = pneg %p466
      %p778 = pneg %p463
      %p779 = scmp.lt.s32.totalorder %s29, 1
      %s780 = scalar_select %p779, %s29, 1
      %s781 = scalar_lea.vmem %s17, %s780
      %p782 = pneg %p492
      %p783 = pneg %p489
      %p784 = pneg %p518
      %p785 = pneg %p515
      %p786 = scmp.lt.s32.totalorder %s29, 1
      %s787 = scalar_select %p786, %s29, 1
      %s788 = smul.addr %s787, 2
      %s789 = scalar_lea.vmem %s18, %s788
      %p790 = scmp.lt.s32.totalorder %s29, 1
      %s791 = scalar_select %p790, %s29, 1
      %s792 = smul.addr %s791, 2
      %s793 = smul.addr %s792, 8
      %s794 = scalar_lea.vmem %s0, %s793
      %p795 = scmp.lt.s32.totalorder %s29, 1
      %s796 = scalar_select %p795, %s29, 1
      %s797 = smul.addr %s796, 2
      %s798 = scalar_lea.vmem %s1, %s797
      %p799 = scmp.lt.s32.totalorder %s29, 1
      %s800 = scalar_select %p799, %s29, 1
      %s801 = scalar_lea.vmem %s2, %s800
      %p802 = scmp.lt.s32.totalorder %s29, 1
      %s803 = scalar_select %p802, %s29, 1
      %s804 = scalar_lea.vmem %s3, %s803
      %p805 = scmp.lt.s32.totalorder %s29, 1
      %s806 = scalar_select %p805, %s29, 1
      %s807 = smul.addr %s806, 8
      %s808 = smul.addr %s807, 4
      %s809 = scalar_lea.vmem %s4, %s808
      %p810 = scmp.lt.s32.totalorder %s29, 1
      %s811 = scalar_select %p810, %s29, 1
      %s812 = smul.addr %s811, 2
      %s813 = scalar_lea.vmem %s5, %s812
      %p814 = scmp.lt.s32.totalorder %s29, 1
      %s815 = scalar_select %p814, %s29, 1
      %s816 = smul.addr %s815, 8
      %s817 = smul.addr %s816, 4
      %s818 = scalar_lea.vmem %s6, %s817
      %p819 = scmp.lt.s32.totalorder %s29, 1
      %s820 = scalar_select %p819, %s29, 1
      %s821 = smul.addr %s820, 2
      %s822 = scalar_lea.vmem %s7, %s821
      %p823 = scmp.lt.s32.totalorder %s29, 1
      %s824 = scalar_select %p823, %s29, 1
      %s825 = smul.addr %s824, 2
      %s826 = scalar_lea.vmem %s8, %s825
      %p827 = scmp.lt.s32.totalorder %s29, 1
      %s828 = scalar_select %p827, %s29, 1
      %s829 = smul.addr %s828, 2
      %s830 = scalar_lea.vmem %s9, %s829
      %p831 = scmp.lt.s32.totalorder %s29, 1
      %s832 = scalar_select %p831, %s29, 1
      %s833 = smul.addr %s832, 8
      %s834 = smul.addr %s833, 4
      %s835 = scalar_lea.vmem %s10, %s834
      %p836 = scmp.lt.s32.totalorder %s29, 1
      %s837 = scalar_select %p836, %s29, 1
      %s838 = smul.addr %s837, 2
      %s839 = scalar_lea.vmem %s11, %s838
      %p840 = scmp.lt.s32.totalorder %s29, 1
      %s841 = scalar_select %p840, %s29, 1
      %s842 = smul.addr %s841, 16
      %s843 = smul.addr %s842, 4
      %s844 = scalar_lea.vmem %s12, %s843
      %p845 = scmp.lt.s32.totalorder %s29, 1
      %s846 = scalar_select %p845, %s29, 1
      %s847 = smul.addr %s846, 2
      %s848 = scalar_lea.vmem %s13, %s847
      %p849 = scmp.lt.s32.totalorder %s29, 1
      %s850 = scalar_select %p849, %s29, 1
      %s851 = smul.addr %s850, 2
      %s852 = scalar_lea.vmem %s14, %s851
      %p853 = scmp.lt.s32.totalorder %s29, 1
      %s854 = scalar_select %p853, %s29, 1
      %s855 = smul.addr %s854, 2
      %s856 = scalar_lea.vmem %s15, %s855
      %p857 = scmp.lt.s32.totalorder %s29, 1
      %s858 = scalar_select %p857, %s29, 1
      %s859 = smul.addr %s858, 4
      %s860 = smul.addr %s859, 4
      %s861 = scalar_lea.vmem %s16, %s860
      %p862 = scmp.lt.s32.totalorder %s29, 1
      %s863 = scalar_select %p862, %s29, 1
      %s864 = scalar_lea.vmem %s17, %s863
      %p865 = scmp.lt.s32.totalorder %s29, 1
      %s866 = scalar_select %p865, %s29, 1
      %s867 = smul.addr %s866, 2
      %s868 = scalar_lea.vmem %s18, %s867
      %v870 = vld [vmem:[%s798] sm:$0x3]
      %v871 = vsub.f32 1.0, %v870
      %v872 = vmul.f32 %v871, -1e+09
      %v875 = vunpack.c.l.s4 1966171168
      %v876 = vunpack.c.0.s8 %v875
      %v877 = vlaneseq
      %v878 = vshrl.u32 %v877, 7
      %v879 = vsub.s32 %v876, %v878
      %v880 = vrot.slane %v872, %v879
      %v881 = vcombine.high %v880, %v880
      %v883 = vunpack.c.l.s4 1966171168
      %v884 = vunpack.c.0.s8 %v883
      %v885 = vlaneseq
      %v886 = vshrl.u32 %v885, 7
      %v887 = vsub.s32 %v884, %v886
      %v888 = vrot.slane %v880, %v887
      %v890 = vunpack.c.l.s4 1966171168
      %v891 = vunpack.c.0.s8 %v890
      %v892 = vlaneseq
      %v893 = vshrl.u32 %v892, 7
      %v894 = vsub.s32 %v891, %v893
      %v895 = vrot.slane %v881, %v894
      %v896 = vlaneseq
      %v897 = vshrl.u32 %v896, 7
      %v898 = vsub.s32 0, %v897
      %v899 = vrot.slane %v888, %v898
      %v900 = vlaneseq
      %v901 = vshrl.u32 %v900, 7
      %v902 = vsub.s32 0, %v901
      %v903 = vrot.slane %v895, %v902
      %v906 = vld [vmem:[%s794] sm:$0xff]
      %v907 = vld [vmem:[%s794 + $0x8] sm:$0xff]
      %v908 = vld [vmem:[%s801] sm:$0x1]
      %v909 = vld [vmem:[%s804] sm:$0x1]
      %vm910 = vcmask 261120
      %v911 = vsel %vm910, %v906, 0.0
      %912 = vadd.xlane.f32.xlu0 %v911
      %v913 = vpop.xlane.xlu0 %912
      %v914 = vsel %vm910, %v907, 0.0
      %915 = vadd.xlane.f32.xlu0 %v914
      %v916 = vpop.xlane.xlu0 %915
      %v917 = vrcp.pop 32.0
      %v918 = vmul.f32 %v913, %v917
      %v919 = vmul.f32 %v916, %v917
      %v920 = vsub.f32 %v906, %v918
      %v921 = vsub.f32 %v907, %v919
      %v922 = vmul.f32 %v920, %v920
      %v923 = vmul.f32 %v921, %v921
      %v924 = vsel %vm910, %v922, 0.0
      %925 = vadd.xlane.f32.xlu0 %v924
      %v926 = vpop.xlane.xlu0 %925
      %v927 = vsel %vm910, %v923, 0.0
      %928 = vadd.xlane.f32.xlu0 %v927
      %v929 = vpop.xlane.xlu0 %928
      %v930 = vmul.f32 %v926, %v917
      %v931 = vmul.f32 %v929, %v917
      %v932 = vadd.f32 %v930, 1e-12
      %v933 = vadd.f32 %v931, 1e-12
      %v934 = vrsqrt.pop %v932
      %v935 = vrsqrt.pop %v933
      %v936 = vmul.f32 %v920, %v934
      %v937 = vmul.f32 %v921, %v935
      %v939 = vlaneseq
      %v940 = vshrl.u32 %v939, 7
      %v941 = vsub.s32 0, %v940
      %v942 = vrot.slane %v908, %v941
      %v944 = vmul.f32 %v936, %v942
      %v945 = vmul.f32 %v937, %v942
      %v947 = vlaneseq
      %v948 = vshrl.u32 %v947, 7
      %v949 = vsub.s32 0, %v948
      %v950 = vrot.slane %v909, %v949
      %v952 = vadd.f32 %v944, %v950
      %v953 = vadd.f32 %v945, %v950
      %v954 = vld [vmem:[%s809] sm:$0xf]
      %v955 = vld [vmem:[%s809 + $0x4] sm:$0xf]
      %v956 = vld [vmem:[%s809 + $0x8] sm:$0xf]
      %v957 = vld [vmem:[%s809 + $0xc] sm:$0xf]
      %v958 = vld [vmem:[%s813] sm:$0x1]
      %v959 = vpack.c.bf16 %v953, %v952
      %v964 = vunpack.c.l.b16 %v954
      %v965 = vunpack.c.l.b16 %v955
      %v966 = vunpack.c.l.b16 %v956
      %v967 = vunpack.c.l.b16 %v957
      %v968 = vpack.c.b16 %v965, %v964
      %v969 = vpack.c.b16 %v967, %v966
      %v973 = vsel %vm910, %v959, 0
      %975 = vmatprep.subr.bf16.mxu0 0
      %976 = vmatpush1.bf16.msra.mxu0 %v968
      %977 = vmatprep.subr.bf16.mxu0 0
      %978 = vmatpush1.bf16.msra.mxu0 %v969
      %979 = vmatprep.subr.bf16.mxu0 0
      %980 = vmatpush1.bf16.msra.mxu0 0
      %981 = vmatprep.subr.bf16.mxu0 0
      %982 = vmatpush1.bf16.msra.mxu0 0
      %983 = vmatprep.subr.bf16.mxu0 0
      %984 = vmatpush1.bf16.msra.mxu0 0
      %985 = vmatprep.subr.bf16.mxu0 0
      %986 = vmatpush1.bf16.msra.mxu0 0
      %987 = vmatprep.subr.bf16.mxu0 0
      %988 = vmatpush1.bf16.msra.mxu0 0
      %989 = vmatprep.subr.bf16.mxu0 0
      %990 = vmatpush1.bf16.msra.mxu0 0
      %991 = vmatprep.subr.bf16.mxu0 0
      %992 = vmatpush1.bf16.msra.mxu0 0
      %993 = vmatprep.subr.bf16.mxu0 0
      %994 = vmatpush1.bf16.msra.mxu0 0
      %995 = vmatprep.subr.bf16.mxu0 0
      %996 = vmatpush1.bf16.msra.mxu0 0
      %997 = vmatprep.subr.bf16.mxu0 0
      %998 = vmatpush1.bf16.msra.mxu0 0
      %999 = vmatprep.subr.bf16.mxu0 0
      %1000 = vmatpush1.bf16.msra.mxu0 0
      %1001 = vmatprep.subr.bf16.mxu0 0
      %1002 = vmatpush1.bf16.msra.mxu0 0
      %1003 = vmatprep.subr.bf16.mxu0 0
      %1004 = vmatpush1.bf16.msra.mxu0 0
      %1005 = vmatprep.subr.bf16.mxu0 0
      %1006 = vmatpush1.bf16.msra.mxu0 0
      %1007 = vmatprep.mubr.bf16.mxu0 0
      %1008 = vmatmul.mubr.bf16.gmra.mrb[0].mxu0 %v973
      %v1009 = vpop.f32.mrb[0].mxu0
      %v1010 = vadd.f32 0.0, %v1009
      %v1011 = vpop.f32.mrb[0].mxu0
      %v1012 = vpop.f32.mrb[0].mxu0
      %v1013 = vadd.f32 0.0, %v1012
      %v1014 = vpop.f32.mrb[0].mxu0
      %1015 = vdwg.mxu0
      %v1017 = vlaneseq
      %v1018 = vshrl.u32 %v1017, 7
      %v1019 = vsub.s32 0, %v1018
      %v1020 = vrot.slane %v958, %v1019
      %v1022 = vadd.f32 %v1010, %v1020
      %v1023 = vadd.f32 %v1013, %v1020
      %v1024 = vpack.c.bf16 %v1022, %v1022
      %v1025 = vpack.c.bf16 %v1023, %v1023
      %1027 = vrot.lane.b32.xlu0 %v1024, 96
      %v1028 = vpop.permute.xlu0 %1027
      %vm1029 = vcmask 64512
      %v1031 = vsel %vm1029, %v1024, 0
      %v1034 = vsel %vm1029, %v1028, 0
      %1036 = vmatprep.subr.bf16.mxu0 0
      %1037 = vmatpush1.bf16.xpose.msra.mxu0 %v1034
      %1038 = vmatprep.subr.bf16.mxu0 0
      %1039 = vmatpush1.bf16.xpose.msra.mxu0 0
      %1040 = vmatprep.subr.bf16.mxu0 0
      %1041 = vmatpush1.bf16.xpose.msra.mxu0 0
      %1042 = vmatprep.subr.bf16.mxu0 0
      %1043 = vmatpush1.bf16.xpose.msra.mxu0 0
      %1044 = vmatprep.subr.bf16.mxu0 0
      %1045 = vmatpush1.bf16.xpose.msra.mxu0 0
      %1046 = vmatprep.subr.bf16.mxu0 0
      %1047 = vmatpush1.bf16.xpose.msra.mxu0 0
      %1048 = vmatprep.subr.bf16.mxu0 0
      %1049 = vmatpush1.bf16.xpose.msra.mxu0 0
      %1050 = vmatprep.subr.bf16.mxu0 0
      %1051 = vmatpush1.bf16.xpose.msra.mxu0 0
      %1052 = vmatprep.subr.bf16.mxu0 0
      %1053 = vmatpush1.bf16.xpose.msra.mxu0 0
      %1054 = vmatprep.subr.bf16.mxu0 0
      %1055 = vmatpush1.bf16.xpose.msra.mxu0 0
      %1056 = vmatprep.subr.bf16.mxu0 0
      %1057 = vmatpush1.bf16.xpose.msra.mxu0 0
      %1058 = vmatprep.subr.bf16.mxu0 0
      %1059 = vmatpush1.bf16.xpose.msra.mxu0 0
      %1060 = vmatprep.subr.bf16.mxu0 0
      %1061 = vmatpush1.bf16.xpose.msra.mxu0 0
      %1062 = vmatprep.subr.bf16.mxu0 0
      %1063 = vmatpush1.bf16.xpose.msra.mxu0 0
      %1064 = vmatprep.subr.bf16.mxu0 0
      %1065 = vmatpush1.bf16.xpose.msra.mxu0 0
      %1066 = vmatprep.subr.bf16.mxu0 0
      %1067 = vmatpush1.bf16.xpose.msra.mxu0 0
      %1068 = vmatprep.mubr.bf16.mxu0 0
      %1069 = vmatmul.mubr.bf16.gmra.mrb[0].mxu0 %v1031
      %v1070 = vpop.f32.mrb[0].mxu0
      %v1071 = vadd.f32 %v899, %v1070
      %v1072 = vpop.f32.mrb[0].mxu0
      %v1073 = vpop.f32.mrb[0].mxu0
      %v1074 = vpop.f32.mrb[0].mxu0
      %1075 = vdwg.mxu0
      %1077 = vrot.lane.b32.xlu0 %v1025, 96
      %v1078 = vpop.permute.xlu0 %1077
      %v1080 = vsel %vm1029, %v1025, 0
      %v1083 = vsel %vm1029, %v1078, 0
      %1085 = vmatprep.subr.bf16.mxu0 0
      %1086 = vmatpush1.bf16.xpose.msra.mxu0 %v1083
      %1087 = vmatprep.subr.bf16.mxu0 0
      %1088 = vmatpush1.bf16.xpose.msra.mxu0 0
      %1089 = vmatprep.subr.bf16.mxu0 0
      %1090 = vmatpush1.bf16.xpose.msra.mxu0 0
      %1091 = vmatprep.subr.bf16.mxu0 0
      %1092 = vmatpush1.bf16.xpose.msra.mxu0 0
      %1093 = vmatprep.subr.bf16.mxu0 0
      %1094 = vmatpush1.bf16.xpose.msra.mxu0 0
      %1095 = vmatprep.subr.bf16.mxu0 0
      %1096 = vmatpush1.bf16.xpose.msra.mxu0 0
      %1097 = vmatprep.subr.bf16.mxu0 0
      %1098 = vmatpush1.bf16.xpose.msra.mxu0 0
      %1099 = vmatprep.subr.bf16.mxu0 0
      %1100 = vmatpush1.bf16.xpose.msra.mxu0 0
      %1101 = vmatprep.subr.bf16.mxu0 0
      %1102 = vmatpush1.bf16.xpose.msra.mxu0 0
      %1103 = vmatprep.subr.bf16.mxu0 0
      %1104 = vmatpush1.bf16.xpose.msra.mxu0 0
      %1105 = vmatprep.subr.bf16.mxu0 0
      %1106 = vmatpush1.bf16.xpose.msra.mxu0 0
      %1107 = vmatprep.subr.bf16.mxu0 0
      %1108 = vmatpush1.bf16.xpose.msra.mxu0 0
      %1109 = vmatprep.subr.bf16.mxu0 0
      %1110 = vmatpush1.bf16.xpose.msra.mxu0 0
      %1111 = vmatprep.subr.bf16.mxu0 0
      %1112 = vmatpush1.bf16.xpose.msra.mxu0 0
      %1113 = vmatprep.subr.bf16.mxu0 0
      %1114 = vmatpush1.bf16.xpose.msra.mxu0 0
      %1115 = vmatprep.subr.bf16.mxu0 0
      %1116 = vmatpush1.bf16.xpose.msra.mxu0 0
      %1117 = vmatprep.mubr.bf16.mxu0 0
      %1118 = vmatmul.mubr.bf16.gmra.mrb[0].mxu0 %v1080
      %v1119 = vpop.f32.mrb[0].mxu0
      %v1120 = vadd.f32 %v903, %v1119
      %v1121 = vpop.f32.mrb[0].mxu0
      %v1122 = vpop.f32.mrb[0].mxu0
      %v1123 = vpop.f32.mrb[0].mxu0
      %1124 = vdwg.mxu0
      %v1125 = vsel %vm1029, %v1071, -inf
      %1126 = vmax.xlane.f32.xlu0 %v1125
      %v1127 = vpop.xlane.xlu0 %1126
      %v1128 = vsel %vm1029, %v1120, -inf
      %1129 = vmax.xlane.f32.xlu0 %v1128
      %v1130 = vpop.xlane.xlu0 %1129
      %v1131 = vsub.f32 %v1071, %v1127
      %v1132 = vsub.f32 %v1120, %v1130
      %v1133 = vmul.f32 %v1131, 1.442695
      %v1134 = vpow.pop %v1133
      %v1135 = vmul.f32 %v1132, 1.442695
      %v1136 = vpow.pop %v1135
      %v1137 = vsel %vm1029, %v1134, 0.0
      %1138 = vadd.xlane.f32.xlu0 %v1137
      %v1139 = vpop.xlane.xlu0 %1138
      %v1140 = vsel %vm1029, %v1136, 0.0
      %1141 = vadd.xlane.f32.xlu0 %v1140
      %v1142 = vpop.xlane.xlu0 %1141
      %v1143 = vrcp.pop %v1139
      %v1144 = vrcp.pop %v1142
      %v1145 = vmul.f32 %v1134, %v1143
      %v1146 = vmul.f32 %v1136, %v1144
      %v1147 = vpack.c.bf16 %v1145, %v1145
      %v1148 = vpack.c.bf16 %v1146, %v1146
      %1149 = vrot.lane.b32.xlu0 %v1024, 64
      %v1150 = vpop.permute.xlu0 %1149
      %v1152 = vsel %vm1029, %v1147, 0
      %vm1154 = vcmask 1043456
      %v1156 = vsel %vm1154, %v1150, 0
      %1158 = vmatprep.subr.bf16.mxu0 0
      %1159 = vmatpush1.bf16.msra.mxu0 %v1156
      %1160 = vmatprep.subr.bf16.mxu0 0
      %1161 = vmatpush1.bf16.msra.mxu0 0
      %1162 = vmatprep.subr.bf16.mxu0 0
      %1163 = vmatpush1.bf16.msra.mxu0 0
      %1164 = vmatprep.subr.bf16.mxu0 0
      %1165 = vmatpush1.bf16.msra.mxu0 0
      %1166 = vmatprep.subr.bf16.mxu0 0
      %1167 = vmatpush1.bf16.msra.mxu0 0
      %1168 = vmatprep.subr.bf16.mxu0 0
      %1169 = vmatpush1.bf16.msra.mxu0 0
      %1170 = vmatprep.subr.bf16.mxu0 0
      %1171 = vmatpush1.bf16.msra.mxu0 0
      %1172 = vmatprep.subr.bf16.mxu0 0
      %1173 = vmatpush1.bf16.msra.mxu0 0
      %1174 = vmatprep.subr.bf16.mxu0 0
      %1175 = vmatpush1.bf16.msra.mxu0 0
      %1176 = vmatprep.subr.bf16.mxu0 0
      %1177 = vmatpush1.bf16.msra.mxu0 0
      %1178 = vmatprep.subr.bf16.mxu0 0
      %1179 = vmatpush1.bf16.msra.mxu0 0
      %1180 = vmatprep.subr.bf16.mxu0 0
      %1181 = vmatpush1.bf16.msra.mxu0 0
      %1182 = vmatprep.subr.bf16.mxu0 0
      %1183 = vmatpush1.bf16.msra.mxu0 0
      %1184 = vmatprep.subr.bf16.mxu0 0
      %1185 = vmatpush1.bf16.msra.mxu0 0
      %1186 = vmatprep.subr.bf16.mxu0 0
      %1187 = vmatpush1.bf16.msra.mxu0 0
      %1188 = vmatprep.subr.bf16.mxu0 0
      %1189 = vmatpush1.bf16.msra.mxu0 0
      %1190 = vmatprep.mubr.bf16.mxu0 0
      %1191 = vmatmul.mubr.bf16.gmra.mrb[0].mxu0 %v1152
      %v1192 = vpop.f32.mrb[0].mxu0
      %v1193 = vadd.f32 0.0, %v1192
      %v1194 = vpop.f32.mrb[0].mxu0
      %v1195 = vpop.f32.mrb[0].mxu0
      %v1196 = vpop.f32.mrb[0].mxu0
      %1197 = vdwg.mxu0
      %1198 = vrot.lane.b32.xlu0 %v1025, 64
      %v1199 = vpop.permute.xlu0 %1198
      %v1201 = vsel %vm1029, %v1148, 0
      %v1204 = vsel %vm1154, %v1199, 0
      %1206 = vmatprep.subr.bf16.mxu0 0
      %1207 = vmatpush1.bf16.msra.mxu0 %v1204
      %1208 = vmatprep.subr.bf16.mxu0 0
      %1209 = vmatpush1.bf16.msra.mxu0 0
      %1210 = vmatprep.subr.bf16.mxu0 0
      %1211 = vmatpush1.bf16.msra.mxu0 0
      %1212 = vmatprep.subr.bf16.mxu0 0
      %1213 = vmatpush1.bf16.msra.mxu0 0
      %1214 = vmatprep.subr.bf16.mxu0 0
      %1215 = vmatpush1.bf16.msra.mxu0 0
      %1216 = vmatprep.subr.bf16.mxu0 0
      %1217 = vmatpush1.bf16.msra.mxu0 0
      %1218 = vmatprep.subr.bf16.mxu0 0
      %1219 = vmatpush1.bf16.msra.mxu0 0
      %1220 = vmatprep.subr.bf16.mxu0 0
      %1221 = vmatpush1.bf16.msra.mxu0 0
      %1222 = vmatprep.subr.bf16.mxu0 0
      %1223 = vmatpush1.bf16.msra.mxu0 0
      %1224 = vmatprep.subr.bf16.mxu0 0
      %1225 = vmatpush1.bf16.msra.mxu0 0
      %1226 = vmatprep.subr.bf16.mxu0 0
      %1227 = vmatpush1.bf16.msra.mxu0 0
      %1228 = vmatprep.subr.bf16.mxu0 0
      %1229 = vmatpush1.bf16.msra.mxu0 0
      %1230 = vmatprep.subr.bf16.mxu0 0
      %1231 = vmatpush1.bf16.msra.mxu0 0
      %1232 = vmatprep.subr.bf16.mxu0 0
      %1233 = vmatpush1.bf16.msra.mxu0 0
      %1234 = vmatprep.subr.bf16.mxu0 0
      %1235 = vmatpush1.bf16.msra.mxu0 0
      %1236 = vmatprep.subr.bf16.mxu0 0
      %1237 = vmatpush1.bf16.msra.mxu0 0
      %1238 = vmatprep.mubr.bf16.mxu0 0
      %1239 = vmatmul.mubr.bf16.gmra.mrb[0].mxu0 %v1201
      %v1240 = vpop.f32.mrb[0].mxu0
      %v1241 = vadd.f32 0.0, %v1240
      %v1242 = vpop.f32.mrb[0].mxu0
      %v1243 = vpop.f32.mrb[0].mxu0
      %v1244 = vpop.f32.mrb[0].mxu0
      %1245 = vdwg.mxu0
      %v1246 = vpack.c.bf16 %v1241, %v1193
      %v1247 = vld [vmem:[%s818] sm:$0xf]
      %v1249 = vsel %vm1029, %v1246, 0
      %v1252 = vsel %vm1154, %v1247, 0
      %1254 = vmatprep.subr.bf16.mxu0 0
      %1255 = vmatpush1.bf16.msra.mxu0 %v1252
      %1256 = vmatprep.subr.bf16.mxu0 0
      %1257 = vmatpush1.bf16.msra.mxu0 0
      %1258 = vmatprep.subr.bf16.mxu0 0
      %1259 = vmatpush1.bf16.msra.mxu0 0
      %1260 = vmatprep.subr.bf16.mxu0 0
      %1261 = vmatpush1.bf16.msra.mxu0 0
      %1262 = vmatprep.subr.bf16.mxu0 0
      %1263 = vmatpush1.bf16.msra.mxu0 0
      %1264 = vmatprep.subr.bf16.mxu0 0
      %1265 = vmatpush1.bf16.msra.mxu0 0
      %1266 = vmatprep.subr.bf16.mxu0 0
      %1267 = vmatpush1.bf16.msra.mxu0 0
      %1268 = vmatprep.subr.bf16.mxu0 0
      %1269 = vmatpush1.bf16.msra.mxu0 0
      %1270 = vmatprep.subr.bf16.mxu0 0
      %1271 = vmatpush1.bf16.msra.mxu0 0
      %1272 = vmatprep.subr.bf16.mxu0 0
      %1273 = vmatpush1.bf16.msra.mxu0 0
      %1274 = vmatprep.subr.bf16.mxu0 0
      %1275 = vmatpush1.bf16.msra.mxu0 0
      %1276 = vmatprep.subr.bf16.mxu0 0
      %1277 = vmatpush1.bf16.msra.mxu0 0
      %1278 = vmatprep.subr.bf16.mxu0 0
      %1279 = vmatpush1.bf16.msra.mxu0 0
      %1280 = vmatprep.subr.bf16.mxu0 0
      %1281 = vmatpush1.bf16.msra.mxu0 0
      %1282 = vmatprep.subr.bf16.mxu0 0
      %1283 = vmatpush1.bf16.msra.mxu0 0
      %1284 = vmatprep.subr.bf16.mxu0 0
      %1285 = vmatpush1.bf16.msra.mxu0 0
      %1286 = vmatprep.mubr.bf16.mxu0 0
      %1287 = vmatmul.mubr.bf16.gmra.mrb[0].mxu0 %v1249
      %v1288 = vpop.f32.mrb[0].mxu0
      %v1289 = vadd.f32 0.0, %v1288
      %v1290 = vpop.f32.mrb[0].mxu0
      %v1291 = vpop.f32.mrb[0].mxu0
      %v1292 = vadd.f32 0.0, %v1291
      %v1293 = vpop.f32.mrb[0].mxu0
      %1294 = vdwg.mxu0
      %v1295 = vadd.f32 %v1289, 0.0
      %v1296 = vadd.f32 %v1292, 0.0
      %1297 = vrot.lane.b32.xlu0 %v1024, 120
      %v1298 = vpop.permute.xlu0 %1297
      %1299 = vrot.lane.b32.xlu0 %v1024, 88
      %v1300 = vpop.permute.xlu0 %1299
      %v1302 = vsel %vm1029, %v1298, 0
      %v1305 = vsel %vm1029, %v1300, 0
      %1307 = vmatprep.subr.bf16.mxu0 0
      %1308 = vmatpush1.bf16.xpose.msra.mxu0 %v1305
      %1309 = vmatprep.subr.bf16.mxu0 0
      %1310 = vmatpush1.bf16.xpose.msra.mxu0 0
      %1311 = vmatprep.subr.bf16.mxu0 0
      %1312 = vmatpush1.bf16.xpose.msra.mxu0 0
      %1313 = vmatprep.subr.bf16.mxu0 0
      %1314 = vmatpush1.bf16.xpose.msra.mxu0 0
      %1315 = vmatprep.subr.bf16.mxu0 0
      %1316 = vmatpush1.bf16.xpose.msra.mxu0 0
      %1317 = vmatprep.subr.bf16.mxu0 0
      %1318 = vmatpush1.bf16.xpose.msra.mxu0 0
      %1319 = vmatprep.subr.bf16.mxu0 0
      %1320 = vmatpush1.bf16.xpose.msra.mxu0 0
      %1321 = vmatprep.subr.bf16.mxu0 0
      %1322 = vmatpush1.bf16.xpose.msra.mxu0 0
      %1323 = vmatprep.subr.bf16.mxu0 0
      %1324 = vmatpush1.bf16.xpose.msra.mxu0 0
      %1325 = vmatprep.subr.bf16.mxu0 0
      %1326 = vmatpush1.bf16.xpose.msra.mxu0 0
      %1327 = vmatprep.subr.bf16.mxu0 0
      %1328 = vmatpush1.bf16.xpose.msra.mxu0 0
      %1329 = vmatprep.subr.bf16.mxu0 0
      %1330 = vmatpush1.bf16.xpose.msra.mxu0 0
      %1331 = vmatprep.subr.bf16.mxu0 0
      %1332 = vmatpush1.bf16.xpose.msra.mxu0 0
      %1333 = vmatprep.subr.bf16.mxu0 0
      %1334 = vmatpush1.bf16.xpose.msra.mxu0 0
      %1335 = vmatprep.subr.bf16.mxu0 0
      %1336 = vmatpush1.bf16.xpose.msra.mxu0 0
      %1337 = vmatprep.subr.bf16.mxu0 0
      %1338 = vmatpush1.bf16.xpose.msra.mxu0 0
      %1339 = vmatprep.mubr.bf16.mxu0 0
      %1340 = vmatmul.mubr.bf16.gmra.mrb[0].mxu0 %v1302
      %v1341 = vpop.f32.mrb[0].mxu0
      %v1342 = vadd.f32 %v899, %v1341
      %v1343 = vpop.f32.mrb[0].mxu0
      %v1344 = vpop.f32.mrb[0].mxu0
      %v1345 = vpop.f32.mrb[0].mxu0
      %1346 = vdwg.mxu0
      %1347 = vrot.lane.b32.xlu0 %v1025, 120
      %v1348 = vpop.permute.xlu0 %1347
      %1349 = vrot.lane.b32.xlu0 %v1025, 88
      %v1350 = vpop.permute.xlu0 %1349
      %v1352 = vsel %vm1029, %v1348, 0
      %v1355 = vsel %vm1029, %v1350, 0
      %1357 = vmatprep.subr.bf16.mxu0 0
      %1358 = vmatpush1.bf16.xpose.msra.mxu0 %v1355
      %1359 = vmatprep.subr.bf16.mxu0 0
      %1360 = vmatpush1.bf16.xpose.msra.mxu0 0
      %1361 = vmatprep.subr.bf16.mxu0 0
      %1362 = vmatpush1.bf16.xpose.msra.mxu0 0
      %1363 = vmatprep.subr.bf16.mxu0 0
      %1364 = vmatpush1.bf16.xpose.msra.mxu0 0
      %1365 = vmatprep.subr.bf16.mxu0 0
      %1366 = vmatpush1.bf16.xpose.msra.mxu0 0
      %1367 = vmatprep.subr.bf16.mxu0 0
      %1368 = vmatpush1.bf16.xpose.msra.mxu0 0
      %1369 = vmatprep.subr.bf16.mxu0 0
      %1370 = vmatpush1.bf16.xpose.msra.mxu0 0
      %1371 = vmatprep.subr.bf16.mxu0 0
      %1372 = vmatpush1.bf16.xpose.msra.mxu0 0
      %1373 = vmatprep.subr.bf16.mxu0 0
      %1374 = vmatpush1.bf16.xpose.msra.mxu0 0
      %1375 = vmatprep.subr.bf16.mxu0 0
      %1376 = vmatpush1.bf16.xpose.msra.mxu0 0
      %1377 = vmatprep.subr.bf16.mxu0 0
      %1378 = vmatpush1.bf16.xpose.msra.mxu0 0
      %1379 = vmatprep.subr.bf16.mxu0 0
      %1380 = vmatpush1.bf16.xpose.msra.mxu0 0
      %1381 = vmatprep.subr.bf16.mxu0 0
      %1382 = vmatpush1.bf16.xpose.msra.mxu0 0
      %1383 = vmatprep.subr.bf16.mxu0 0
      %1384 = vmatpush1.bf16.xpose.msra.mxu0 0
      %1385 = vmatprep.subr.bf16.mxu0 0
      %1386 = vmatpush1.bf16.xpose.msra.mxu0 0
      %1387 = vmatprep.subr.bf16.mxu0 0
      %1388 = vmatpush1.bf16.xpose.msra.mxu0 0
      %1389 = vmatprep.mubr.bf16.mxu0 0
      %1390 = vmatmul.mubr.bf16.gmra.mrb[0].mxu0 %v1352
      %v1391 = vpop.f32.mrb[0].mxu0
      %v1392 = vadd.f32 %v903, %v1391
      %v1393 = vpop.f32.mrb[0].mxu0
      %v1394 = vpop.f32.mrb[0].mxu0
      %v1395 = vpop.f32.mrb[0].mxu0
      %1396 = vdwg.mxu0
      %v1397 = vsel %vm1029, %v1342, -inf
      %1398 = vmax.xlane.f32.xlu0 %v1397
      %v1399 = vpop.xlane.xlu0 %1398
      %v1400 = vsel %vm1029, %v1392, -inf
      %1401 = vmax.xlane.f32.xlu0 %v1400
      %v1402 = vpop.xlane.xlu0 %1401
      %v1403 = vsub.f32 %v1342, %v1399
      %v1404 = vsub.f32 %v1392, %v1402
      %v1405 = vmul.f32 %v1403, 1.442695
      %v1406 = vpow.pop %v1405
      %v1407 = vmul.f32 %v1404, 1.442695
      %v1408 = vpow.pop %v1407
      %v1409 = vsel %vm1029, %v1406, 0.0
      %1410 = vadd.xlane.f32.xlu0 %v1409
      %v1411 = vpop.xlane.xlu0 %1410
      %v1412 = vsel %vm1029, %v1408, 0.0
      %1413 = vadd.xlane.f32.xlu0 %v1412
      %v1414 = vpop.xlane.xlu0 %1413
      %v1415 = vrcp.pop %v1411
      %v1416 = vrcp.pop %v1414
      %v1417 = vmul.f32 %v1406, %v1415
      %v1418 = vmul.f32 %v1408, %v1416
      %v1419 = vpack.c.bf16 %v1417, %v1417
      %v1420 = vpack.c.bf16 %v1418, %v1418
      %1421 = vrot.lane.b32.xlu0 %v1024, 56
      %v1422 = vpop.permute.xlu0 %1421
      %v1424 = vsel %vm1029, %v1419, 0
      %v1427 = vsel %vm1154, %v1422, 0
      %1429 = vmatprep.subr.bf16.mxu0 0
      %1430 = vmatpush1.bf16.msra.mxu0 %v1427
      %1431 = vmatprep.subr.bf16.mxu0 0
      %1432 = vmatpush1.bf16.msra.mxu0 0
      %1433 = vmatprep.subr.bf16.mxu0 0
      %1434 = vmatpush1.bf16.msra.mxu0 0
      %1435 = vmatprep.subr.bf16.mxu0 0
      %1436 = vmatpush1.bf16.msra.mxu0 0
      %1437 = vmatprep.subr.bf16.mxu0 0
      %1438 = vmatpush1.bf16.msra.mxu0 0
      %1439 = vmatprep.subr.bf16.mxu0 0
      %1440 = vmatpush1.bf16.msra.mxu0 0
      %1441 = vmatprep.subr.bf16.mxu0 0
      %1442 = vmatpush1.bf16.msra.mxu0 0
      %1443 = vmatprep.subr.bf16.mxu0 0
      %1444 = vmatpush1.bf16.msra.mxu0 0
      %1445 = vmatprep.subr.bf16.mxu0 0
      %1446 = vmatpush1.bf16.msra.mxu0 0
      %1447 = vmatprep.subr.bf16.mxu0 0
      %1448 = vmatpush1.bf16.msra.mxu0 0
      %1449 = vmatprep.subr.bf16.mxu0 0
      %1450 = vmatpush1.bf16.msra.mxu0 0
      %1451 = vmatprep.subr.bf16.mxu0 0
      %1452 = vmatpush1.bf16.msra.mxu0 0
      %1453 = vmatprep.subr.bf16.mxu0 0
      %1454 = vmatpush1.bf16.msra.mxu0 0
      %1455 = vmatprep.subr.bf16.mxu0 0
      %1456 = vmatpush1.bf16.msra.mxu0 0
      %1457 = vmatprep.subr.bf16.mxu0 0
      %1458 = vmatpush1.bf16.msra.mxu0 0
      %1459 = vmatprep.subr.bf16.mxu0 0
      %1460 = vmatpush1.bf16.msra.mxu0 0
      %1461 = vmatprep.mubr.bf16.mxu0 0
      %1462 = vmatmul.mubr.bf16.gmra.mrb[0].mxu0 %v1424
      %v1463 = vpop.f32.mrb[0].mxu0
      %v1464 = vadd.f32 0.0, %v1463
      %v1465 = vpop.f32.mrb[0].mxu0
      %v1466 = vpop.f32.mrb[0].mxu0
      %v1467 = vpop.f32.mrb[0].mxu0
      %1468 = vdwg.mxu0
      %1469 = vrot.lane.b32.xlu0 %v1025, 56
      %v1470 = vpop.permute.xlu0 %1469
      %v1472 = vsel %vm1029, %v1420, 0
      %v1475 = vsel %vm1154, %v1470, 0
      %1477 = vmatprep.subr.bf16.mxu0 0
      %1478 = vmatpush1.bf16.msra.mxu0 %v1475
      %1479 = vmatprep.subr.bf16.mxu0 0
      %1480 = vmatpush1.bf16.msra.mxu0 0
      %1481 = vmatprep.subr.bf16.mxu0 0
      %1482 = vmatpush1.bf16.msra.mxu0 0
      %1483 = vmatprep.subr.bf16.mxu0 0
      %1484 = vmatpush1.bf16.msra.mxu0 0
      %1485 = vmatprep.subr.bf16.mxu0 0
      %1486 = vmatpush1.bf16.msra.mxu0 0
      %1487 = vmatprep.subr.bf16.mxu0 0
      %1488 = vmatpush1.bf16.msra.mxu0 0
      %1489 = vmatprep.subr.bf16.mxu0 0
      %1490 = vmatpush1.bf16.msra.mxu0 0
      %1491 = vmatprep.subr.bf16.mxu0 0
      %1492 = vmatpush1.bf16.msra.mxu0 0
      %1493 = vmatprep.subr.bf16.mxu0 0
      %1494 = vmatpush1.bf16.msra.mxu0 0
      %1495 = vmatprep.subr.bf16.mxu0 0
      %1496 = vmatpush1.bf16.msra.mxu0 0
      %1497 = vmatprep.subr.bf16.mxu0 0
      %1498 = vmatpush1.bf16.msra.mxu0 0
      %1499 = vmatprep.subr.bf16.mxu0 0
      %1500 = vmatpush1.bf16.msra.mxu0 0
      %1501 = vmatprep.subr.bf16.mxu0 0
      %1502 = vmatpush1.bf16.msra.mxu0 0
      %1503 = vmatprep.subr.bf16.mxu0 0
      %1504 = vmatpush1.bf16.msra.mxu0 0
      %1505 = vmatprep.subr.bf16.mxu0 0
      %1506 = vmatpush1.bf16.msra.mxu0 0
      %1507 = vmatprep.subr.bf16.mxu0 0
      %1508 = vmatpush1.bf16.msra.mxu0 0
      %1509 = vmatprep.mubr.bf16.mxu0 0
      %1510 = vmatmul.mubr.bf16.gmra.mrb[0].mxu0 %v1472
      %v1511 = vpop.f32.mrb[0].mxu0
      %v1512 = vadd.f32 0.0, %v1511
      %v1513 = vpop.f32.mrb[0].mxu0
      %v1514 = vpop.f32.mrb[0].mxu0
      %v1515 = vpop.f32.mrb[0].mxu0
      %1516 = vdwg.mxu0
      %v1517 = vpack.c.bf16 %v1512, %v1464
      %s1518 = scalar_lea.vmem %s818, 4
      %v1519 = vld [vmem:[%s1518] sm:$0xf]
      %v1521 = vsel %vm1029, %v1517, 0
      %v1524 = vsel %vm1154, %v1519, 0
      %1526 = vmatprep.subr.bf16.mxu0 0
      %1527 = vmatpush1.bf16.msra.mxu0 %v1524
      %1528 = vmatprep.subr.bf16.mxu0 0
      %1529 = vmatpush1.bf16.msra.mxu0 0
      %1530 = vmatprep.subr.bf16.mxu0 0
      %1531 = vmatpush1.bf16.msra.mxu0 0
      %1532 = vmatprep.subr.bf16.mxu0 0
      %1533 = vmatpush1.bf16.msra.mxu0 0
      %1534 = vmatprep.subr.bf16.mxu0 0
      %1535 = vmatpush1.bf16.msra.mxu0 0
      %1536 = vmatprep.subr.bf16.mxu0 0
      %1537 = vmatpush1.bf16.msra.mxu0 0
      %1538 = vmatprep.subr.bf16.mxu0 0
      %1539 = vmatpush1.bf16.msra.mxu0 0
      %1540 = vmatprep.subr.bf16.mxu0 0
      %1541 = vmatpush1.bf16.msra.mxu0 0
      %1542 = vmatprep.subr.bf16.mxu0 0
      %1543 = vmatpush1.bf16.msra.mxu0 0
      %1544 = vmatprep.subr.bf16.mxu0 0
      %1545 = vmatpush1.bf16.msra.mxu0 0
      %1546 = vmatprep.subr.bf16.mxu0 0
      %1547 = vmatpush1.bf16.msra.mxu0 0
      %1548 = vmatprep.subr.bf16.mxu0 0
      %1549 = vmatpush1.bf16.msra.mxu0 0
      %1550 = vmatprep.subr.bf16.mxu0 0
      %1551 = vmatpush1.bf16.msra.mxu0 0
      %1552 = vmatprep.subr.bf16.mxu0 0
      %1553 = vmatpush1.bf16.msra.mxu0 0
      %1554 = vmatprep.subr.bf16.mxu0 0
      %1555 = vmatpush1.bf16.msra.mxu0 0
      %1556 = vmatprep.subr.bf16.mxu0 0
      %1557 = vmatpush1.bf16.msra.mxu0 0
      %1558 = vmatprep.mubr.bf16.mxu0 0
      %1559 = vmatmul.mubr.bf16.gmra.mrb[0].mxu0 %v1521
      %v1560 = vpop.f32.mrb[0].mxu0
      %v1561 = vadd.f32 0.0, %v1560
      %v1562 = vpop.f32.mrb[0].mxu0
      %v1563 = vpop.f32.mrb[0].mxu0
      %v1564 = vadd.f32 0.0, %v1563
      %v1565 = vpop.f32.mrb[0].mxu0
      %1566 = vdwg.mxu0
      %v1567 = vadd.f32 %v1295, %v1561
      %v1568 = vadd.f32 %v1296, %v1564
      %1569 = vrot.lane.b32.xlu0 %v1024, 112
      %v1570 = vpop.permute.xlu0 %1569
      %1571 = vrot.lane.b32.xlu0 %v1024, 80
      %v1572 = vpop.permute.xlu0 %1571
      %v1574 = vsel %vm1029, %v1570, 0
      %v1577 = vsel %vm1029, %v1572, 0
      %1579 = vmatprep.subr.bf16.mxu0 0
      %1580 = vmatpush1.bf16.xpose.msra.mxu0 %v1577
      %1581 = vmatprep.subr.bf16.mxu0 0
      %1582 = vmatpush1.bf16.xpose.msra.mxu0 0
      %1583 = vmatprep.subr.bf16.mxu0 0
      %1584 = vmatpush1.bf16.xpose.msra.mxu0 0
      %1585 = vmatprep.subr.bf16.mxu0 0
      %1586 = vmatpush1.bf16.xpose.msra.mxu0 0
      %1587 = vmatprep.subr.bf16.mxu0 0
      %1588 = vmatpush1.bf16.xpose.msra.mxu0 0
      %1589 = vmatprep.subr.bf16.mxu0 0
      %1590 = vmatpush1.bf16.xpose.msra.mxu0 0
      %1591 = vmatprep.subr.bf16.mxu0 0
      %1592 = vmatpush1.bf16.xpose.msra.mxu0 0
      %1593 = vmatprep.subr.bf16.mxu0 0
      %1594 = vmatpush1.bf16.xpose.msra.mxu0 0
      %1595 = vmatprep.subr.bf16.mxu0 0
      %1596 = vmatpush1.bf16.xpose.msra.mxu0 0
      %1597 = vmatprep.subr.bf16.mxu0 0
      %1598 = vmatpush1.bf16.xpose.msra.mxu0 0
      %1599 = vmatprep.subr.bf16.mxu0 0
      %1600 = vmatpush1.bf16.xpose.msra.mxu0 0
      %1601 = vmatprep.subr.bf16.mxu0 0
      %1602 = vmatpush1.bf16.xpose.msra.mxu0 0
      %1603 = vmatprep.subr.bf16.mxu0 0
      %1604 = vmatpush1.bf16.xpose.msra.mxu0 0
      %1605 = vmatprep.subr.bf16.mxu0 0
      %1606 = vmatpush1.bf16.xpose.msra.mxu0 0
      %1607 = vmatprep.subr.bf16.mxu0 0
      %1608 = vmatpush1.bf16.xpose.msra.mxu0 0
      %1609 = vmatprep.subr.bf16.mxu0 0
      %1610 = vmatpush1.bf16.xpose.msra.mxu0 0
      %1611 = vmatprep.mubr.bf16.mxu0 0
      %1612 = vmatmul.mubr.bf16.gmra.mrb[0].mxu0 %v1574
      %v1613 = vpop.f32.mrb[0].mxu0
      %v1614 = vadd.f32 %v899, %v1613
      %v1615 = vpop.f32.mrb[0].mxu0
      %v1616 = vpop.f32.mrb[0].mxu0
      %v1617 = vpop.f32.mrb[0].mxu0
      %1618 = vdwg.mxu0
      %1619 = vrot.lane.b32.xlu0 %v1025, 112
      %v1620 = vpop.permute.xlu0 %1619
      %1621 = vrot.lane.b32.xlu0 %v1025, 80
      %v1622 = vpop.permute.xlu0 %1621
      %v1624 = vsel %vm1029, %v1620, 0
      %v1627 = vsel %vm1029, %v1622, 0
      %1629 = vmatprep.subr.bf16.mxu0 0
      %1630 = vmatpush1.bf16.xpose.msra.mxu0 %v1627
      %1631 = vmatprep.subr.bf16.mxu0 0
      %1632 = vmatpush1.bf16.xpose.msra.mxu0 0
      %1633 = vmatprep.subr.bf16.mxu0 0
      %1634 = vmatpush1.bf16.xpose.msra.mxu0 0
      %1635 = vmatprep.subr.bf16.mxu0 0
      %1636 = vmatpush1.bf16.xpose.msra.mxu0 0
      %1637 = vmatprep.subr.bf16.mxu0 0
      %1638 = vmatpush1.bf16.xpose.msra.mxu0 0
      %1639 = vmatprep.subr.bf16.mxu0 0
      %1640 = vmatpush1.bf16.xpose.msra.mxu0 0
      %1641 = vmatprep.subr.bf16.mxu0 0
      %1642 = vmatpush1.bf16.xpose.msra.mxu0 0
      %1643 = vmatprep.subr.bf16.mxu0 0
      %1644 = vmatpush1.bf16.xpose.msra.mxu0 0
      %1645 = vmatprep.subr.bf16.mxu0 0
      %1646 = vmatpush1.bf16.xpose.msra.mxu0 0
      %1647 = vmatprep.subr.bf16.mxu0 0
      %1648 = vmatpush1.bf16.xpose.msra.mxu0 0
      %1649 = vmatprep.subr.bf16.mxu0 0
      %1650 = vmatpush1.bf16.xpose.msra.mxu0 0
      %1651 = vmatprep.subr.bf16.mxu0 0
      %1652 = vmatpush1.bf16.xpose.msra.mxu0 0
      %1653 = vmatprep.subr.bf16.mxu0 0
      %1654 = vmatpush1.bf16.xpose.msra.mxu0 0
      %1655 = vmatprep.subr.bf16.mxu0 0
      %1656 = vmatpush1.bf16.xpose.msra.mxu0 0
      %1657 = vmatprep.subr.bf16.mxu0 0
      %1658 = vmatpush1.bf16.xpose.msra.mxu0 0
      %1659 = vmatprep.subr.bf16.mxu0 0
      %1660 = vmatpush1.bf16.xpose.msra.mxu0 0
      %1661 = vmatprep.mubr.bf16.mxu0 0
      %1662 = vmatmul.mubr.bf16.gmra.mrb[0].mxu0 %v1624
      %v1663 = vpop.f32.mrb[0].mxu0
      %v1664 = vadd.f32 %v903, %v1663
      %v1665 = vpop.f32.mrb[0].mxu0
      %v1666 = vpop.f32.mrb[0].mxu0
      %v1667 = vpop.f32.mrb[0].mxu0
      %1668 = vdwg.mxu0
      %v1669 = vsel %vm1029, %v1614, -inf
      %1670 = vmax.xlane.f32.xlu0 %v1669
      %v1671 = vpop.xlane.xlu0 %1670
      %v1672 = vsel %vm1029, %v1664, -inf
      %1673 = vmax.xlane.f32.xlu0 %v1672
      %v1674 = vpop.xlane.xlu0 %1673
      %v1675 = vsub.f32 %v1614, %v1671
      %v1676 = vsub.f32 %v1664, %v1674
      %v1677 = vmul.f32 %v1675, 1.442695
      %v1678 = vpow.pop %v1677
      %v1679 = vmul.f32 %v1676, 1.442695
      %v1680 = vpow.pop %v1679
      %v1681 = vsel %vm1029, %v1678, 0.0
      %1682 = vadd.xlane.f32.xlu0 %v1681
      %v1683 = vpop.xlane.xlu0 %1682
      %v1684 = vsel %vm1029, %v1680, 0.0
      %1685 = vadd.xlane.f32.xlu0 %v1684
      %v1686 = vpop.xlane.xlu0 %1685
      %v1687 = vrcp.pop %v1683
      %v1688 = vrcp.pop %v1686
      %v1689 = vmul.f32 %v1678, %v1687
      %v1690 = vmul.f32 %v1680, %v1688
      %v1691 = vpack.c.bf16 %v1689, %v1689
      %v1692 = vpack.c.bf16 %v1690, %v1690
      %1693 = vrot.lane.b32.xlu0 %v1024, 48
      %v1694 = vpop.permute.xlu0 %1693
      %v1696 = vsel %vm1029, %v1691, 0
      %v1699 = vsel %vm1154, %v1694, 0
      %1701 = vmatprep.subr.bf16.mxu0 0
      %1702 = vmatpush1.bf16.msra.mxu0 %v1699
      %1703 = vmatprep.subr.bf16.mxu0 0
      %1704 = vmatpush1.bf16.msra.mxu0 0
      %1705 = vmatprep.subr.bf16.mxu0 0
      %1706 = vmatpush1.bf16.msra.mxu0 0
      %1707 = vmatprep.subr.bf16.mxu0 0
      %1708 = vmatpush1.bf16.msra.mxu0 0
      %1709 = vmatprep.subr.bf16.mxu0 0
      %1710 = vmatpush1.bf16.msra.mxu0 0
      %1711 = vmatprep.subr.bf16.mxu0 0
      %1712 = vmatpush1.bf16.msra.mxu0 0
      %1713 = vmatprep.subr.bf16.mxu0 0
      %1714 = vmatpush1.bf16.msra.mxu0 0
      %1715 = vmatprep.subr.bf16.mxu0 0
      %1716 = vmatpush1.bf16.msra.mxu0 0
      %1717 = vmatprep.subr.bf16.mxu0 0
      %1718 = vmatpush1.bf16.msra.mxu0 0
      %1719 = vmatprep.subr.bf16.mxu0 0
      %1720 = vmatpush1.bf16.msra.mxu0 0
      %1721 = vmatprep.subr.bf16.mxu0 0
      %1722 = vmatpush1.bf16.msra.mxu0 0
      %1723 = vmatprep.subr.bf16.mxu0 0
      %1724 = vmatpush1.bf16.msra.mxu0 0
      %1725 = vmatprep.subr.bf16.mxu0 0
      %1726 = vmatpush1.bf16.msra.mxu0 0
      %1727 = vmatprep.subr.bf16.mxu0 0
      %1728 = vmatpush1.bf16.msra.mxu0 0
      %1729 = vmatprep.subr.bf16.mxu0 0
      %1730 = vmatpush1.bf16.msra.mxu0 0
      %1731 = vmatprep.subr.bf16.mxu0 0
      %1732 = vmatpush1.bf16.msra.mxu0 0
      %1733 = vmatprep.mubr.bf16.mxu0 0
      %1734 = vmatmul.mubr.bf16.gmra.mrb[0].mxu0 %v1696
      %v1735 = vpop.f32.mrb[0].mxu0
      %v1736 = vadd.f32 0.0, %v1735
      %v1737 = vpop.f32.mrb[0].mxu0
      %v1738 = vpop.f32.mrb[0].mxu0
      %v1739 = vpop.f32.mrb[0].mxu0
      %1740 = vdwg.mxu0
      %1741 = vrot.lane.b32.xlu0 %v1025, 48
      %v1742 = vpop.permute.xlu0 %1741
      %v1744 = vsel %vm1029, %v1692, 0
      %v1747 = vsel %vm1154, %v1742, 0
      %1749 = vmatprep.subr.bf16.mxu0 0
      %1750 = vmatpush1.bf16.msra.mxu0 %v1747
      %1751 = vmatprep.subr.bf16.mxu0 0
      %1752 = vmatpush1.bf16.msra.mxu0 0
      %1753 = vmatprep.subr.bf16.mxu0 0
      %1754 = vmatpush1.bf16.msra.mxu0 0
      %1755 = vmatprep.subr.bf16.mxu0 0
      %1756 = vmatpush1.bf16.msra.mxu0 0
      %1757 = vmatprep.subr.bf16.mxu0 0
      %1758 = vmatpush1.bf16.msra.mxu0 0
      %1759 = vmatprep.subr.bf16.mxu0 0
      %1760 = vmatpush1.bf16.msra.mxu0 0
      %1761 = vmatprep.subr.bf16.mxu0 0
      %1762 = vmatpush1.bf16.msra.mxu0 0
      %1763 = vmatprep.subr.bf16.mxu0 0
      %1764 = vmatpush1.bf16.msra.mxu0 0
      %1765 = vmatprep.subr.bf16.mxu0 0
      %1766 = vmatpush1.bf16.msra.mxu0 0
      %1767 = vmatprep.subr.bf16.mxu0 0
      %1768 = vmatpush1.bf16.msra.mxu0 0
      %1769 = vmatprep.subr.bf16.mxu0 0
      %1770 = vmatpush1.bf16.msra.mxu0 0
      %1771 = vmatprep.subr.bf16.mxu0 0
      %1772 = vmatpush1.bf16.msra.mxu0 0
      %1773 = vmatprep.subr.bf16.mxu0 0
      %1774 = vmatpush1.bf16.msra.mxu0 0
      %1775 = vmatprep.subr.bf16.mxu0 0
      %1776 = vmatpush1.bf16.msra.mxu0 0
      %1777 = vmatprep.subr.bf16.mxu0 0
      %1778 = vmatpush1.bf16.msra.mxu0 0
      %1779 = vmatprep.subr.bf16.mxu0 0
      %1780 = vmatpush1.bf16.msra.mxu0 0
      %1781 = vmatprep.mubr.bf16.mxu0 0
      %1782 = vmatmul.mubr.bf16.gmra.mrb[0].mxu0 %v1744
      %v1783 = vpop.f32.mrb[0].mxu0
      %v1784 = vadd.f32 0.0, %v1783
      %v1785 = vpop.f32.mrb[0].mxu0
      %v1786 = vpop.f32.mrb[0].mxu0
      %v1787 = vpop.f32.mrb[0].mxu0
      %1788 = vdwg.mxu0
      %v1789 = vpack.c.bf16 %v1784, %v1736
      %s1790 = scalar_lea.vmem %s818, 8
      %v1791 = vld [vmem:[%s1790] sm:$0xf]
      %v1793 = vsel %vm1029, %v1789, 0
      %v1796 = vsel %vm1154, %v1791, 0
      %1798 = vmatprep.subr.bf16.mxu0 0
      %1799 = vmatpush1.bf16.msra.mxu0 %v1796
      %1800 = vmatprep.subr.bf16.mxu0 0
      %1801 = vmatpush1.bf16.msra.mxu0 0
      %1802 = vmatprep.subr.bf16.mxu0 0
      %1803 = vmatpush1.bf16.msra.mxu0 0
      %1804 = vmatprep.subr.bf16.mxu0 0
      %1805 = vmatpush1.bf16.msra.mxu0 0
      %1806 = vmatprep.subr.bf16.mxu0 0
      %1807 = vmatpush1.bf16.msra.mxu0 0
      %1808 = vmatprep.subr.bf16.mxu0 0
      %1809 = vmatpush1.bf16.msra.mxu0 0
      %1810 = vmatprep.subr.bf16.mxu0 0
      %1811 = vmatpush1.bf16.msra.mxu0 0
      %1812 = vmatprep.subr.bf16.mxu0 0
      %1813 = vmatpush1.bf16.msra.mxu0 0
      %1814 = vmatprep.subr.bf16.mxu0 0
      %1815 = vmatpush1.bf16.msra.mxu0 0
      %1816 = vmatprep.subr.bf16.mxu0 0
      %1817 = vmatpush1.bf16.msra.mxu0 0
      %1818 = vmatprep.subr.bf16.mxu0 0
      %1819 = vmatpush1.bf16.msra.mxu0 0
      %1820 = vmatprep.subr.bf16.mxu0 0
      %1821 = vmatpush1.bf16.msra.mxu0 0
      %1822 = vmatprep.subr.bf16.mxu0 0
      %1823 = vmatpush1.bf16.msra.mxu0 0
      %1824 = vmatprep.subr.bf16.mxu0 0
      %1825 = vmatpush1.bf16.msra.mxu0 0
      %1826 = vmatprep.subr.bf16.mxu0 0
      %1827 = vmatpush1.bf16.msra.mxu0 0
      %1828 = vmatprep.subr.bf16.mxu0 0
      %1829 = vmatpush1.bf16.msra.mxu0 0
      %1830 = vmatprep.mubr.bf16.mxu0 0
      %1831 = vmatmul.mubr.bf16.gmra.mrb[0].mxu0 %v1793
      %v1832 = vpop.f32.mrb[0].mxu0
      %v1833 = vadd.f32 0.0, %v1832
      %v1834 = vpop.f32.mrb[0].mxu0
      %v1835 = vpop.f32.mrb[0].mxu0
      %v1836 = vadd.f32 0.0, %v1835
      %v1837 = vpop.f32.mrb[0].mxu0
      %1838 = vdwg.mxu0
      %v1839 = vadd.f32 %v1567, %v1833
      %v1840 = vadd.f32 %v1568, %v1836
      %1841 = vrot.lane.b32.xlu0 %v1024, 104
      %v1842 = vpop.permute.xlu0 %1841
      %1843 = vrot.lane.b32.xlu0 %v1024, 72
      %v1844 = vpop.permute.xlu0 %1843
      %v1846 = vsel %vm1029, %v1842, 0
      %v1849 = vsel %vm1029, %v1844, 0
      %1851 = vmatprep.subr.bf16.mxu0 0
      %1852 = vmatpush1.bf16.xpose.msra.mxu0 %v1849
      %1853 = vmatprep.subr.bf16.mxu0 0
      %1854 = vmatpush1.bf16.xpose.msra.mxu0 0
      %1855 = vmatprep.subr.bf16.mxu0 0
      %1856 = vmatpush1.bf16.xpose.msra.mxu0 0
      %1857 = vmatprep.subr.bf16.mxu0 0
      %1858 = vmatpush1.bf16.xpose.msra.mxu0 0
      %1859 = vmatprep.subr.bf16.mxu0 0
      %1860 = vmatpush1.bf16.xpose.msra.mxu0 0
      %1861 = vmatprep.subr.bf16.mxu0 0
      %1862 = vmatpush1.bf16.xpose.msra.mxu0 0
      %1863 = vmatprep.subr.bf16.mxu0 0
      %1864 = vmatpush1.bf16.xpose.msra.mxu0 0
      %1865 = vmatprep.subr.bf16.mxu0 0
      %1866 = vmatpush1.bf16.xpose.msra.mxu0 0
      %1867 = vmatprep.subr.bf16.mxu0 0
      %1868 = vmatpush1.bf16.xpose.msra.mxu0 0
      %1869 = vmatprep.subr.bf16.mxu0 0
      %1870 = vmatpush1.bf16.xpose.msra.mxu0 0
      %1871 = vmatprep.subr.bf16.mxu0 0
      %1872 = vmatpush1.bf16.xpose.msra.mxu0 0
      %1873 = vmatprep.subr.bf16.mxu0 0
      %1874 = vmatpush1.bf16.xpose.msra.mxu0 0
      %1875 = vmatprep.subr.bf16.mxu0 0
      %1876 = vmatpush1.bf16.xpose.msra.mxu0 0
      %1877 = vmatprep.subr.bf16.mxu0 0
      %1878 = vmatpush1.bf16.xpose.msra.mxu0 0
      %1879 = vmatprep.subr.bf16.mxu0 0
      %1880 = vmatpush1.bf16.xpose.msra.mxu0 0
      %1881 = vmatprep.subr.bf16.mxu0 0
      %1882 = vmatpush1.bf16.xpose.msra.mxu0 0
      %1883 = vmatprep.mubr.bf16.mxu0 0
      %1884 = vmatmul.mubr.bf16.gmra.mrb[0].mxu0 %v1846
      %v1885 = vpop.f32.mrb[0].mxu0
      %v1886 = vadd.f32 %v899, %v1885
      %v1887 = vpop.f32.mrb[0].mxu0
      %v1888 = vpop.f32.mrb[0].mxu0
      %v1889 = vpop.f32.mrb[0].mxu0
      %1890 = vdwg.mxu0
      %1891 = vrot.lane.b32.xlu0 %v1025, 104
      %v1892 = vpop.permute.xlu0 %1891
      %1893 = vrot.lane.b32.xlu0 %v1025, 72
      %v1894 = vpop.permute.xlu0 %1893
      %v1896 = vsel %vm1029, %v1892, 0
      %v1899 = vsel %vm1029, %v1894, 0
      %1901 = vmatprep.subr.bf16.mxu0 0
      %1902 = vmatpush1.bf16.xpose.msra.mxu0 %v1899
      %1903 = vmatprep.subr.bf16.mxu0 0
      %1904 = vmatpush1.bf16.xpose.msra.mxu0 0
      %1905 = vmatprep.subr.bf16.mxu0 0
      %1906 = vmatpush1.bf16.xpose.msra.mxu0 0
      %1907 = vmatprep.subr.bf16.mxu0 0
      %1908 = vmatpush1.bf16.xpose.msra.mxu0 0
      %1909 = vmatprep.subr.bf16.mxu0 0
      %1910 = vmatpush1.bf16.xpose.msra.mxu0 0
      %1911 = vmatprep.subr.bf16.mxu0 0
      %1912 = vmatpush1.bf16.xpose.msra.mxu0 0
      %1913 = vmatprep.subr.bf16.mxu0 0
      %1914 = vmatpush1.bf16.xpose.msra.mxu0 0
      %1915 = vmatprep.subr.bf16.mxu0 0
      %1916 = vmatpush1.bf16.xpose.msra.mxu0 0
      %1917 = vmatprep.subr.bf16.mxu0 0
      %1918 = vmatpush1.bf16.xpose.msra.mxu0 0
      %1919 = vmatprep.subr.bf16.mxu0 0
      %1920 = vmatpush1.bf16.xpose.msra.mxu0 0
      %1921 = vmatprep.subr.bf16.mxu0 0
      %1922 = vmatpush1.bf16.xpose.msra.mxu0 0
      %1923 = vmatprep.subr.bf16.mxu0 0
      %1924 = vmatpush1.bf16.xpose.msra.mxu0 0
      %1925 = vmatprep.subr.bf16.mxu0 0
      %1926 = vmatpush1.bf16.xpose.msra.mxu0 0
      %1927 = vmatprep.subr.bf16.mxu0 0
      %1928 = vmatpush1.bf16.xpose.msra.mxu0 0
      %1929 = vmatprep.subr.bf16.mxu0 0
      %1930 = vmatpush1.bf16.xpose.msra.mxu0 0
      %1931 = vmatprep.subr.bf16.mxu0 0
      %1932 = vmatpush1.bf16.xpose.msra.mxu0 0
      %1933 = vmatprep.mubr.bf16.mxu0 0
      %1934 = vmatmul.mubr.bf16.gmra.mrb[0].mxu0 %v1896
      %v1935 = vpop.f32.mrb[0].mxu0
      %v1936 = vadd.f32 %v903, %v1935
      %v1937 = vpop.f32.mrb[0].mxu0
      %v1938 = vpop.f32.mrb[0].mxu0
      %v1939 = vpop.f32.mrb[0].mxu0
      %1940 = vdwg.mxu0
      %v1941 = vsel %vm1029, %v1886, -inf
      %1942 = vmax.xlane.f32.xlu0 %v1941
      %v1943 = vpop.xlane.xlu0 %1942
      %v1944 = vsel %vm1029, %v1936, -inf
      %1945 = vmax.xlane.f32.xlu0 %v1944
      %v1946 = vpop.xlane.xlu0 %1945
      %v1947 = vsub.f32 %v1886, %v1943
      %v1948 = vsub.f32 %v1936, %v1946
      %v1949 = vmul.f32 %v1947, 1.442695
      %v1950 = vpow.pop %v1949
      %v1951 = vmul.f32 %v1948, 1.442695
      %v1952 = vpow.pop %v1951
      %v1953 = vsel %vm1029, %v1950, 0.0
      %1954 = vadd.xlane.f32.xlu0 %v1953
      %v1955 = vpop.xlane.xlu0 %1954
      %v1956 = vsel %vm1029, %v1952, 0.0
      %1957 = vadd.xlane.f32.xlu0 %v1956
      %v1958 = vpop.xlane.xlu0 %1957
      %v1959 = vrcp.pop %v1955
      %v1960 = vrcp.pop %v1958
      %v1961 = vmul.f32 %v1950, %v1959
      %v1962 = vmul.f32 %v1952, %v1960
      %v1963 = vpack.c.bf16 %v1961, %v1961
      %v1964 = vpack.c.bf16 %v1962, %v1962
      %1965 = vrot.lane.b32.xlu0 %v1024, 40
      %v1966 = vpop.permute.xlu0 %1965
      %v1968 = vsel %vm1029, %v1963, 0
      %v1971 = vsel %vm1154, %v1966, 0
      %1973 = vmatprep.subr.bf16.mxu0 0
      %1974 = vmatpush1.bf16.msra.mxu0 %v1971
      %1975 = vmatprep.subr.bf16.mxu0 0
      %1976 = vmatpush1.bf16.msra.mxu0 0
      %1977 = vmatprep.subr.bf16.mxu0 0
      %1978 = vmatpush1.bf16.msra.mxu0 0
      %1979 = vmatprep.subr.bf16.mxu0 0
      %1980 = vmatpush1.bf16.msra.mxu0 0
      %1981 = vmatprep.subr.bf16.mxu0 0
      %1982 = vmatpush1.bf16.msra.mxu0 0
      %1983 = vmatprep.subr.bf16.mxu0 0
      %1984 = vmatpush1.bf16.msra.mxu0 0
      %1985 = vmatprep.subr.bf16.mxu0 0
      %1986 = vmatpush1.bf16.msra.mxu0 0
      %1987 = vmatprep.subr.bf16.mxu0 0
      %1988 = vmatpush1.bf16.msra.mxu0 0
      %1989 = vmatprep.subr.bf16.mxu0 0
      %1990 = vmatpush1.bf16.msra.mxu0 0
      %1991 = vmatprep.subr.bf16.mxu0 0
      %1992 = vmatpush1.bf16.msra.mxu0 0
      %1993 = vmatprep.subr.bf16.mxu0 0
      %1994 = vmatpush1.bf16.msra.mxu0 0
      %1995 = vmatprep.subr.bf16.mxu0 0
      %1996 = vmatpush1.bf16.msra.mxu0 0
      %1997 = vmatprep.subr.bf16.mxu0 0
      %1998 = vmatpush1.bf16.msra.mxu0 0
      %1999 = vmatprep.subr.bf16.mxu0 0
      %2000 = vmatpush1.bf16.msra.mxu0 0
      %2001 = vmatprep.subr.bf16.mxu0 0
      %2002 = vmatpush1.bf16.msra.mxu0 0
      %2003 = vmatprep.subr.bf16.mxu0 0
      %2004 = vmatpush1.bf16.msra.mxu0 0
      %2005 = vmatprep.mubr.bf16.mxu0 0
      %2006 = vmatmul.mubr.bf16.gmra.mrb[0].mxu0 %v1968
      %v2007 = vpop.f32.mrb[0].mxu0
      %v2008 = vadd.f32 0.0, %v2007
      %v2009 = vpop.f32.mrb[0].mxu0
      %v2010 = vpop.f32.mrb[0].mxu0
      %v2011 = vpop.f32.mrb[0].mxu0
      %2012 = vdwg.mxu0
      %2013 = vrot.lane.b32.xlu0 %v1025, 40
      %v2014 = vpop.permute.xlu0 %2013
      %v2016 = vsel %vm1029, %v1964, 0
      %v2019 = vsel %vm1154, %v2014, 0
      %2021 = vmatprep.subr.bf16.mxu0 0
      %2022 = vmatpush1.bf16.msra.mxu0 %v2019
      %2023 = vmatprep.subr.bf16.mxu0 0
      %2024 = vmatpush1.bf16.msra.mxu0 0
      %2025 = vmatprep.subr.bf16.mxu0 0
      %2026 = vmatpush1.bf16.msra.mxu0 0
      %2027 = vmatprep.subr.bf16.mxu0 0
      %2028 = vmatpush1.bf16.msra.mxu0 0
      %2029 = vmatprep.subr.bf16.mxu0 0
      %2030 = vmatpush1.bf16.msra.mxu0 0
      %2031 = vmatprep.subr.bf16.mxu0 0
      %2032 = vmatpush1.bf16.msra.mxu0 0
      %2033 = vmatprep.subr.bf16.mxu0 0
      %2034 = vmatpush1.bf16.msra.mxu0 0
      %2035 = vmatprep.subr.bf16.mxu0 0
      %2036 = vmatpush1.bf16.msra.mxu0 0
      %2037 = vmatprep.subr.bf16.mxu0 0
      %2038 = vmatpush1.bf16.msra.mxu0 0
      %2039 = vmatprep.subr.bf16.mxu0 0
      %2040 = vmatpush1.bf16.msra.mxu0 0
      %2041 = vmatprep.subr.bf16.mxu0 0
      %2042 = vmatpush1.bf16.msra.mxu0 0
      %2043 = vmatprep.subr.bf16.mxu0 0
      %2044 = vmatpush1.bf16.msra.mxu0 0
      %2045 = vmatprep.subr.bf16.mxu0 0
      %2046 = vmatpush1.bf16.msra.mxu0 0
      %2047 = vmatprep.subr.bf16.mxu0 0
      %2048 = vmatpush1.bf16.msra.mxu0 0
      %2049 = vmatprep.subr.bf16.mxu0 0
      %2050 = vmatpush1.bf16.msra.mxu0 0
      %2051 = vmatprep.subr.bf16.mxu0 0
      %2052 = vmatpush1.bf16.msra.mxu0 0
      %2053 = vmatprep.mubr.bf16.mxu0 0
      %2054 = vmatmul.mubr.bf16.gmra.mrb[0].mxu0 %v2016
      %v2055 = vpop.f32.mrb[0].mxu0
      %v2056 = vadd.f32 0.0, %v2055
      %v2057 = vpop.f32.mrb[0].mxu0
      %v2058 = vpop.f32.mrb[0].mxu0
      %v2059 = vpop.f32.mrb[0].mxu0
      %2060 = vdwg.mxu0
      %v2061 = vpack.c.bf16 %v2056, %v2008
      %s2062 = scalar_lea.vmem %s818, 12
      %v2063 = vld [vmem:[%s2062] sm:$0xf]
      %v2065 = vsel %vm1029, %v2061, 0
      %v2068 = vsel %vm1154, %v2063, 0
      %2070 = vmatprep.subr.bf16.mxu0 0
      %2071 = vmatpush1.bf16.msra.mxu0 %v2068
      %2072 = vmatprep.subr.bf16.mxu0 0
      %2073 = vmatpush1.bf16.msra.mxu0 0
      %2074 = vmatprep.subr.bf16.mxu0 0
      %2075 = vmatpush1.bf16.msra.mxu0 0
      %2076 = vmatprep.subr.bf16.mxu0 0
      %2077 = vmatpush1.bf16.msra.mxu0 0
      %2078 = vmatprep.subr.bf16.mxu0 0
      %2079 = vmatpush1.bf16.msra.mxu0 0
      %2080 = vmatprep.subr.bf16.mxu0 0
      %2081 = vmatpush1.bf16.msra.mxu0 0
      %2082 = vmatprep.subr.bf16.mxu0 0
      %2083 = vmatpush1.bf16.msra.mxu0 0
      %2084 = vmatprep.subr.bf16.mxu0 0
      %2085 = vmatpush1.bf16.msra.mxu0 0
      %2086 = vmatprep.subr.bf16.mxu0 0
      %2087 = vmatpush1.bf16.msra.mxu0 0
      %2088 = vmatprep.subr.bf16.mxu0 0
      %2089 = vmatpush1.bf16.msra.mxu0 0
      %2090 = vmatprep.subr.bf16.mxu0 0
      %2091 = vmatpush1.bf16.msra.mxu0 0
      %2092 = vmatprep.subr.bf16.mxu0 0
      %2093 = vmatpush1.bf16.msra.mxu0 0
      %2094 = vmatprep.subr.bf16.mxu0 0
      %2095 = vmatpush1.bf16.msra.mxu0 0
      %2096 = vmatprep.subr.bf16.mxu0 0
      %2097 = vmatpush1.bf16.msra.mxu0 0
      %2098 = vmatprep.subr.bf16.mxu0 0
      %2099 = vmatpush1.bf16.msra.mxu0 0
      %2100 = vmatprep.subr.bf16.mxu0 0
      %2101 = vmatpush1.bf16.msra.mxu0 0
      %2102 = vmatprep.mubr.bf16.mxu0 0
      %2103 = vmatmul.mubr.bf16.gmra.mrb[0].mxu0 %v2065
      %v2104 = vpop.f32.mrb[0].mxu0
      %v2105 = vadd.f32 0.0, %v2104
      %v2106 = vpop.f32.mrb[0].mxu0
      %v2107 = vpop.f32.mrb[0].mxu0
      %v2108 = vadd.f32 0.0, %v2107
      %v2109 = vpop.f32.mrb[0].mxu0
      %2110 = vdwg.mxu0
      %v2111 = vadd.f32 %v1839, %v2105
      %v2112 = vadd.f32 %v1840, %v2108
      %v2113 = vadd.f32 %v952, %v2111
      %v2114 = vadd.f32 %v953, %v2112
      %v2115 = vld [vmem:[%s822] sm:$0x1]
      %v2117 = vlaneseq
      %v2118 = vshrl.u32 %v2117, 7
      %v2119 = vsub.s32 0, %v2118
      %v2120 = vrot.slane %v2115, %v2119
      %v2122 = vadd.f32 %v2113, %v2120
      %v2123 = vadd.f32 %v2114, %v2120
      %v2124 = vld [vmem:[%s826] sm:$0x1]
      %v2125 = vld [vmem:[%s830] sm:$0x1]
      %v2126 = vsel %vm910, %v2122, 0.0
      %2127 = vadd.xlane.f32.xlu0 %v2126
      %v2128 = vpop.xlane.xlu0 %2127
      %v2129 = vsel %vm910, %v2123, 0.0
      %2130 = vadd.xlane.f32.xlu0 %v2129
      %v2131 = vpop.xlane.xlu0 %2130
      %v2132 = vmul.f32 %v2128, %v917
      %v2133 = vmul.f32 %v2131, %v917
      %v2134 = vsub.f32 %v2122, %v2132
      %v2135 = vsub.f32 %v2123, %v2133
      %v2136 = vmul.f32 %v2134, %v2134
      %v2137 = vmul.f32 %v2135, %v2135
      %v2138 = vsel %vm910, %v2136, 0.0
      %2139 = vadd.xlane.f32.xlu0 %v2138
      %v2140 = vpop.xlane.xlu0 %2139
      %v2141 = vsel %vm910, %v2137, 0.0
      %2142 = vadd.xlane.f32.xlu0 %v2141
      %v2143 = vpop.xlane.xlu0 %2142
      %v2144 = vmul.f32 %v2140, %v917
      %v2145 = vmul.f32 %v2143, %v917
      %v2146 = vadd.f32 %v2144, 1e-12
      %v2147 = vadd.f32 %v2145, 1e-12
      %v2148 = vrsqrt.pop %v2146
      %v2149 = vrsqrt.pop %v2147
      %v2150 = vmul.f32 %v2134, %v2148
      %v2151 = vmul.f32 %v2135, %v2149
      %v2153 = vlaneseq
      %v2154 = vshrl.u32 %v2153, 7
      %v2155 = vsub.s32 0, %v2154
      %v2156 = vrot.slane %v2124, %v2155
      %v2158 = vmul.f32 %v2150, %v2156
      %v2159 = vmul.f32 %v2151, %v2156
      %v2161 = vlaneseq
      %v2162 = vshrl.u32 %v2161, 7
      %v2163 = vsub.s32 0, %v2162
      %v2164 = vrot.slane %v2125, %v2163
      %v2166 = vadd.f32 %v2158, %v2164
      %v2167 = vadd.f32 %v2159, %v2164
      %v2168 = vld [vmem:[%s835] sm:$0xf]
      %v2169 = vld [vmem:[%s835 + $0x4] sm:$0xf]
      %v2170 = vld [vmem:[%s835 + $0x8] sm:$0xf]
      %v2171 = vld [vmem:[%s835 + $0xc] sm:$0xf]
      %v2172 = vld [vmem:[%s839] sm:$0x1]
      %v2173 = vpack.c.bf16 %v2167, %v2166
      %v2178 = vunpack.c.l.b16 %v2168
      %v2179 = vunpack.c.l.b16 %v2169
      %v2180 = vunpack.c.l.b16 %v2170
      %v2181 = vunpack.c.l.b16 %v2171
      %v2182 = vpack.c.b16 %v2179, %v2178
      %v2183 = vpack.c.b16 %v2181, %v2180
      %v2187 = vsel %vm910, %v2173, 0
      %2189 = vmatprep.subr.bf16.mxu0 0
      %2190 = vmatpush1.bf16.msra.mxu0 %v2182
      %2191 = vmatprep.subr.bf16.mxu0 0
      %2192 = vmatpush1.bf16.msra.mxu0 %v2183
      %2193 = vmatprep.subr.bf16.mxu0 0
      %2194 = vmatpush1.bf16.msra.mxu0 0
      %2195 = vmatprep.subr.bf16.mxu0 0
      %2196 = vmatpush1.bf16.msra.mxu0 0
      %2197 = vmatprep.subr.bf16.mxu0 0
      %2198 = vmatpush1.bf16.msra.mxu0 0
      %2199 = vmatprep.subr.bf16.mxu0 0
      %2200 = vmatpush1.bf16.msra.mxu0 0
      %2201 = vmatprep.subr.bf16.mxu0 0
      %2202 = vmatpush1.bf16.msra.mxu0 0
      %2203 = vmatprep.subr.bf16.mxu0 0
      %2204 = vmatpush1.bf16.msra.mxu0 0
      %2205 = vmatprep.subr.bf16.mxu0 0
      %2206 = vmatpush1.bf16.msra.mxu0 0
      %2207 = vmatprep.subr.bf16.mxu0 0
      %2208 = vmatpush1.bf16.msra.mxu0 0
      %2209 = vmatprep.subr.bf16.mxu0 0
      %2210 = vmatpush1.bf16.msra.mxu0 0
      %2211 = vmatprep.subr.bf16.mxu0 0
      %2212 = vmatpush1.bf16.msra.mxu0 0
      %2213 = vmatprep.subr.bf16.mxu0 0
      %2214 = vmatpush1.bf16.msra.mxu0 0
      %2215 = vmatprep.subr.bf16.mxu0 0
      %2216 = vmatpush1.bf16.msra.mxu0 0
      %2217 = vmatprep.subr.bf16.mxu0 0
      %2218 = vmatpush1.bf16.msra.mxu0 0
      %2219 = vmatprep.subr.bf16.mxu0 0
      %2220 = vmatpush1.bf16.msra.mxu0 0
      %2221 = vmatprep.mubr.bf16.mxu0 0
      %2222 = vmatmul.mubr.bf16.gmra.mrb[0].mxu0 %v2187
      %v2223 = vpop.f32.mrb[0].mxu0
      %v2224 = vadd.f32 0.0, %v2223
      %v2225 = vpop.f32.mrb[0].mxu0
      %v2226 = vpop.f32.mrb[0].mxu0
      %v2227 = vadd.f32 0.0, %v2226
      %v2228 = vpop.f32.mrb[0].mxu0
      %2229 = vdwg.mxu0
      %v2231 = vlaneseq
      %v2232 = vshrl.u32 %v2231, 7
      %v2233 = vsub.s32 0, %v2232
      %v2234 = vrot.slane %v2172, %v2233
      %v2236 = vadd.f32 %v2224, %v2234
      %v2237 = vadd.f32 %v2227, %v2234
      %v2238 = vmul.f32 %v2236, 0.5
      %v2239 = vmul.f32 %v2237, 0.5
      %v2240 = vmul.f32 %v2236, 0.044715
      %v2241 = vmul.f32 %v2237, 0.044715
      %v2242 = vmul.f32 %v2240, %v2236
      %v2243 = vmul.f32 %v2241, %v2237
      %v2244 = vmul.f32 %v2242, %v2236
      %v2245 = vmul.f32 %v2243, %v2237
      %v2246 = vadd.f32 %v2236, %v2244
      %v2247 = vadd.f32 %v2237, %v2245
      %v2248 = vmul.f32 %v2246, 0.7978846
      %v2249 = vmul.f32 %v2247, 0.7978846
      %v2250 = vtanh.pop %v2248
      %v2251 = vtanh.pop %v2249
      %v2252 = vadd.f32 %v2250, 1.0
      %v2253 = vadd.f32 %v2251, 1.0
      %v2254 = vmul.f32 %v2238, %v2252
      %v2255 = vmul.f32 %v2239, %v2253
      %v2256 = vld [vmem:[%s844] sm:$0xf]
      %v2257 = vld [vmem:[%s844 + $0x4] sm:$0xf]
      %v2258 = vld [vmem:[%s844 + $0x8] sm:$0xf]
      %v2259 = vld [vmem:[%s844 + $0xc] sm:$0xf]
      %v2260 = vld [vmem:[%s844 + $0x10] sm:$0xf]
      %v2261 = vld [vmem:[%s844 + $0x14] sm:$0xf]
      %v2262 = vld [vmem:[%s844 + $0x18] sm:$0xf]
      %v2263 = vld [vmem:[%s844 + $0x1c] sm:$0xf]
      %v2264 = vld [vmem:[%s848] sm:$0x1]
      %v2265 = vpack.c.bf16 %v2255, %v2254
      %v2274 = vunpack.c.l.b16 %v2256
      %v2275 = vunpack.c.l.b16 %v2257
      %v2276 = vunpack.c.l.b16 %v2258
      %v2277 = vunpack.c.l.b16 %v2259
      %v2278 = vunpack.c.l.b16 %v2260
      %v2279 = vunpack.c.l.b16 %v2261
      %v2280 = vunpack.c.l.b16 %v2262
      %v2281 = vunpack.c.l.b16 %v2263
      %v2282 = vpack.c.b16 %v2275, %v2274
      %v2283 = vpack.c.b16 %v2277, %v2276
      %v2284 = vpack.c.b16 %v2279, %v2278
      %v2285 = vpack.c.b16 %v2281, %v2280
      %vm2290 = vcmask 523264
      %v2292 = vsel %vm2290, %v2265, 0
      %2294 = vmatprep.subr.bf16.mxu0 0
      %2295 = vmatpush1.bf16.msra.mxu0 %v2282
      %2296 = vmatprep.subr.bf16.mxu0 0
      %2297 = vmatpush1.bf16.msra.mxu0 %v2283
      %2298 = vmatprep.subr.bf16.mxu0 0
      %2299 = vmatpush1.bf16.msra.mxu0 %v2284
      %2300 = vmatprep.subr.bf16.mxu0 0
      %2301 = vmatpush1.bf16.msra.mxu0 %v2285
      %2302 = vmatprep.subr.bf16.mxu0 0
      %2303 = vmatpush1.bf16.msra.mxu0 0
      %2304 = vmatprep.subr.bf16.mxu0 0
      %2305 = vmatpush1.bf16.msra.mxu0 0
      %2306 = vmatprep.subr.bf16.mxu0 0
      %2307 = vmatpush1.bf16.msra.mxu0 0
      %2308 = vmatprep.subr.bf16.mxu0 0
      %2309 = vmatpush1.bf16.msra.mxu0 0
      %2310 = vmatprep.subr.bf16.mxu0 0
      %2311 = vmatpush1.bf16.msra.mxu0 0
      %2312 = vmatprep.subr.bf16.mxu0 0
      %2313 = vmatpush1.bf16.msra.mxu0 0
      %2314 = vmatprep.subr.bf16.mxu0 0
      %2315 = vmatpush1.bf16.msra.mxu0 0
      %2316 = vmatprep.subr.bf16.mxu0 0
      %2317 = vmatpush1.bf16.msra.mxu0 0
      %2318 = vmatprep.subr.bf16.mxu0 0
      %2319 = vmatpush1.bf16.msra.mxu0 0
      %2320 = vmatprep.subr.bf16.mxu0 0
      %2321 = vmatpush1.bf16.msra.mxu0 0
      %2322 = vmatprep.subr.bf16.mxu0 0
      %2323 = vmatpush1.bf16.msra.mxu0 0
      %2324 = vmatprep.subr.bf16.mxu0 0
      %2325 = vmatpush1.bf16.msra.mxu0 0
      %2326 = vmatprep.mubr.bf16.mxu0 0
      %2327 = vmatmul.mubr.bf16.gmra.mrb[0].mxu0 %v2292
      %v2328 = vpop.f32.mrb[0].mxu0
      %v2329 = vadd.f32 0.0, %v2328
      %v2330 = vpop.f32.mrb[0].mxu0
      %v2331 = vpop.f32.mrb[0].mxu0
      %v2332 = vadd.f32 0.0, %v2331
      %v2333 = vpop.f32.mrb[0].mxu0
      %2334 = vdwg.mxu0
      %v2336 = vlaneseq
      %v2337 = vshrl.u32 %v2336, 7
      %v2338 = vsub.s32 0, %v2337
      %v2339 = vrot.slane %v2264, %v2338
      %v2341 = vadd.f32 %v2329, %v2339
      %v2342 = vadd.f32 %v2332, %v2339
      %v2343 = vadd.f32 %v2166, %v2341
      %v2344 = vadd.f32 %v2167, %v2342
      %v2345 = vld [vmem:[%s852] sm:$0x1]
      %v2346 = vld [vmem:[%s856] sm:$0x1]
      %v2347 = vsel %vm910, %v2343, 0.0
      %2348 = vadd.xlane.f32.xlu0 %v2347
      %v2349 = vpop.xlane.xlu0 %2348
      %v2350 = vsel %vm910, %v2344, 0.0
      %2351 = vadd.xlane.f32.xlu0 %v2350
      %v2352 = vpop.xlane.xlu0 %2351
      %v2353 = vmul.f32 %v2349, %v917
      %v2354 = vmul.f32 %v2352, %v917
      %v2355 = vsub.f32 %v2343, %v2353
      %v2356 = vsub.f32 %v2344, %v2354
      %v2357 = vmul.f32 %v2355, %v2355
      %v2358 = vmul.f32 %v2356, %v2356
      %v2359 = vsel %vm910, %v2357, 0.0
      %2360 = vadd.xlane.f32.xlu0 %v2359
      %v2361 = vpop.xlane.xlu0 %2360
      %v2362 = vsel %vm910, %v2358, 0.0
      %2363 = vadd.xlane.f32.xlu0 %v2362
      %v2364 = vpop.xlane.xlu0 %2363
      %v2365 = vmul.f32 %v2361, %v917
      %v2366 = vmul.f32 %v2364, %v917
      %v2367 = vadd.f32 %v2365, 1e-12
      %v2368 = vadd.f32 %v2366, 1e-12
      %v2369 = vrsqrt.pop %v2367
      %v2370 = vrsqrt.pop %v2368
      %v2371 = vmul.f32 %v2355, %v2369
      %v2372 = vmul.f32 %v2356, %v2370
      %v2374 = vlaneseq
      %v2375 = vshrl.u32 %v2374, 7
      %v2376 = vsub.s32 0, %v2375
      %v2377 = vrot.slane %v2345, %v2376
      %v2379 = vmul.f32 %v2371, %v2377
      %v2380 = vmul.f32 %v2372, %v2377
      %v2382 = vlaneseq
      %v2383 = vshrl.u32 %v2382, 7
      %v2384 = vsub.s32 0, %v2383
      %v2385 = vrot.slane %v2346, %v2384
      %v2387 = vadd.f32 %v2379, %v2385
      %v2388 = vadd.f32 %v2380, %v2385
      %s2389 = scalar_lea.vmem %s809, 16
      %v2390 = vld [vmem:[%s2389] sm:$0xf]
      %v2391 = vld [vmem:[%s2389 + $0x4] sm:$0xf]
      %v2392 = vld [vmem:[%s2389 + $0x8] sm:$0xf]
      %v2393 = vld [vmem:[%s2389 + $0xc] sm:$0xf]
      %s2394 = scalar_lea.vmem %s813, 1
      %v2395 = vld [vmem:[%s2394] sm:$0x1]
      %v2396 = vpack.c.bf16 %v2388, %v2387
      %v2401 = vunpack.c.l.b16 %v2390
      %v2402 = vunpack.c.l.b16 %v2391
      %v2403 = vunpack.c.l.b16 %v2392
      %v2404 = vunpack.c.l.b16 %v2393
      %v2405 = vpack.c.b16 %v2402, %v2401
      %v2406 = vpack.c.b16 %v2404, %v2403
      %v2410 = vsel %vm910, %v2396, 0
      %2412 = vmatprep.subr.bf16.mxu0 0
      %2413 = vmatpush1.bf16.msra.mxu0 %v2405
      %2414 = vmatprep.subr.bf16.mxu0 0
      %2415 = vmatpush1.bf16.msra.mxu0 %v2406
      %2416 = vmatprep.subr.bf16.mxu0 0
      %2417 = vmatpush1.bf16.msra.mxu0 0
      %2418 = vmatprep.subr.bf16.mxu0 0
      %2419 = vmatpush1.bf16.msra.mxu0 0
      %2420 = vmatprep.subr.bf16.mxu0 0
      %2421 = vmatpush1.bf16.msra.mxu0 0
      %2422 = vmatprep.subr.bf16.mxu0 0
      %2423 = vmatpush1.bf16.msra.mxu0 0
      %2424 = vmatprep.subr.bf16.mxu0 0
      %2425 = vmatpush1.bf16.msra.mxu0 0
      %2426 = vmatprep.subr.bf16.mxu0 0
      %2427 = vmatpush1.bf16.msra.mxu0 0
      %2428 = vmatprep.subr.bf16.mxu0 0
      %2429 = vmatpush1.bf16.msra.mxu0 0
      %2430 = vmatprep.subr.bf16.mxu0 0
      %2431 = vmatpush1.bf16.msra.mxu0 0
      %2432 = vmatprep.subr.bf16.mxu0 0
      %2433 = vmatpush1.bf16.msra.mxu0 0
      %2434 = vmatprep.subr.bf16.mxu0 0
      %2435 = vmatpush1.bf16.msra.mxu0 0
      %2436 = vmatprep.subr.bf16.mxu0 0
      %2437 = vmatpush1.bf16.msra.mxu0 0
      %2438 = vmatprep.subr.bf16.mxu0 0
      %2439 = vmatpush1.bf16.msra.mxu0 0
      %2440 = vmatprep.subr.bf16.mxu0 0
      %2441 = vmatpush1.bf16.msra.mxu0 0
      %2442 = vmatprep.subr.bf16.mxu0 0
      %2443 = vmatpush1.bf16.msra.mxu0 0
      %2444 = vmatprep.mubr.bf16.mxu0 0
      %2445 = vmatmul.mubr.bf16.gmra.mrb[0].mxu0 %v2410
      %v2446 = vpop.f32.mrb[0].mxu0
      %v2447 = vadd.f32 0.0, %v2446
      %v2448 = vpop.f32.mrb[0].mxu0
      %v2449 = vpop.f32.mrb[0].mxu0
      %v2450 = vadd.f32 0.0, %v2449
      %v2451 = vpop.f32.mrb[0].mxu0
      %2452 = vdwg.mxu0
      %v2454 = vlaneseq
      %v2455 = vshrl.u32 %v2454, 7
      %v2456 = vsub.s32 0, %v2455
      %v2457 = vrot.slane %v2395, %v2456
      %v2459 = vadd.f32 %v2447, %v2457
      %v2460 = vadd.f32 %v2450, %v2457
      %v2461 = vpack.c.bf16 %v2459, %v2459
      %v2462 = vpack.c.bf16 %v2460, %v2460
      %2464 = vrot.lane.b32.xlu0 %v2461, 96
      %v2465 = vpop.permute.xlu0 %2464
      %v2467 = vsel %vm1029, %v2461, 0
      %v2470 = vsel %vm1029, %v2465, 0
      %2472 = vmatprep.subr.bf16.mxu0 0
      %2473 = vmatpush1.bf16.xpose.msra.mxu0 %v2470
      %2474 = vmatprep.subr.bf16.mxu0 0
      %2475 = vmatpush1.bf16.xpose.msra.mxu0 0
      %2476 = vmatprep.subr.bf16.mxu0 0
      %2477 = vmatpush1.bf16.xpose.msra.mxu0 0
      %2478 = vmatprep.subr.bf16.mxu0 0
      %2479 = vmatpush1.bf16.xpose.msra.mxu0 0
      %2480 = vmatprep.subr.bf16.mxu0 0
      %2481 = vmatpush1.bf16.xpose.msra.mxu0 0
      %2482 = vmatprep.subr.bf16.mxu0 0
      %2483 = vmatpush1.bf16.xpose.msra.mxu0 0
      %2484 = vmatprep.subr.bf16.mxu0 0
      %2485 = vmatpush1.bf16.xpose.msra.mxu0 0
      %2486 = vmatprep.subr.bf16.mxu0 0
      %2487 = vmatpush1.bf16.xpose.msra.mxu0 0
      %2488 = vmatprep.subr.bf16.mxu0 0
      %2489 = vmatpush1.bf16.xpose.msra.mxu0 0
      %2490 = vmatprep.subr.bf16.mxu0 0
      %2491 = vmatpush1.bf16.xpose.msra.mxu0 0
      %2492 = vmatprep.subr.bf16.mxu0 0
      %2493 = vmatpush1.bf16.xpose.msra.mxu0 0
      %2494 = vmatprep.subr.bf16.mxu0 0
      %2495 = vmatpush1.bf16.xpose.msra.mxu0 0
      %2496 = vmatprep.subr.bf16.mxu0 0
      %2497 = vmatpush1.bf16.xpose.msra.mxu0 0
      %2498 = vmatprep.subr.bf16.mxu0 0
      %2499 = vmatpush1.bf16.xpose.msra.mxu0 0
      %2500 = vmatprep.subr.bf16.mxu0 0
      %2501 = vmatpush1.bf16.xpose.msra.mxu0 0
      %2502 = vmatprep.subr.bf16.mxu0 0
      %2503 = vmatpush1.bf16.xpose.msra.mxu0 0
      %2504 = vmatprep.mubr.bf16.mxu0 0
      %2505 = vmatmul.mubr.bf16.gmra.mrb[0].mxu0 %v2467
      %v2506 = vpop.f32.mrb[0].mxu0
      %v2507 = vadd.f32 %v899, %v2506
      %v2508 = vpop.f32.mrb[0].mxu0
      %v2509 = vpop.f32.mrb[0].mxu0
      %v2510 = vpop.f32.mrb[0].mxu0
      %2511 = vdwg.mxu0
      %2513 = vrot.lane.b32.xlu0 %v2462, 96
      %v2514 = vpop.permute.xlu0 %2513
      %v2516 = vsel %vm1029, %v2462, 0
      %v2519 = vsel %vm1029, %v2514, 0
      %2521 = vmatprep.subr.bf16.mxu0 0
      %2522 = vmatpush1.bf16.xpose.msra.mxu0 %v2519
      %2523 = vmatprep.subr.bf16.mxu0 0
      %2524 = vmatpush1.bf16.xpose.msra.mxu0 0
      %2525 = vmatprep.subr.bf16.mxu0 0
      %2526 = vmatpush1.bf16.xpose.msra.mxu0 0
      %2527 = vmatprep.subr.bf16.mxu0 0
      %2528 = vmatpush1.bf16.xpose.msra.mxu0 0
      %2529 = vmatprep.subr.bf16.mxu0 0
      %2530 = vmatpush1.bf16.xpose.msra.mxu0 0
      %2531 = vmatprep.subr.bf16.mxu0 0
      %2532 = vmatpush1.bf16.xpose.msra.mxu0 0
      %2533 = vmatprep.subr.bf16.mxu0 0
      %2534 = vmatpush1.bf16.xpose.msra.mxu0 0
      %2535 = vmatprep.subr.bf16.mxu0 0
      %2536 = vmatpush1.bf16.xpose.msra.mxu0 0
      %2537 = vmatprep.subr.bf16.mxu0 0
      %2538 = vmatpush1.bf16.xpose.msra.mxu0 0
      %2539 = vmatprep.subr.bf16.mxu0 0
      %2540 = vmatpush1.bf16.xpose.msra.mxu0 0
      %2541 = vmatprep.subr.bf16.mxu0 0
      %2542 = vmatpush1.bf16.xpose.msra.mxu0 0
      %2543 = vmatprep.subr.bf16.mxu0 0
      %2544 = vmatpush1.bf16.xpose.msra.mxu0 0
      %2545 = vmatprep.subr.bf16.mxu0 0
      %2546 = vmatpush1.bf16.xpose.msra.mxu0 0
      %2547 = vmatprep.subr.bf16.mxu0 0
      %2548 = vmatpush1.bf16.xpose.msra.mxu0 0
      %2549 = vmatprep.subr.bf16.mxu0 0
      %2550 = vmatpush1.bf16.xpose.msra.mxu0 0
      %2551 = vmatprep.subr.bf16.mxu0 0
      %2552 = vmatpush1.bf16.xpose.msra.mxu0 0
      %2553 = vmatprep.mubr.bf16.mxu0 0
      %2554 = vmatmul.mubr.bf16.gmra.mrb[0].mxu0 %v2516
      %v2555 = vpop.f32.mrb[0].mxu0
      %v2556 = vadd.f32 %v903, %v2555
      %v2557 = vpop.f32.mrb[0].mxu0
      %v2558 = vpop.f32.mrb[0].mxu0
      %v2559 = vpop.f32.mrb[0].mxu0
      %2560 = vdwg.mxu0
      %v2561 = vsel %vm1029, %v2507, -inf
      %2562 = vmax.xlane.f32.xlu0 %v2561
      %v2563 = vpop.xlane.xlu0 %2562
      %v2564 = vsel %vm1029, %v2556, -inf
      %2565 = vmax.xlane.f32.xlu0 %v2564
      %v2566 = vpop.xlane.xlu0 %2565
      %v2567 = vsub.f32 %v2507, %v2563
      %v2568 = vsub.f32 %v2556, %v2566
      %v2569 = vmul.f32 %v2567, 1.442695
      %v2570 = vpow.pop %v2569
      %v2571 = vmul.f32 %v2568, 1.442695
      %v2572 = vpow.pop %v2571
      %v2573 = vsel %vm1029, %v2570, 0.0
      %2574 = vadd.xlane.f32.xlu0 %v2573
      %v2575 = vpop.xlane.xlu0 %2574
      %v2576 = vsel %vm1029, %v2572, 0.0
      %2577 = vadd.xlane.f32.xlu0 %v2576
      %v2578 = vpop.xlane.xlu0 %2577
      %v2579 = vrcp.pop %v2575
      %v2580 = vrcp.pop %v2578
      %v2581 = vmul.f32 %v2570, %v2579
      %v2582 = vmul.f32 %v2572, %v2580
      %v2583 = vpack.c.bf16 %v2581, %v2581
      %v2584 = vpack.c.bf16 %v2582, %v2582
      %2585 = vrot.lane.b32.xlu0 %v2461, 64
      %v2586 = vpop.permute.xlu0 %2585
      %v2588 = vsel %vm1029, %v2583, 0
      %v2591 = vsel %vm1154, %v2586, 0
      %2593 = vmatprep.subr.bf16.mxu0 0
      %2594 = vmatpush1.bf16.msra.mxu0 %v2591
      %2595 = vmatprep.subr.bf16.mxu0 0
      %2596 = vmatpush1.bf16.msra.mxu0 0
      %2597 = vmatprep.subr.bf16.mxu0 0
      %2598 = vmatpush1.bf16.msra.mxu0 0
      %2599 = vmatprep.subr.bf16.mxu0 0
      %2600 = vmatpush1.bf16.msra.mxu0 0
      %2601 = vmatprep.subr.bf16.mxu0 0
      %2602 = vmatpush1.bf16.msra.mxu0 0
      %2603 = vmatprep.subr.bf16.mxu0 0
      %2604 = vmatpush1.bf16.msra.mxu0 0
      %2605 = vmatprep.subr.bf16.mxu0 0
      %2606 = vmatpush1.bf16.msra.mxu0 0
      %2607 = vmatprep.subr.bf16.mxu0 0
      %2608 = vmatpush1.bf16.msra.mxu0 0
      %2609 = vmatprep.subr.bf16.mxu0 0
      %2610 = vmatpush1.bf16.msra.mxu0 0
      %2611 = vmatprep.subr.bf16.mxu0 0
      %2612 = vmatpush1.bf16.msra.mxu0 0
      %2613 = vmatprep.subr.bf16.mxu0 0
      %2614 = vmatpush1.bf16.msra.mxu0 0
      %2615 = vmatprep.subr.bf16.mxu0 0
      %2616 = vmatpush1.bf16.msra.mxu0 0
      %2617 = vmatprep.subr.bf16.mxu0 0
      %2618 = vmatpush1.bf16.msra.mxu0 0
      %2619 = vmatprep.subr.bf16.mxu0 0
      %2620 = vmatpush1.bf16.msra.mxu0 0
      %2621 = vmatprep.subr.bf16.mxu0 0
      %2622 = vmatpush1.bf16.msra.mxu0 0
      %2623 = vmatprep.subr.bf16.mxu0 0
      %2624 = vmatpush1.bf16.msra.mxu0 0
      %2625 = vmatprep.mubr.bf16.mxu0 0
      %2626 = vmatmul.mubr.bf16.gmra.mrb[0].mxu0 %v2588
      %v2627 = vpop.f32.mrb[0].mxu0
      %v2628 = vadd.f32 0.0, %v2627
      %v2629 = vpop.f32.mrb[0].mxu0
      %v2630 = vpop.f32.mrb[0].mxu0
      %v2631 = vpop.f32.mrb[0].mxu0
      %2632 = vdwg.mxu0
      %2633 = vrot.lane.b32.xlu0 %v2462, 64
      %v2634 = vpop.permute.xlu0 %2633
      %v2636 = vsel %vm1029, %v2584, 0
      %v2639 = vsel %vm1154, %v2634, 0
      %2641 = vmatprep.subr.bf16.mxu0 0
      %2642 = vmatpush1.bf16.msra.mxu0 %v2639
      %2643 = vmatprep.subr.bf16.mxu0 0
      %2644 = vmatpush1.bf16.msra.mxu0 0
      %2645 = vmatprep.subr.bf16.mxu0 0
      %2646 = vmatpush1.bf16.msra.mxu0 0
      %2647 = vmatprep.subr.bf16.mxu0 0
      %2648 = vmatpush1.bf16.msra.mxu0 0
      %2649 = vmatprep.subr.bf16.mxu0 0
      %2650 = vmatpush1.bf16.msra.mxu0 0
      %2651 = vmatprep.subr.bf16.mxu0 0
      %2652 = vmatpush1.bf16.msra.mxu0 0
      %2653 = vmatprep.subr.bf16.mxu0 0
      %2654 = vmatpush1.bf16.msra.mxu0 0
      %2655 = vmatprep.subr.bf16.mxu0 0
      %2656 = vmatpush1.bf16.msra.mxu0 0
      %2657 = vmatprep.subr.bf16.mxu0 0
      %2658 = vmatpush1.bf16.msra.mxu0 0
      %2659 = vmatprep.subr.bf16.mxu0 0
      %2660 = vmatpush1.bf16.msra.mxu0 0
      %2661 = vmatprep.subr.bf16.mxu0 0
      %2662 = vmatpush1.bf16.msra.mxu0 0
      %2663 = vmatprep.subr.bf16.mxu0 0
      %2664 = vmatpush1.bf16.msra.mxu0 0
      %2665 = vmatprep.subr.bf16.mxu0 0
      %2666 = vmatpush1.bf16.msra.mxu0 0
      %2667 = vmatprep.subr.bf16.mxu0 0
      %2668 = vmatpush1.bf16.msra.mxu0 0
      %2669 = vmatprep.subr.bf16.mxu0 0
      %2670 = vmatpush1.bf16.msra.mxu0 0
      %2671 = vmatprep.subr.bf16.mxu0 0
      %2672 = vmatpush1.bf16.msra.mxu0 0
      %2673 = vmatprep.mubr.bf16.mxu0 0
      %2674 = vmatmul.mubr.bf16.gmra.mrb[0].mxu0 %v2636
      %v2675 = vpop.f32.mrb[0].mxu0
      %v2676 = vadd.f32 0.0, %v2675
      %v2677 = vpop.f32.mrb[0].mxu0
      %v2678 = vpop.f32.mrb[0].mxu0
      %v2679 = vpop.f32.mrb[0].mxu0
      %2680 = vdwg.mxu0
      %v2681 = vpack.c.bf16 %v2676, %v2628
      %s2682 = scalar_lea.vmem %s818, 16
      %v2683 = vld [vmem:[%s2682] sm:$0xf]
      %v2685 = vsel %vm1029, %v2681, 0
      %v2688 = vsel %vm1154, %v2683, 0
      %2690 = vmatprep.subr.bf16.mxu0 0
      %2691 = vmatpush1.bf16.msra.mxu0 %v2688
      %2692 = vmatprep.subr.bf16.mxu0 0
      %2693 = vmatpush1.bf16.msra.mxu0 0
      %2694 = vmatprep.subr.bf16.mxu0 0
      %2695 = vmatpush1.bf16.msra.mxu0 0
      %2696 = vmatprep.subr.bf16.mxu0 0
      %2697 = vmatpush1.bf16.msra.mxu0 0
      %2698 = vmatprep.subr.bf16.mxu0 0
      %2699 = vmatpush1.bf16.msra.mxu0 0
      %2700 = vmatprep.subr.bf16.mxu0 0
      %2701 = vmatpush1.bf16.msra.mxu0 0
      %2702 = vmatprep.subr.bf16.mxu0 0
      %2703 = vmatpush1.bf16.msra.mxu0 0
      %2704 = vmatprep.subr.bf16.mxu0 0
      %2705 = vmatpush1.bf16.msra.mxu0 0
      %2706 = vmatprep.subr.bf16.mxu0 0
      %2707 = vmatpush1.bf16.msra.mxu0 0
      %2708 = vmatprep.subr.bf16.mxu0 0
      %2709 = vmatpush1.bf16.msra.mxu0 0
      %2710 = vmatprep.subr.bf16.mxu0 0
      %2711 = vmatpush1.bf16.msra.mxu0 0
      %2712 = vmatprep.subr.bf16.mxu0 0
      %2713 = vmatpush1.bf16.msra.mxu0 0
      %2714 = vmatprep.subr.bf16.mxu0 0
      %2715 = vmatpush1.bf16.msra.mxu0 0
      %2716 = vmatprep.subr.bf16.mxu0 0
      %2717 = vmatpush1.bf16.msra.mxu0 0
      %2718 = vmatprep.subr.bf16.mxu0 0
      %2719 = vmatpush1.bf16.msra.mxu0 0
      %2720 = vmatprep.subr.bf16.mxu0 0
      %2721 = vmatpush1.bf16.msra.mxu0 0
      %2722 = vmatprep.mubr.bf16.mxu0 0
      %2723 = vmatmul.mubr.bf16.gmra.mrb[0].mxu0 %v2685
      %v2724 = vpop.f32.mrb[0].mxu0
      %v2725 = vadd.f32 0.0, %v2724
      %v2726 = vpop.f32.mrb[0].mxu0
      %v2727 = vpop.f32.mrb[0].mxu0
      %v2728 = vadd.f32 0.0, %v2727
      %v2729 = vpop.f32.mrb[0].mxu0
      %2730 = vdwg.mxu0
      %v2731 = vadd.f32 %v2725, 0.0
      %v2732 = vadd.f32 %v2728, 0.0
      %2733 = vrot.lane.b32.xlu0 %v2461, 120
      %v2734 = vpop.permute.xlu0 %2733
      %2735 = vrot.lane.b32.xlu0 %v2461, 88
      %v2736 = vpop.permute.xlu0 %2735
      %v2738 = vsel %vm1029, %v2734, 0
      %v2741 = vsel %vm1029, %v2736, 0
      %2743 = vmatprep.subr.bf16.mxu0 0
      %2744 = vmatpush1.bf16.xpose.msra.mxu0 %v2741
      %2745 = vmatprep.subr.bf16.mxu0 0
      %2746 = vmatpush1.bf16.xpose.msra.mxu0 0
      %2747 = vmatprep.subr.bf16.mxu0 0
      %2748 = vmatpush1.bf16.xpose.msra.mxu0 0
      %2749 = vmatprep.subr.bf16.mxu0 0
      %2750 = vmatpush1.bf16.xpose.msra.mxu0 0
      %2751 = vmatprep.subr.bf16.mxu0 0
      %2752 = vmatpush1.bf16.xpose.msra.mxu0 0
      %2753 = vmatprep.subr.bf16.mxu0 0
      %2754 = vmatpush1.bf16.xpose.msra.mxu0 0
      %2755 = vmatprep.subr.bf16.mxu0 0
      %2756 = vmatpush1.bf16.xpose.msra.mxu0 0
      %2757 = vmatprep.subr.bf16.mxu0 0
      %2758 = vmatpush1.bf16.xpose.msra.mxu0 0
      %2759 = vmatprep.subr.bf16.mxu0 0
      %2760 = vmatpush1.bf16.xpose.msra.mxu0 0
      %2761 = vmatprep.subr.bf16.mxu0 0
      %2762 = vmatpush1.bf16.xpose.msra.mxu0 0
      %2763 = vmatprep.subr.bf16.mxu0 0
      %2764 = vmatpush1.bf16.xpose.msra.mxu0 0
      %2765 = vmatprep.subr.bf16.mxu0 0
      %2766 = vmatpush1.bf16.xpose.msra.mxu0 0
      %2767 = vmatprep.subr.bf16.mxu0 0
      %2768 = vmatpush1.bf16.xpose.msra.mxu0 0
      %2769 = vmatprep.subr.bf16.mxu0 0
      %2770 = vmatpush1.bf16.xpose.msra.mxu0 0
      %2771 = vmatprep.subr.bf16.mxu0 0
      %2772 = vmatpush1.bf16.xpose.msra.mxu0 0
      %2773 = vmatprep.subr.bf16.mxu0 0
      %2774 = vmatpush1.bf16.xpose.msra.mxu0 0
      %2775 = vmatprep.mubr.bf16.mxu0 0
      %2776 = vmatmul.mubr.bf16.gmra.mrb[0].mxu0 %v2738
      %v2777 = vpop.f32.mrb[0].mxu0
      %v2778 = vadd.f32 %v899, %v2777
      %v2779 = vpop.f32.mrb[0].mxu0
      %v2780 = vpop.f32.mrb[0].mxu0
      %v2781 = vpop.f32.mrb[0].mxu0
      %2782 = vdwg.mxu0
      %2783 = vrot.lane.b32.xlu0 %v2462, 120
      %v2784 = vpop.permute.xlu0 %2783
      %2785 = vrot.lane.b32.xlu0 %v2462, 88
      %v2786 = vpop.permute.xlu0 %2785
      %v2788 = vsel %vm1029, %v2784, 0
      %v2791 = vsel %vm1029, %v2786, 0
      %2793 = vmatprep.subr.bf16.mxu0 0
      %2794 = vmatpush1.bf16.xpose.msra.mxu0 %v2791
      %2795 = vmatprep.subr.bf16.mxu0 0
      %2796 = vmatpush1.bf16.xpose.msra.mxu0 0
      %2797 = vmatprep.subr.bf16.mxu0 0
      %2798 = vmatpush1.bf16.xpose.msra.mxu0 0
      %2799 = vmatprep.subr.bf16.mxu0 0
      %2800 = vmatpush1.bf16.xpose.msra.mxu0 0
      %2801 = vmatprep.subr.bf16.mxu0 0
      %2802 = vmatpush1.bf16.xpose.msra.mxu0 0
      %2803 = vmatprep.subr.bf16.mxu0 0
      %2804 = vmatpush1.bf16.xpose.msra.mxu0 0
      %2805 = vmatprep.subr.bf16.mxu0 0
      %2806 = vmatpush1.bf16.xpose.msra.mxu0 0
      %2807 = vmatprep.subr.bf16.mxu0 0
      %2808 = vmatpush1.bf16.xpose.msra.mxu0 0
      %2809 = vmatprep.subr.bf16.mxu0 0
      %2810 = vmatpush1.bf16.xpose.msra.mxu0 0
      %2811 = vmatprep.subr.bf16.mxu0 0
      %2812 = vmatpush1.bf16.xpose.msra.mxu0 0
      %2813 = vmatprep.subr.bf16.mxu0 0
      %2814 = vmatpush1.bf16.xpose.msra.mxu0 0
      %2815 = vmatprep.subr.bf16.mxu0 0
      %2816 = vmatpush1.bf16.xpose.msra.mxu0 0
      %2817 = vmatprep.subr.bf16.mxu0 0
      %2818 = vmatpush1.bf16.xpose.msra.mxu0 0
      %2819 = vmatprep.subr.bf16.mxu0 0
      %2820 = vmatpush1.bf16.xpose.msra.mxu0 0
      %2821 = vmatprep.subr.bf16.mxu0 0
      %2822 = vmatpush1.bf16.xpose.msra.mxu0 0
      %2823 = vmatprep.subr.bf16.mxu0 0
      %2824 = vmatpush1.bf16.xpose.msra.mxu0 0
      %2825 = vmatprep.mubr.bf16.mxu0 0
      %2826 = vmatmul.mubr.bf16.gmra.mrb[0].mxu0 %v2788
      %v2827 = vpop.f32.mrb[0].mxu0
      %v2828 = vadd.f32 %v903, %v2827
      %v2829 = vpop.f32.mrb[0].mxu0
      %v2830 = vpop.f32.mrb[0].mxu0
      %v2831 = vpop.f32.mrb[0].mxu0
      %2832 = vdwg.mxu0
      %v2833 = vsel %vm1029, %v2778, -inf
      %2834 = vmax.xlane.f32.xlu0 %v2833
      %v2835 = vpop.xlane.xlu0 %2834
      %v2836 = vsel %vm1029, %v2828, -inf
      %2837 = vmax.xlane.f32.xlu0 %v2836
      %v2838 = vpop.xlane.xlu0 %2837
      %v2839 = vsub.f32 %v2778, %v2835
      %v2840 = vsub.f32 %v2828, %v2838
      %v2841 = vmul.f32 %v2839, 1.442695
      %v2842 = vpow.pop %v2841
      %v2843 = vmul.f32 %v2840, 1.442695
      %v2844 = vpow.pop %v2843
      %v2845 = vsel %vm1029, %v2842, 0.0
      %2846 = vadd.xlane.f32.xlu0 %v2845
      %v2847 = vpop.xlane.xlu0 %2846
      %v2848 = vsel %vm1029, %v2844, 0.0
      %2849 = vadd.xlane.f32.xlu0 %v2848
      %v2850 = vpop.xlane.xlu0 %2849
      %v2851 = vrcp.pop %v2847
      %v2852 = vrcp.pop %v2850
      %v2853 = vmul.f32 %v2842, %v2851
      %v2854 = vmul.f32 %v2844, %v2852
      %v2855 = vpack.c.bf16 %v2853, %v2853
      %v2856 = vpack.c.bf16 %v2854, %v2854
      %2857 = vrot.lane.b32.xlu0 %v2461, 56
      %v2858 = vpop.permute.xlu0 %2857
      %v2860 = vsel %vm1029, %v2855, 0
      %v2863 = vsel %vm1154, %v2858, 0
      %2865 = vmatprep.subr.bf16.mxu0 0
      %2866 = vmatpush1.bf16.msra.mxu0 %v2863
      %2867 = vmatprep.subr.bf16.mxu0 0
      %2868 = vmatpush1.bf16.msra.mxu0 0
      %2869 = vmatprep.subr.bf16.mxu0 0
      %2870 = vmatpush1.bf16.msra.mxu0 0
      %2871 = vmatprep.subr.bf16.mxu0 0
      %2872 = vmatpush1.bf16.msra.mxu0 0
      %2873 = vmatprep.subr.bf16.mxu0 0
      %2874 = vmatpush1.bf16.msra.mxu0 0
      %2875 = vmatprep.subr.bf16.mxu0 0
      %2876 = vmatpush1.bf16.msra.mxu0 0
      %2877 = vmatprep.subr.bf16.mxu0 0
      %2878 = vmatpush1.bf16.msra.mxu0 0
      %2879 = vmatprep.subr.bf16.mxu0 0
      %2880 = vmatpush1.bf16.msra.mxu0 0
      %2881 = vmatprep.subr.bf16.mxu0 0
      %2882 = vmatpush1.bf16.msra.mxu0 0
      %2883 = vmatprep.subr.bf16.mxu0 0
      %2884 = vmatpush1.bf16.msra.mxu0 0
      %2885 = vmatprep.subr.bf16.mxu0 0
      %2886 = vmatpush1.bf16.msra.mxu0 0
      %2887 = vmatprep.subr.bf16.mxu0 0
      %2888 = vmatpush1.bf16.msra.mxu0 0
      %2889 = vmatprep.subr.bf16.mxu0 0
      %2890 = vmatpush1.bf16.msra.mxu0 0
      %2891 = vmatprep.subr.bf16.mxu0 0
      %2892 = vmatpush1.bf16.msra.mxu0 0
      %2893 = vmatprep.subr.bf16.mxu0 0
      %2894 = vmatpush1.bf16.msra.mxu0 0
      %2895 = vmatprep.subr.bf16.mxu0 0
      %2896 = vmatpush1.bf16.msra.mxu0 0
      %2897 = vmatprep.mubr.bf16.mxu0 0
      %2898 = vmatmul.mubr.bf16.gmra.mrb[0].mxu0 %v2860
      %v2899 = vpop.f32.mrb[0].mxu0
      %v2900 = vadd.f32 0.0, %v2899
      %v2901 = vpop.f32.mrb[0].mxu0
      %v2902 = vpop.f32.mrb[0].mxu0
      %v2903 = vpop.f32.mrb[0].mxu0
      %2904 = vdwg.mxu0
      %2905 = vrot.lane.b32.xlu0 %v2462, 56
      %v2906 = vpop.permute.xlu0 %2905
      %v2908 = vsel %vm1029, %v2856, 0
      %v2911 = vsel %vm1154, %v2906, 0
      %2913 = vmatprep.subr.bf16.mxu0 0
      %2914 = vmatpush1.bf16.msra.mxu0 %v2911
      %2915 = vmatprep.subr.bf16.mxu0 0
      %2916 = vmatpush1.bf16.msra.mxu0 0
      %2917 = vmatprep.subr.bf16.mxu0 0
      %2918 = vmatpush1.bf16.msra.mxu0 0
      %2919 = vmatprep.subr.bf16.mxu0 0
      %2920 = vmatpush1.bf16.msra.mxu0 0
      %2921 = vmatprep.subr.bf16.mxu0 0
      %2922 = vmatpush1.bf16.msra.mxu0 0
      %2923 = vmatprep.subr.bf16.mxu0 0
      %2924 = vmatpush1.bf16.msra.mxu0 0
      %2925 = vmatprep.subr.bf16.mxu0 0
      %2926 = vmatpush1.bf16.msra.mxu0 0
      %2927 = vmatprep.subr.bf16.mxu0 0
      %2928 = vmatpush1.bf16.msra.mxu0 0
      %2929 = vmatprep.subr.bf16.mxu0 0
      %2930 = vmatpush1.bf16.msra.mxu0 0
      %2931 = vmatprep.subr.bf16.mxu0 0
      %2932 = vmatpush1.bf16.msra.mxu0 0
      %2933 = vmatprep.subr.bf16.mxu0 0
      %2934 = vmatpush1.bf16.msra.mxu0 0
      %2935 = vmatprep.subr.bf16.mxu0 0
      %2936 = vmatpush1.bf16.msra.mxu0 0
      %2937 = vmatprep.subr.bf16.mxu0 0
      %2938 = vmatpush1.bf16.msra.mxu0 0
      %2939 = vmatprep.subr.bf16.mxu0 0
      %2940 = vmatpush1.bf16.msra.mxu0 0
      %2941 = vmatprep.subr.bf16.mxu0 0
      %2942 = vmatpush1.bf16.msra.mxu0 0
      %2943 = vmatprep.subr.bf16.mxu0 0
      %2944 = vmatpush1.bf16.msra.mxu0 0
      %2945 = vmatprep.mubr.bf16.mxu0 0
      %2946 = vmatmul.mubr.bf16.gmra.mrb[0].mxu0 %v2908
      %v2947 = vpop.f32.mrb[0].mxu0
      %v2948 = vadd.f32 0.0, %v2947
      %v2949 = vpop.f32.mrb[0].mxu0
      %v2950 = vpop.f32.mrb[0].mxu0
      %v2951 = vpop.f32.mrb[0].mxu0
      %2952 = vdwg.mxu0
      %v2953 = vpack.c.bf16 %v2948, %v2900
      %s2954 = scalar_lea.vmem %s818, 20
      %v2955 = vld [vmem:[%s2954] sm:$0xf]
      %v2957 = vsel %vm1029, %v2953, 0
      %v2960 = vsel %vm1154, %v2955, 0
      %2962 = vmatprep.subr.bf16.mxu0 0
      %2963 = vmatpush1.bf16.msra.mxu0 %v2960
      %2964 = vmatprep.subr.bf16.mxu0 0
      %2965 = vmatpush1.bf16.msra.mxu0 0
      %2966 = vmatprep.subr.bf16.mxu0 0
      %2967 = vmatpush1.bf16.msra.mxu0 0
      %2968 = vmatprep.subr.bf16.mxu0 0
      %2969 = vmatpush1.bf16.msra.mxu0 0
      %2970 = vmatprep.subr.bf16.mxu0 0
      %2971 = vmatpush1.bf16.msra.mxu0 0
      %2972 = vmatprep.subr.bf16.mxu0 0
      %2973 = vmatpush1.bf16.msra.mxu0 0
      %2974 = vmatprep.subr.bf16.mxu0 0
      %2975 = vmatpush1.bf16.msra.mxu0 0
      %2976 = vmatprep.subr.bf16.mxu0 0
      %2977 = vmatpush1.bf16.msra.mxu0 0
      %2978 = vmatprep.subr.bf16.mxu0 0
      %2979 = vmatpush1.bf16.msra.mxu0 0
      %2980 = vmatprep.subr.bf16.mxu0 0
      %2981 = vmatpush1.bf16.msra.mxu0 0
      %2982 = vmatprep.subr.bf16.mxu0 0
      %2983 = vmatpush1.bf16.msra.mxu0 0
      %2984 = vmatprep.subr.bf16.mxu0 0
      %2985 = vmatpush1.bf16.msra.mxu0 0
      %2986 = vmatprep.subr.bf16.mxu0 0
      %2987 = vmatpush1.bf16.msra.mxu0 0
      %2988 = vmatprep.subr.bf16.mxu0 0
      %2989 = vmatpush1.bf16.msra.mxu0 0
      %2990 = vmatprep.subr.bf16.mxu0 0
      %2991 = vmatpush1.bf16.msra.mxu0 0
      %2992 = vmatprep.subr.bf16.mxu0 0
      %2993 = vmatpush1.bf16.msra.mxu0 0
      %2994 = vmatprep.mubr.bf16.mxu0 0
      %2995 = vmatmul.mubr.bf16.gmra.mrb[0].mxu0 %v2957
      %v2996 = vpop.f32.mrb[0].mxu0
      %v2997 = vadd.f32 0.0, %v2996
      %v2998 = vpop.f32.mrb[0].mxu0
      %v2999 = vpop.f32.mrb[0].mxu0
      %v3000 = vadd.f32 0.0, %v2999
      %v3001 = vpop.f32.mrb[0].mxu0
      %3002 = vdwg.mxu0
      %v3003 = vadd.f32 %v2731, %v2997
      %v3004 = vadd.f32 %v2732, %v3000
      %3005 = vrot.lane.b32.xlu0 %v2461, 112
      %v3006 = vpop.permute.xlu0 %3005
      %3007 = vrot.lane.b32.xlu0 %v2461, 80
      %v3008 = vpop.permute.xlu0 %3007
      %v3010 = vsel %vm1029, %v3006, 0
      %v3013 = vsel %vm1029, %v3008, 0
      %3015 = vmatprep.subr.bf16.mxu0 0
      %3016 = vmatpush1.bf16.xpose.msra.mxu0 %v3013
      %3017 = vmatprep.subr.bf16.mxu0 0
      %3018 = vmatpush1.bf16.xpose.msra.mxu0 0
      %3019 = vmatprep.subr.bf16.mxu0 0
      %3020 = vmatpush1.bf16.xpose.msra.mxu0 0
      %3021 = vmatprep.subr.bf16.mxu0 0
      %3022 = vmatpush1.bf16.xpose.msra.mxu0 0
      %3023 = vmatprep.subr.bf16.mxu0 0
      %3024 = vmatpush1.bf16.xpose.msra.mxu0 0
      %3025 = vmatprep.subr.bf16.mxu0 0
      %3026 = vmatpush1.bf16.xpose.msra.mxu0 0
      %3027 = vmatprep.subr.bf16.mxu0 0
      %3028 = vmatpush1.bf16.xpose.msra.mxu0 0
      %3029 = vmatprep.subr.bf16.mxu0 0
      %3030 = vmatpush1.bf16.xpose.msra.mxu0 0
      %3031 = vmatprep.subr.bf16.mxu0 0
      %3032 = vmatpush1.bf16.xpose.msra.mxu0 0
      %3033 = vmatprep.subr.bf16.mxu0 0
      %3034 = vmatpush1.bf16.xpose.msra.mxu0 0
      %3035 = vmatprep.subr.bf16.mxu0 0
      %3036 = vmatpush1.bf16.xpose.msra.mxu0 0
      %3037 = vmatprep.subr.bf16.mxu0 0
      %3038 = vmatpush1.bf16.xpose.msra.mxu0 0
      %3039 = vmatprep.subr.bf16.mxu0 0
      %3040 = vmatpush1.bf16.xpose.msra.mxu0 0
      %3041 = vmatprep.subr.bf16.mxu0 0
      %3042 = vmatpush1.bf16.xpose.msra.mxu0 0
      %3043 = vmatprep.subr.bf16.mxu0 0
      %3044 = vmatpush1.bf16.xpose.msra.mxu0 0
      %3045 = vmatprep.subr.bf16.mxu0 0
      %3046 = vmatpush1.bf16.xpose.msra.mxu0 0
      %3047 = vmatprep.mubr.bf16.mxu0 0
      %3048 = vmatmul.mubr.bf16.gmra.mrb[0].mxu0 %v3010
      %v3049 = vpop.f32.mrb[0].mxu0
      %v3050 = vadd.f32 %v899, %v3049
      %v3051 = vpop.f32.mrb[0].mxu0
      %v3052 = vpop.f32.mrb[0].mxu0
      %v3053 = vpop.f32.mrb[0].mxu0
      %3054 = vdwg.mxu0
      %3055 = vrot.lane.b32.xlu0 %v2462, 112
      %v3056 = vpop.permute.xlu0 %3055
      %3057 = vrot.lane.b32.xlu0 %v2462, 80
      %v3058 = vpop.permute.xlu0 %3057
      %v3060 = vsel %vm1029, %v3056, 0
      %v3063 = vsel %vm1029, %v3058, 0
      %3065 = vmatprep.subr.bf16.mxu0 0
      %3066 = vmatpush1.bf16.xpose.msra.mxu0 %v3063
      %3067 = vmatprep.subr.bf16.mxu0 0
      %3068 = vmatpush1.bf16.xpose.msra.mxu0 0
      %3069 = vmatprep.subr.bf16.mxu0 0
      %3070 = vmatpush1.bf16.xpose.msra.mxu0 0
      %3071 = vmatprep.subr.bf16.mxu0 0
      %3072 = vmatpush1.bf16.xpose.msra.mxu0 0
      %3073 = vmatprep.subr.bf16.mxu0 0
      %3074 = vmatpush1.bf16.xpose.msra.mxu0 0
      %3075 = vmatprep.subr.bf16.mxu0 0
      %3076 = vmatpush1.bf16.xpose.msra.mxu0 0
      %3077 = vmatprep.subr.bf16.mxu0 0
      %3078 = vmatpush1.bf16.xpose.msra.mxu0 0
      %3079 = vmatprep.subr.bf16.mxu0 0
      %3080 = vmatpush1.bf16.xpose.msra.mxu0 0
      %3081 = vmatprep.subr.bf16.mxu0 0
      %3082 = vmatpush1.bf16.xpose.msra.mxu0 0
      %3083 = vmatprep.subr.bf16.mxu0 0
      %3084 = vmatpush1.bf16.xpose.msra.mxu0 0
      %3085 = vmatprep.subr.bf16.mxu0 0
      %3086 = vmatpush1.bf16.xpose.msra.mxu0 0
      %3087 = vmatprep.subr.bf16.mxu0 0
      %3088 = vmatpush1.bf16.xpose.msra.mxu0 0
      %3089 = vmatprep.subr.bf16.mxu0 0
      %3090 = vmatpush1.bf16.xpose.msra.mxu0 0
      %3091 = vmatprep.subr.bf16.mxu0 0
      %3092 = vmatpush1.bf16.xpose.msra.mxu0 0
      %3093 = vmatprep.subr.bf16.mxu0 0
      %3094 = vmatpush1.bf16.xpose.msra.mxu0 0
      %3095 = vmatprep.subr.bf16.mxu0 0
      %3096 = vmatpush1.bf16.xpose.msra.mxu0 0
      %3097 = vmatprep.mubr.bf16.mxu0 0
      %3098 = vmatmul.mubr.bf16.gmra.mrb[0].mxu0 %v3060
      %v3099 = vpop.f32.mrb[0].mxu0
      %v3100 = vadd.f32 %v903, %v3099
      %v3101 = vpop.f32.mrb[0].mxu0
      %v3102 = vpop.f32.mrb[0].mxu0
      %v3103 = vpop.f32.mrb[0].mxu0
      %3104 = vdwg.mxu0
      %v3105 = vsel %vm1029, %v3050, -inf
      %3106 = vmax.xlane.f32.xlu0 %v3105
      %v3107 = vpop.xlane.xlu0 %3106
      %v3108 = vsel %vm1029, %v3100, -inf
      %3109 = vmax.xlane.f32.xlu0 %v3108
      %v3110 = vpop.xlane.xlu0 %3109
      %v3111 = vsub.f32 %v3050, %v3107
      %v3112 = vsub.f32 %v3100, %v3110
      %v3113 = vmul.f32 %v3111, 1.442695
      %v3114 = vpow.pop %v3113
      %v3115 = vmul.f32 %v3112, 1.442695
      %v3116 = vpow.pop %v3115
      %v3117 = vsel %vm1029, %v3114, 0.0
      %3118 = vadd.xlane.f32.xlu0 %v3117
      %v3119 = vpop.xlane.xlu0 %3118
      %v3120 = vsel %vm1029, %v3116, 0.0
      %3121 = vadd.xlane.f32.xlu0 %v3120
      %v3122 = vpop.xlane.xlu0 %3121
      %v3123 = vrcp.pop %v3119
      %v3124 = vrcp.pop %v3122
      %v3125 = vmul.f32 %v3114, %v3123
      %v3126 = vmul.f32 %v3116, %v3124
      %v3127 = vpack.c.bf16 %v3125, %v3125
      %v3128 = vpack.c.bf16 %v3126, %v3126
      %3129 = vrot.lane.b32.xlu0 %v2461, 48
      %v3130 = vpop.permute.xlu0 %3129
      %v3132 = vsel %vm1029, %v3127, 0
      %v3135 = vsel %vm1154, %v3130, 0
      %3137 = vmatprep.subr.bf16.mxu0 0
      %3138 = vmatpush1.bf16.msra.mxu0 %v3135
      %3139 = vmatprep.subr.bf16.mxu0 0
      %3140 = vmatpush1.bf16.msra.mxu0 0
      %3141 = vmatprep.subr.bf16.mxu0 0
      %3142 = vmatpush1.bf16.msra.mxu0 0
      %3143 = vmatprep.subr.bf16.mxu0 0
      %3144 = vmatpush1.bf16.msra.mxu0 0
      %3145 = vmatprep.subr.bf16.mxu0 0
      %3146 = vmatpush1.bf16.msra.mxu0 0
      %3147 = vmatprep.subr.bf16.mxu0 0
      %3148 = vmatpush1.bf16.msra.mxu0 0
      %3149 = vmatprep.subr.bf16.mxu0 0
      %3150 = vmatpush1.bf16.msra.mxu0 0
      %3151 = vmatprep.subr.bf16.mxu0 0
      %3152 = vmatpush1.bf16.msra.mxu0 0
      %3153 = vmatprep.subr.bf16.mxu0 0
      %3154 = vmatpush1.bf16.msra.mxu0 0
      %3155 = vmatprep.subr.bf16.mxu0 0
      %3156 = vmatpush1.bf16.msra.mxu0 0
      %3157 = vmatprep.subr.bf16.mxu0 0
      %3158 = vmatpush1.bf16.msra.mxu0 0
      %3159 = vmatprep.subr.bf16.mxu0 0
      %3160 = vmatpush1.bf16.msra.mxu0 0
      %3161 = vmatprep.subr.bf16.mxu0 0
      %3162 = vmatpush1.bf16.msra.mxu0 0
      %3163 = vmatprep.subr.bf16.mxu0 0
      %3164 = vmatpush1.bf16.msra.mxu0 0
      %3165 = vmatprep.subr.bf16.mxu0 0
      %3166 = vmatpush1.bf16.msra.mxu0 0
      %3167 = vmatprep.subr.bf16.mxu0 0
      %3168 = vmatpush1.bf16.msra.mxu0 0
      %3169 = vmatprep.mubr.bf16.mxu0 0
      %3170 = vmatmul.mubr.bf16.gmra.mrb[0].mxu0 %v3132
      %v3171 = vpop.f32.mrb[0].mxu0
      %v3172 = vadd.f32 0.0, %v3171
      %v3173 = vpop.f32.mrb[0].mxu0
      %v3174 = vpop.f32.mrb[0].mxu0
      %v3175 = vpop.f32.mrb[0].mxu0
      %3176 = vdwg.mxu0
      %3177 = vrot.lane.b32.xlu0 %v2462, 48
      %v3178 = vpop.permute.xlu0 %3177
      %v3180 = vsel %vm1029, %v3128, 0
      %v3183 = vsel %vm1154, %v3178, 0
      %3185 = vmatprep.subr.bf16.mxu0 0
      %3186 = vmatpush1.bf16.msra.mxu0 %v3183
      %3187 = vmatprep.subr.bf16.mxu0 0
      %3188 = vmatpush1.bf16.msra.mxu0 0
      %3189 = vmatprep.subr.bf16.mxu0 0
      %3190 = vmatpush1.bf16.msra.mxu0 0
      %3191 = vmatprep.subr.bf16.mxu0 0
      %3192 = vmatpush1.bf16.msra.mxu0 0
      %3193 = vmatprep.subr.bf16.mxu0 0
      %3194 = vmatpush1.bf16.msra.mxu0 0
      %3195 = vmatprep.subr.bf16.mxu0 0
      %3196 = vmatpush1.bf16.msra.mxu0 0
      %3197 = vmatprep.subr.bf16.mxu0 0
      %3198 = vmatpush1.bf16.msra.mxu0 0
      %3199 = vmatprep.subr.bf16.mxu0 0
      %3200 = vmatpush1.bf16.msra.mxu0 0
      %3201 = vmatprep.subr.bf16.mxu0 0
      %3202 = vmatpush1.bf16.msra.mxu0 0
      %3203 = vmatprep.subr.bf16.mxu0 0
      %3204 = vmatpush1.bf16.msra.mxu0 0
      %3205 = vmatprep.subr.bf16.mxu0 0
      %3206 = vmatpush1.bf16.msra.mxu0 0
      %3207 = vmatprep.subr.bf16.mxu0 0
      %3208 = vmatpush1.bf16.msra.mxu0 0
      %3209 = vmatprep.subr.bf16.mxu0 0
      %3210 = vmatpush1.bf16.msra.mxu0 0
      %3211 = vmatprep.subr.bf16.mxu0 0
      %3212 = vmatpush1.bf16.msra.mxu0 0
      %3213 = vmatprep.subr.bf16.mxu0 0
      %3214 = vmatpush1.bf16.msra.mxu0 0
      %3215 = vmatprep.subr.bf16.mxu0 0
      %3216 = vmatpush1.bf16.msra.mxu0 0
      %3217 = vmatprep.mubr.bf16.mxu0 0
      %3218 = vmatmul.mubr.bf16.gmra.mrb[0].mxu0 %v3180
      %v3219 = vpop.f32.mrb[0].mxu0
      %v3220 = vadd.f32 0.0, %v3219
      %v3221 = vpop.f32.mrb[0].mxu0
      %v3222 = vpop.f32.mrb[0].mxu0
      %v3223 = vpop.f32.mrb[0].mxu0
      %3224 = vdwg.mxu0
      %v3225 = vpack.c.bf16 %v3220, %v3172
      %s3226 = scalar_lea.vmem %s818, 24
      %v3227 = vld [vmem:[%s3226] sm:$0xf]
      %v3229 = vsel %vm1029, %v3225, 0
      %v3232 = vsel %vm1154, %v3227, 0
      %3234 = vmatprep.subr.bf16.mxu0 0
      %3235 = vmatpush1.bf16.msra.mxu0 %v3232
      %3236 = vmatprep.subr.bf16.mxu0 0
      %3237 = vmatpush1.bf16.msra.mxu0 0
      %3238 = vmatprep.subr.bf16.mxu0 0
      %3239 = vmatpush1.bf16.msra.mxu0 0
      %3240 = vmatprep.subr.bf16.mxu0 0
      %3241 = vmatpush1.bf16.msra.mxu0 0
      %3242 = vmatprep.subr.bf16.mxu0 0
      %3243 = vmatpush1.bf16.msra.mxu0 0
      %3244 = vmatprep.subr.bf16.mxu0 0
      %3245 = vmatpush1.bf16.msra.mxu0 0
      %3246 = vmatprep.subr.bf16.mxu0 0
      %3247 = vmatpush1.bf16.msra.mxu0 0
      %3248 = vmatprep.subr.bf16.mxu0 0
      %3249 = vmatpush1.bf16.msra.mxu0 0
      %3250 = vmatprep.subr.bf16.mxu0 0
      %3251 = vmatpush1.bf16.msra.mxu0 0
      %3252 = vmatprep.subr.bf16.mxu0 0
      %3253 = vmatpush1.bf16.msra.mxu0 0
      %3254 = vmatprep.subr.bf16.mxu0 0
      %3255 = vmatpush1.bf16.msra.mxu0 0
      %3256 = vmatprep.subr.bf16.mxu0 0
      %3257 = vmatpush1.bf16.msra.mxu0 0
      %3258 = vmatprep.subr.bf16.mxu0 0
      %3259 = vmatpush1.bf16.msra.mxu0 0
      %3260 = vmatprep.subr.bf16.mxu0 0
      %3261 = vmatpush1.bf16.msra.mxu0 0
      %3262 = vmatprep.subr.bf16.mxu0 0
      %3263 = vmatpush1.bf16.msra.mxu0 0
      %3264 = vmatprep.subr.bf16.mxu0 0
      %3265 = vmatpush1.bf16.msra.mxu0 0
      %3266 = vmatprep.mubr.bf16.mxu0 0
      %3267 = vmatmul.mubr.bf16.gmra.mrb[0].mxu0 %v3229
      %v3268 = vpop.f32.mrb[0].mxu0
      %v3269 = vadd.f32 0.0, %v3268
      %v3270 = vpop.f32.mrb[0].mxu0
      %v3271 = vpop.f32.mrb[0].mxu0
      %v3272 = vadd.f32 0.0, %v3271
      %v3273 = vpop.f32.mrb[0].mxu0
      %3274 = vdwg.mxu0
      %v3275 = vadd.f32 %v3003, %v3269
      %v3276 = vadd.f32 %v3004, %v3272
      %3277 = vrot.lane.b32.xlu0 %v2461, 104
      %v3278 = vpop.permute.xlu0 %3277
      %3279 = vrot.lane.b32.xlu0 %v2461, 72
      %v3280 = vpop.permute.xlu0 %3279
      %v3282 = vsel %vm1029, %v3278, 0
      %v3285 = vsel %vm1029, %v3280, 0
      %3287 = vmatprep.subr.bf16.mxu0 0
      %3288 = vmatpush1.bf16.xpose.msra.mxu0 %v3285
      %3289 = vmatprep.subr.bf16.mxu0 0
      %3290 = vmatpush1.bf16.xpose.msra.mxu0 0
      %3291 = vmatprep.subr.bf16.mxu0 0
      %3292 = vmatpush1.bf16.xpose.msra.mxu0 0
      %3293 = vmatprep.subr.bf16.mxu0 0
      %3294 = vmatpush1.bf16.xpose.msra.mxu0 0
      %3295 = vmatprep.subr.bf16.mxu0 0
      %3296 = vmatpush1.bf16.xpose.msra.mxu0 0
      %3297 = vmatprep.subr.bf16.mxu0 0
      %3298 = vmatpush1.bf16.xpose.msra.mxu0 0
      %3299 = vmatprep.subr.bf16.mxu0 0
      %3300 = vmatpush1.bf16.xpose.msra.mxu0 0
      %3301 = vmatprep.subr.bf16.mxu0 0
      %3302 = vmatpush1.bf16.xpose.msra.mxu0 0
      %3303 = vmatprep.subr.bf16.mxu0 0
      %3304 = vmatpush1.bf16.xpose.msra.mxu0 0
      %3305 = vmatprep.subr.bf16.mxu0 0
      %3306 = vmatpush1.bf16.xpose.msra.mxu0 0
      %3307 = vmatprep.subr.bf16.mxu0 0
      %3308 = vmatpush1.bf16.xpose.msra.mxu0 0
      %3309 = vmatprep.subr.bf16.mxu0 0
      %3310 = vmatpush1.bf16.xpose.msra.mxu0 0
      %3311 = vmatprep.subr.bf16.mxu0 0
      %3312 = vmatpush1.bf16.xpose.msra.mxu0 0
      %3313 = vmatprep.subr.bf16.mxu0 0
      %3314 = vmatpush1.bf16.xpose.msra.mxu0 0
      %3315 = vmatprep.subr.bf16.mxu0 0
      %3316 = vmatpush1.bf16.xpose.msra.mxu0 0
      %3317 = vmatprep.subr.bf16.mxu0 0
      %3318 = vmatpush1.bf16.xpose.msra.mxu0 0
      %3319 = vmatprep.mubr.bf16.mxu0 0
      %3320 = vmatmul.mubr.bf16.gmra.mrb[0].mxu0 %v3282
      %v3321 = vpop.f32.mrb[0].mxu0
      %v3322 = vadd.f32 %v899, %v3321
      %v3323 = vpop.f32.mrb[0].mxu0
      %v3324 = vpop.f32.mrb[0].mxu0
      %v3325 = vpop.f32.mrb[0].mxu0
      %3326 = vdwg.mxu0
      %3327 = vrot.lane.b32.xlu0 %v2462, 104
      %v3328 = vpop.permute.xlu0 %3327
      %3329 = vrot.lane.b32.xlu0 %v2462, 72
      %v3330 = vpop.permute.xlu0 %3329
      %v3332 = vsel %vm1029, %v3328, 0
      %v3335 = vsel %vm1029, %v3330, 0
      %3337 = vmatprep.subr.bf16.mxu0 0
      %3338 = vmatpush1.bf16.xpose.msra.mxu0 %v3335
      %3339 = vmatprep.subr.bf16.mxu0 0
      %3340 = vmatpush1.bf16.xpose.msra.mxu0 0
      %3341 = vmatprep.subr.bf16.mxu0 0
      %3342 = vmatpush1.bf16.xpose.msra.mxu0 0
      %3343 = vmatprep.subr.bf16.mxu0 0
      %3344 = vmatpush1.bf16.xpose.msra.mxu0 0
      %3345 = vmatprep.subr.bf16.mxu0 0
      %3346 = vmatpush1.bf16.xpose.msra.mxu0 0
      %3347 = vmatprep.subr.bf16.mxu0 0
      %3348 = vmatpush1.bf16.xpose.msra.mxu0 0
      %3349 = vmatprep.subr.bf16.mxu0 0
      %3350 = vmatpush1.bf16.xpose.msra.mxu0 0
      %3351 = vmatprep.subr.bf16.mxu0 0
      %3352 = vmatpush1.bf16.xpose.msra.mxu0 0
      %3353 = vmatprep.subr.bf16.mxu0 0
      %3354 = vmatpush1.bf16.xpose.msra.mxu0 0
      %3355 = vmatprep.subr.bf16.mxu0 0
      %3356 = vmatpush1.bf16.xpose.msra.mxu0 0
      %3357 = vmatprep.subr.bf16.mxu0 0
      %3358 = vmatpush1.bf16.xpose.msra.mxu0 0
      %3359 = vmatprep.subr.bf16.mxu0 0
      %3360 = vmatpush1.bf16.xpose.msra.mxu0 0
      %3361 = vmatprep.subr.bf16.mxu0 0
      %3362 = vmatpush1.bf16.xpose.msra.mxu0 0
      %3363 = vmatprep.subr.bf16.mxu0 0
      %3364 = vmatpush1.bf16.xpose.msra.mxu0 0
      %3365 = vmatprep.subr.bf16.mxu0 0
      %3366 = vmatpush1.bf16.xpose.msra.mxu0 0
      %3367 = vmatprep.subr.bf16.mxu0 0
      %3368 = vmatpush1.bf16.xpose.msra.mxu0 0
      %3369 = vmatprep.mubr.bf16.mxu0 0
      %3370 = vmatmul.mubr.bf16.gmra.mrb[0].mxu0 %v3332
      %v3371 = vpop.f32.mrb[0].mxu0
      %v3372 = vadd.f32 %v903, %v3371
      %v3373 = vpop.f32.mrb[0].mxu0
      %v3374 = vpop.f32.mrb[0].mxu0
      %v3375 = vpop.f32.mrb[0].mxu0
      %3376 = vdwg.mxu0
      %v3377 = vsel %vm1029, %v3322, -inf
      %3378 = vmax.xlane.f32.xlu0 %v3377
      %v3379 = vpop.xlane.xlu0 %3378
      %v3380 = vsel %vm1029, %v3372, -inf
      %3381 = vmax.xlane.f32.xlu0 %v3380
      %v3382 = vpop.xlane.xlu0 %3381
      %v3383 = vsub.f32 %v3322, %v3379
      %v3384 = vsub.f32 %v3372, %v3382
      %v3385 = vmul.f32 %v3383, 1.442695
      %v3386 = vpow.pop %v3385
      %v3387 = vmul.f32 %v3384, 1.442695
      %v3388 = vpow.pop %v3387
      %v3389 = vsel %vm1029, %v3386, 0.0
      %3390 = vadd.xlane.f32.xlu0 %v3389
      %v3391 = vpop.xlane.xlu0 %3390
      %v3392 = vsel %vm1029, %v3388, 0.0
      %3393 = vadd.xlane.f32.xlu0 %v3392
      %v3394 = vpop.xlane.xlu0 %3393
      %v3395 = vrcp.pop %v3391
      %v3396 = vrcp.pop %v3394
      %v3397 = vmul.f32 %v3386, %v3395
      %v3398 = vmul.f32 %v3388, %v3396
      %v3399 = vpack.c.bf16 %v3397, %v3397
      %v3400 = vpack.c.bf16 %v3398, %v3398
      %3401 = vrot.lane.b32.xlu0 %v2461, 40
      %v3402 = vpop.permute.xlu0 %3401
      %v3404 = vsel %vm1029, %v3399, 0
      %v3407 = vsel %vm1154, %v3402, 0
      %3409 = vmatprep.subr.bf16.mxu0 0
      %3410 = vmatpush1.bf16.msra.mxu0 %v3407
      %3411 = vmatprep.subr.bf16.mxu0 0
      %3412 = vmatpush1.bf16.msra.mxu0 0
      %3413 = vmatprep.subr.bf16.mxu0 0
      %3414 = vmatpush1.bf16.msra.mxu0 0
      %3415 = vmatprep.subr.bf16.mxu0 0
      %3416 = vmatpush1.bf16.msra.mxu0 0
      %3417 = vmatprep.subr.bf16.mxu0 0
      %3418 = vmatpush1.bf16.msra.mxu0 0
      %3419 = vmatprep.subr.bf16.mxu0 0
      %3420 = vmatpush1.bf16.msra.mxu0 0
      %3421 = vmatprep.subr.bf16.mxu0 0
      %3422 = vmatpush1.bf16.msra.mxu0 0
      %3423 = vmatprep.subr.bf16.mxu0 0
      %3424 = vmatpush1.bf16.msra.mxu0 0
      %3425 = vmatprep.subr.bf16.mxu0 0
      %3426 = vmatpush1.bf16.msra.mxu0 0
      %3427 = vmatprep.subr.bf16.mxu0 0
      %3428 = vmatpush1.bf16.msra.mxu0 0
      %3429 = vmatprep.subr.bf16.mxu0 0
      %3430 = vmatpush1.bf16.msra.mxu0 0
      %3431 = vmatprep.subr.bf16.mxu0 0
      %3432 = vmatpush1.bf16.msra.mxu0 0
      %3433 = vmatprep.subr.bf16.mxu0 0
      %3434 = vmatpush1.bf16.msra.mxu0 0
      %3435 = vmatprep.subr.bf16.mxu0 0
      %3436 = vmatpush1.bf16.msra.mxu0 0
      %3437 = vmatprep.subr.bf16.mxu0 0
      %3438 = vmatpush1.bf16.msra.mxu0 0
      %3439 = vmatprep.subr.bf16.mxu0 0
      %3440 = vmatpush1.bf16.msra.mxu0 0
      %3441 = vmatprep.mubr.bf16.mxu0 0
      %3442 = vmatmul.mubr.bf16.gmra.mrb[0].mxu0 %v3404
      %v3443 = vpop.f32.mrb[0].mxu0
      %v3444 = vadd.f32 0.0, %v3443
      %v3445 = vpop.f32.mrb[0].mxu0
      %v3446 = vpop.f32.mrb[0].mxu0
      %v3447 = vpop.f32.mrb[0].mxu0
      %3448 = vdwg.mxu0
      %3449 = vrot.lane.b32.xlu0 %v2462, 40
      %v3450 = vpop.permute.xlu0 %3449
      %v3452 = vsel %vm1029, %v3400, 0
      %v3455 = vsel %vm1154, %v3450, 0
      %3457 = vmatprep.subr.bf16.mxu0 0
      %3458 = vmatpush1.bf16.msra.mxu0 %v3455
      %3459 = vmatprep.subr.bf16.mxu0 0
      %3460 = vmatpush1.bf16.msra.mxu0 0
      %3461 = vmatprep.subr.bf16.mxu0 0
      %3462 = vmatpush1.bf16.msra.mxu0 0
      %3463 = vmatprep.subr.bf16.mxu0 0
      %3464 = vmatpush1.bf16.msra.mxu0 0
      %3465 = vmatprep.subr.bf16.mxu0 0
      %3466 = vmatpush1.bf16.msra.mxu0 0
      %3467 = vmatprep.subr.bf16.mxu0 0
      %3468 = vmatpush1.bf16.msra.mxu0 0
      %3469 = vmatprep.subr.bf16.mxu0 0
      %3470 = vmatpush1.bf16.msra.mxu0 0
      %3471 = vmatprep.subr.bf16.mxu0 0
      %3472 = vmatpush1.bf16.msra.mxu0 0
      %3473 = vmatprep.subr.bf16.mxu0 0
      %3474 = vmatpush1.bf16.msra.mxu0 0
      %3475 = vmatprep.subr.bf16.mxu0 0
      %3476 = vmatpush1.bf16.msra.mxu0 0
      %3477 = vmatprep.subr.bf16.mxu0 0
      %3478 = vmatpush1.bf16.msra.mxu0 0
      %3479 = vmatprep.subr.bf16.mxu0 0
      %3480 = vmatpush1.bf16.msra.mxu0 0
      %3481 = vmatprep.subr.bf16.mxu0 0
      %3482 = vmatpush1.bf16.msra.mxu0 0
      %3483 = vmatprep.subr.bf16.mxu0 0
      %3484 = vmatpush1.bf16.msra.mxu0 0
      %3485 = vmatprep.subr.bf16.mxu0 0
      %3486 = vmatpush1.bf16.msra.mxu0 0
      %3487 = vmatprep.subr.bf16.mxu0 0
      %3488 = vmatpush1.bf16.msra.mxu0 0
      %3489 = vmatprep.mubr.bf16.mxu0 0
      %3490 = vmatmul.mubr.bf16.gmra.mrb[0].mxu0 %v3452
      %v3491 = vpop.f32.mrb[0].mxu0
      %v3492 = vadd.f32 0.0, %v3491
      %v3493 = vpop.f32.mrb[0].mxu0
      %v3494 = vpop.f32.mrb[0].mxu0
      %v3495 = vpop.f32.mrb[0].mxu0
      %3496 = vdwg.mxu0
      %v3497 = vpack.c.bf16 %v3492, %v3444
      %s3498 = scalar_lea.vmem %s818, 28
      %v3499 = vld [vmem:[%s3498] sm:$0xf]
      %v3501 = vsel %vm1029, %v3497, 0
      %v3504 = vsel %vm1154, %v3499, 0
      %3506 = vmatprep.subr.bf16.mxu0 0
      %3507 = vmatpush1.bf16.msra.mxu0 %v3504
      %3508 = vmatprep.subr.bf16.mxu0 0
      %3509 = vmatpush1.bf16.msra.mxu0 0
      %3510 = vmatprep.subr.bf16.mxu0 0
      %3511 = vmatpush1.bf16.msra.mxu0 0
      %3512 = vmatprep.subr.bf16.mxu0 0
      %3513 = vmatpush1.bf16.msra.mxu0 0
      %3514 = vmatprep.subr.bf16.mxu0 0
      %3515 = vmatpush1.bf16.msra.mxu0 0
      %3516 = vmatprep.subr.bf16.mxu0 0
      %3517 = vmatpush1.bf16.msra.mxu0 0
      %3518 = vmatprep.subr.bf16.mxu0 0
      %3519 = vmatpush1.bf16.msra.mxu0 0
      %3520 = vmatprep.subr.bf16.mxu0 0
      %3521 = vmatpush1.bf16.msra.mxu0 0
      %3522 = vmatprep.subr.bf16.mxu0 0
      %3523 = vmatpush1.bf16.msra.mxu0 0
      %3524 = vmatprep.subr.bf16.mxu0 0
      %3525 = vmatpush1.bf16.msra.mxu0 0
      %3526 = vmatprep.subr.bf16.mxu0 0
      %3527 = vmatpush1.bf16.msra.mxu0 0
      %3528 = vmatprep.subr.bf16.mxu0 0
      %3529 = vmatpush1.bf16.msra.mxu0 0
      %3530 = vmatprep.subr.bf16.mxu0 0
      %3531 = vmatpush1.bf16.msra.mxu0 0
      %3532 = vmatprep.subr.bf16.mxu0 0
      %3533 = vmatpush1.bf16.msra.mxu0 0
      %3534 = vmatprep.subr.bf16.mxu0 0
      %3535 = vmatpush1.bf16.msra.mxu0 0
      %3536 = vmatprep.subr.bf16.mxu0 0
      %3537 = vmatpush1.bf16.msra.mxu0 0
      %3538 = vmatprep.mubr.bf16.mxu0 0
      %3539 = vmatmul.mubr.bf16.gmra.mrb[0].mxu0 %v3501
      %v3540 = vpop.f32.mrb[0].mxu0
      %v3541 = vadd.f32 0.0, %v3540
      %v3542 = vpop.f32.mrb[0].mxu0
      %v3543 = vpop.f32.mrb[0].mxu0
      %v3544 = vadd.f32 0.0, %v3543
      %v3545 = vpop.f32.mrb[0].mxu0
      %3546 = vdwg.mxu0
      %v3547 = vadd.f32 %v3275, %v3541
      %v3548 = vadd.f32 %v3276, %v3544
      %v3549 = vadd.f32 %v2387, %v3547
      %v3550 = vadd.f32 %v2388, %v3548
      %s3551 = scalar_lea.vmem %s822, 1
      %v3552 = vld [vmem:[%s3551] sm:$0x1]
      %v3554 = vlaneseq
      %v3555 = vshrl.u32 %v3554, 7
      %v3556 = vsub.s32 0, %v3555
      %v3557 = vrot.slane %v3552, %v3556
      %v3559 = vadd.f32 %v3549, %v3557
      %v3560 = vadd.f32 %v3550, %v3557
      %s3561 = scalar_lea.vmem %s826, 1
      %v3562 = vld [vmem:[%s3561] sm:$0x1]
      %s3563 = scalar_lea.vmem %s830, 1
      %v3564 = vld [vmem:[%s3563] sm:$0x1]
      %v3565 = vsel %vm910, %v3559, 0.0
      %3566 = vadd.xlane.f32.xlu0 %v3565
      %v3567 = vpop.xlane.xlu0 %3566
      %v3568 = vsel %vm910, %v3560, 0.0
      %3569 = vadd.xlane.f32.xlu0 %v3568
      %v3570 = vpop.xlane.xlu0 %3569
      %v3571 = vmul.f32 %v3567, %v917
      %v3572 = vmul.f32 %v3570, %v917
      %v3573 = vsub.f32 %v3559, %v3571
      %v3574 = vsub.f32 %v3560, %v3572
      %v3575 = vmul.f32 %v3573, %v3573
      %v3576 = vmul.f32 %v3574, %v3574
      %v3577 = vsel %vm910, %v3575, 0.0
      %3578 = vadd.xlane.f32.xlu0 %v3577
      %v3579 = vpop.xlane.xlu0 %3578
      %v3580 = vsel %vm910, %v3576, 0.0
      %3581 = vadd.xlane.f32.xlu0 %v3580
      %v3582 = vpop.xlane.xlu0 %3581
      %v3583 = vmul.f32 %v3579, %v917
      %v3584 = vmul.f32 %v3582, %v917
      %v3585 = vadd.f32 %v3583, 1e-12
      %v3586 = vadd.f32 %v3584, 1e-12
      %v3587 = vrsqrt.pop %v3585
      %v3588 = vrsqrt.pop %v3586
      %v3589 = vmul.f32 %v3573, %v3587
      %v3590 = vmul.f32 %v3574, %v3588
      %v3592 = vlaneseq
      %v3593 = vshrl.u32 %v3592, 7
      %v3594 = vsub.s32 0, %v3593
      %v3595 = vrot.slane %v3562, %v3594
      %v3597 = vmul.f32 %v3589, %v3595
      %v3598 = vmul.f32 %v3590, %v3595
      %v3600 = vlaneseq
      %v3601 = vshrl.u32 %v3600, 7
      %v3602 = vsub.s32 0, %v3601
      %v3603 = vrot.slane %v3564, %v3602
      %v3605 = vadd.f32 %v3597, %v3603
      %v3606 = vadd.f32 %v3598, %v3603
      %s3607 = scalar_lea.vmem %s835, 16
      %v3608 = vld [vmem:[%s3607] sm:$0xf]
      %v3609 = vld [vmem:[%s3607 + $0x4] sm:$0xf]
      %v3610 = vld [vmem:[%s3607 + $0x8] sm:$0xf]
      %v3611 = vld [vmem:[%s3607 + $0xc] sm:$0xf]
      %s3612 = scalar_lea.vmem %s839, 1
      %v3613 = vld [vmem:[%s3612] sm:$0x1]
      %v3614 = vpack.c.bf16 %v3606, %v3605
      %v3619 = vunpack.c.l.b16 %v3608
      %v3620 = vunpack.c.l.b16 %v3609
      %v3621 = vunpack.c.l.b16 %v3610
      %v3622 = vunpack.c.l.b16 %v3611
      %v3623 = vpack.c.b16 %v3620, %v3619
      %v3624 = vpack.c.b16 %v3622, %v3621
      %v3628 = vsel %vm910, %v3614, 0
      %3630 = vmatprep.subr.bf16.mxu0 0
      %3631 = vmatpush1.bf16.msra.mxu0 %v3623
      %3632 = vmatprep.subr.bf16.mxu0 0
      %3633 = vmatpush1.bf16.msra.mxu0 %v3624
      %3634 = vmatprep.subr.bf16.mxu0 0
      %3635 = vmatpush1.bf16.msra.mxu0 0
      %3636 = vmatprep.subr.bf16.mxu0 0
      %3637 = vmatpush1.bf16.msra.mxu0 0
      %3638 = vmatprep.subr.bf16.mxu0 0
      %3639 = vmatpush1.bf16.msra.mxu0 0
      %3640 = vmatprep.subr.bf16.mxu0 0
      %3641 = vmatpush1.bf16.msra.mxu0 0
      %3642 = vmatprep.subr.bf16.mxu0 0
      %3643 = vmatpush1.bf16.msra.mxu0 0
      %3644 = vmatprep.subr.bf16.mxu0 0
      %3645 = vmatpush1.bf16.msra.mxu0 0
      %3646 = vmatprep.subr.bf16.mxu0 0
      %3647 = vmatpush1.bf16.msra.mxu0 0
      %3648 = vmatprep.subr.bf16.mxu0 0
      %3649 = vmatpush1.bf16.msra.mxu0 0
      %3650 = vmatprep.subr.bf16.mxu0 0
      %3651 = vmatpush1.bf16.msra.mxu0 0
      %3652 = vmatprep.subr.bf16.mxu0 0
      %3653 = vmatpush1.bf16.msra.mxu0 0
      %3654 = vmatprep.subr.bf16.mxu0 0
      %3655 = vmatpush1.bf16.msra.mxu0 0
      %3656 = vmatprep.subr.bf16.mxu0 0
      %3657 = vmatpush1.bf16.msra.mxu0 0
      %3658 = vmatprep.subr.bf16.mxu0 0
      %3659 = vmatpush1.bf16.msra.mxu0 0
      %3660 = vmatprep.subr.bf16.mxu0 0
      %3661 = vmatpush1.bf16.msra.mxu0 0
      %3662 = vmatprep.mubr.bf16.mxu0 0
      %3663 = vmatmul.mubr.bf16.gmra.mrb[0].mxu0 %v3628
      %v3664 = vpop.f32.mrb[0].mxu0
      %v3665 = vadd.f32 0.0, %v3664
      %v3666 = vpop.f32.mrb[0].mxu0
      %v3667 = vpop.f32.mrb[0].mxu0
      %v3668 = vadd.f32 0.0, %v3667
      %v3669 = vpop.f32.mrb[0].mxu0
      %3670 = vdwg.mxu0
      %v3672 = vlaneseq
      %v3673 = vshrl.u32 %v3672, 7
      %v3674 = vsub.s32 0, %v3673
      %v3675 = vrot.slane %v3613, %v3674
      %v3677 = vadd.f32 %v3665, %v3675
      %v3678 = vadd.f32 %v3668, %v3675
      %v3679 = vmul.f32 %v3677, 0.5
      %v3680 = vmul.f32 %v3678, 0.5
      %v3681 = vmul.f32 %v3677, 0.044715
      %v3682 = vmul.f32 %v3678, 0.044715
      %v3683 = vmul.f32 %v3681, %v3677
      %v3684 = vmul.f32 %v3682, %v3678
      %v3685 = vmul.f32 %v3683, %v3677
      %v3686 = vmul.f32 %v3684, %v3678
      %v3687 = vadd.f32 %v3677, %v3685
      %v3688 = vadd.f32 %v3678, %v3686
      %v3689 = vmul.f32 %v3687, 0.7978846
      %v3690 = vmul.f32 %v3688, 0.7978846
      %v3691 = vtanh.pop %v3689
      %v3692 = vtanh.pop %v3690
      %v3693 = vadd.f32 %v3691, 1.0
      %v3694 = vadd.f32 %v3692, 1.0
      %v3695 = vmul.f32 %v3679, %v3693
      %v3696 = vmul.f32 %v3680, %v3694
      %s3697 = scalar_lea.vmem %s844, 32
      %v3698 = vld [vmem:[%s3697] sm:$0xf]
      %v3699 = vld [vmem:[%s3697 + $0x4] sm:$0xf]
      %v3700 = vld [vmem:[%s3697 + $0x8] sm:$0xf]
      %v3701 = vld [vmem:[%s3697 + $0xc] sm:$0xf]
      %v3702 = vld [vmem:[%s3697 + $0x10] sm:$0xf]
      %v3703 = vld [vmem:[%s3697 + $0x14] sm:$0xf]
      %v3704 = vld [vmem:[%s3697 + $0x18] sm:$0xf]
      %v3705 = vld [vmem:[%s3697 + $0x1c] sm:$0xf]
      %s3706 = scalar_lea.vmem %s848, 1
      %v3707 = vld [vmem:[%s3706] sm:$0x1]
      %v3708 = vpack.c.bf16 %v3696, %v3695
      %v3717 = vunpack.c.l.b16 %v3698
      %v3718 = vunpack.c.l.b16 %v3699
      %v3719 = vunpack.c.l.b16 %v3700
      %v3720 = vunpack.c.l.b16 %v3701
      %v3721 = vunpack.c.l.b16 %v3702
      %v3722 = vunpack.c.l.b16 %v3703
      %v3723 = vunpack.c.l.b16 %v3704
      %v3724 = vunpack.c.l.b16 %v3705
      %v3725 = vpack.c.b16 %v3718, %v3717
      %v3726 = vpack.c.b16 %v3720, %v3719
      %v3727 = vpack.c.b16 %v3722, %v3721
      %v3728 = vpack.c.b16 %v3724, %v3723
      %v3734 = vsel %vm2290, %v3708, 0
      %3736 = vmatprep.subr.bf16.mxu0 0
      %3737 = vmatpush1.bf16.msra.mxu0 %v3725
      %3738 = vmatprep.subr.bf16.mxu0 0
      %3739 = vmatpush1.bf16.msra.mxu0 %v3726
      %3740 = vmatprep.subr.bf16.mxu0 0
      %3741 = vmatpush1.bf16.msra.mxu0 %v3727
      %3742 = vmatprep.subr.bf16.mxu0 0
      %3743 = vmatpush1.bf16.msra.mxu0 %v3728
      %3744 = vmatprep.subr.bf16.mxu0 0
      %3745 = vmatpush1.bf16.msra.mxu0 0
      %3746 = vmatprep.subr.bf16.mxu0 0
      %3747 = vmatpush1.bf16.msra.mxu0 0
      %3748 = vmatprep.subr.bf16.mxu0 0
      %3749 = vmatpush1.bf16.msra.mxu0 0
      %3750 = vmatprep.subr.bf16.mxu0 0
      %3751 = vmatpush1.bf16.msra.mxu0 0
      %3752 = vmatprep.subr.bf16.mxu0 0
      %3753 = vmatpush1.bf16.msra.mxu0 0
      %3754 = vmatprep.subr.bf16.mxu0 0
      %3755 = vmatpush1.bf16.msra.mxu0 0
      %3756 = vmatprep.subr.bf16.mxu0 0
      %3757 = vmatpush1.bf16.msra.mxu0 0
      %3758 = vmatprep.subr.bf16.mxu0 0
      %3759 = vmatpush1.bf16.msra.mxu0 0
      %3760 = vmatprep.subr.bf16.mxu0 0
      %3761 = vmatpush1.bf16.msra.mxu0 0
      %3762 = vmatprep.subr.bf16.mxu0 0
      %3763 = vmatpush1.bf16.msra.mxu0 0
      %3764 = vmatprep.subr.bf16.mxu0 0
      %3765 = vmatpush1.bf16.msra.mxu0 0
      %3766 = vmatprep.subr.bf16.mxu0 0
      %3767 = vmatpush1.bf16.msra.mxu0 0
      %3768 = vmatprep.mubr.bf16.mxu0 0
      %3769 = vmatmul.mubr.bf16.gmra.mrb[0].mxu0 %v3734
      %v3770 = vpop.f32.mrb[0].mxu0
      %v3771 = vadd.f32 0.0, %v3770
      %v3772 = vpop.f32.mrb[0].mxu0
      %v3773 = vpop.f32.mrb[0].mxu0
      %v3774 = vadd.f32 0.0, %v3773
      %v3775 = vpop.f32.mrb[0].mxu0
      %3776 = vdwg.mxu0
      %v3778 = vlaneseq
      %v3779 = vshrl.u32 %v3778, 7
      %v3780 = vsub.s32 0, %v3779
      %v3781 = vrot.slane %v3707, %v3780
      %v3783 = vadd.f32 %v3771, %v3781
      %v3784 = vadd.f32 %v3774, %v3781
      %v3785 = vadd.f32 %v3605, %v3783
      %v3786 = vadd.f32 %v3606, %v3784
      %s3787 = scalar_lea.vmem %s852, 1
      %v3788 = vld [vmem:[%s3787] sm:$0x1]
      %s3789 = scalar_lea.vmem %s856, 1
      %v3790 = vld [vmem:[%s3789] sm:$0x1]
      %v3791 = vsel %vm910, %v3785, 0.0
      %3792 = vadd.xlane.f32.xlu0 %v3791
      %v3793 = vpop.xlane.xlu0 %3792
      %v3794 = vsel %vm910, %v3786, 0.0
      %3795 = vadd.xlane.f32.xlu0 %v3794
      %v3796 = vpop.xlane.xlu0 %3795
      %v3797 = vmul.f32 %v3793, %v917
      %v3798 = vmul.f32 %v3796, %v917
      %v3799 = vsub.f32 %v3785, %v3797
      %v3800 = vsub.f32 %v3786, %v3798
      %v3801 = vmul.f32 %v3799, %v3799
      %v3802 = vmul.f32 %v3800, %v3800
      %v3803 = vsel %vm910, %v3801, 0.0
      %3804 = vadd.xlane.f32.xlu0 %v3803
      %v3805 = vpop.xlane.xlu0 %3804
      %v3806 = vsel %vm910, %v3802, 0.0
      %3807 = vadd.xlane.f32.xlu0 %v3806
      %v3808 = vpop.xlane.xlu0 %3807
      %v3809 = vmul.f32 %v3805, %v917
      %v3810 = vmul.f32 %v3808, %v917
      %v3811 = vadd.f32 %v3809, 1e-12
      %v3812 = vadd.f32 %v3810, 1e-12
      %v3813 = vrsqrt.pop %v3811
      %v3814 = vrsqrt.pop %v3812
      %v3815 = vmul.f32 %v3799, %v3813
      %v3816 = vmul.f32 %v3800, %v3814
      %v3818 = vlaneseq
      %v3819 = vshrl.u32 %v3818, 7
      %v3820 = vsub.s32 0, %v3819
      %v3821 = vrot.slane %v3788, %v3820
      %v3823 = vmul.f32 %v3815, %v3821
      %v3824 = vmul.f32 %v3816, %v3821
      %v3826 = vlaneseq
      %v3827 = vshrl.u32 %v3826, 7
      %v3828 = vsub.s32 0, %v3827
      %v3829 = vrot.slane %v3790, %v3828
      %v3831 = vadd.f32 %v3823, %v3829
      %v3832 = vadd.f32 %v3824, %v3829
      %v3833 = vpack.c.bf16 %v3831, %v3831
      %v3834 = vpack.c.bf16 %v3832, %v3832
      %v3835 = vld [vmem:[%s861] sm:$0xf]
      %v3836 = vld [vmem:[%s861 + $0x4] sm:$0xf]
      %v3837 = vld [vmem:[%s861 + $0x8] sm:$0xf]
      %v3838 = vld [vmem:[%s861 + $0xc] sm:$0xf]
      %v3839 = vld [vmem:[%s864] sm:$0x1]
      %v3841 = vlaneseq
      %v3842 = vshrl.u32 %v3841, 7
      %v3843 = vsub.s32 0, %v3842
      %v3844 = vrot.slane %v3839, %v3843
      %v3848 = vunpack.c.l.b16 %v3833
      %v3849 = vunpack.c.l.b16 %v3834
      %v3850 = vrot.slane %v3849, 7
      %vm3851 = vcmask 1041409
      %v3852 = vsel %vm3851, %v3850, %v3848
      %v3853 = vpack.c.b16 %v3852, %v3852
      %v3858 = vunpack.c.l.b16 %v3835
      %v3859 = vunpack.c.l.b16 %v3836
      %v3860 = vunpack.c.l.b16 %v3837
      %v3861 = vunpack.c.l.b16 %v3838
      %v3862 = vpack.c.b16 %v3859, %v3858
      %v3863 = vpack.c.b16 %v3861, %v3860
      %v3867 = vsel %vm910, %v3853, 0
      %3869 = vmatprep.subr.bf16.mxu0 0
      %3870 = vmatpush1.bf16.msra.mxu0 %v3862
      %3871 = vmatprep.subr.bf16.mxu0 0
      %3872 = vmatpush1.bf16.msra.mxu0 %v3863
      %3873 = vmatprep.subr.bf16.mxu0 0
      %3874 = vmatpush1.bf16.msra.mxu0 0
      %3875 = vmatprep.subr.bf16.mxu0 0
      %3876 = vmatpush1.bf16.msra.mxu0 0
      %3877 = vmatprep.subr.bf16.mxu0 0
      %3878 = vmatpush1.bf16.msra.mxu0 0
      %3879 = vmatprep.subr.bf16.mxu0 0
      %3880 = vmatpush1.bf16.msra.mxu0 0
      %3881 = vmatprep.subr.bf16.mxu0 0
      %3882 = vmatpush1.bf16.msra.mxu0 0
      %3883 = vmatprep.subr.bf16.mxu0 0
      %3884 = vmatpush1.bf16.msra.mxu0 0
      %3885 = vmatprep.subr.bf16.mxu0 0
      %3886 = vmatpush1.bf16.msra.mxu0 0
      %3887 = vmatprep.subr.bf16.mxu0 0
      %3888 = vmatpush1.bf16.msra.mxu0 0
      %3889 = vmatprep.subr.bf16.mxu0 0
      %3890 = vmatpush1.bf16.msra.mxu0 0
      %3891 = vmatprep.subr.bf16.mxu0 0
      %3892 = vmatpush1.bf16.msra.mxu0 0
      %3893 = vmatprep.subr.bf16.mxu0 0
      %3894 = vmatpush1.bf16.msra.mxu0 0
      %3895 = vmatprep.subr.bf16.mxu0 0
      %3896 = vmatpush1.bf16.msra.mxu0 0
      %3897 = vmatprep.subr.bf16.mxu0 0
      %3898 = vmatpush1.bf16.msra.mxu0 0
      %3899 = vmatprep.subr.bf16.mxu0 0
      %3900 = vmatpush1.bf16.msra.mxu0 0
      %3901 = vmatprep.mubr.bf16.mxu0 0
      %3902 = vmatmul.mubr.bf16.gmra.mrb[0].mxu0 %v3867
      %v3903 = vpop.f32.mrb[0].mxu0
      %v3904 = vadd.f32 %v3844, %v3903
      %v3905 = vpop.f32.mrb[0].mxu0
      %v3906 = vpop.f32.mrb[0].mxu0
      %v3907 = vpop.f32.mrb[0].mxu0
      %3908 = vdwg.mxu0
      %v3909 = vtanh.pop %v3904
      %vm3910 = vcmask 254976
      %3911 = vst.msk [vmem:[%s868] sm:$0x3] %vm3910, %v3909
      %p3912 = scmp.lt.s32.totalorder %s29, 1
      %s3913 = scalar_select %p3912, %s29, 1
      %s3914 = smul.addr %s3913, 2
      %s3915 = scalar_lea.vmem %s18, %s3914
      // Predicated region
      $region93: #{bi_encoder_forward.1} parent=91 // pred_check
        %p3916 = pneg %p515
      $region94: #{bi_encoder_forward.1} parent=91 // pred_check_branch
        %3918 = sbr.rel (%p3916) target = $region96
      $region95: #{bi_encoder_forward.1} parent=91 // pred_region
        _
      $region96: #{bi_encoder_forward.1} parent=91 // pred_fallthru
        _
    $region92: #{bi_encoder_forward.1} parent=5 // pred_fallthru
      _
    %p3919 = scmp.le.s32.totalorder 2, %s24
    // Predicated region
    $region97: #{bi_encoder_forward.1} parent=5 // pred_check
      %p3920 = pneg %p3919
    $region98: #{bi_encoder_forward.1} parent=5 // pred_check_branch
      %3922 = sbr.rel (%p3920) target = $region100
    $region99: #{bi_encoder_forward.1} parent=5 // pred_region
      %s3923 = ssub.s32 %s24, 2
      // Predicated region
      $region101: #{bi_encoder_forward.1} parent=99 // pred_check
        %p3924 = pneg %p521
      $region102: #{bi_encoder_forward.1} parent=99 // pred_check_branch
        %3926 = sbr.rel (%p3924) target = $region104
      $region103: #{bi_encoder_forward.1} parent=99 // pred_region
        %p3927 = scmp.lt.s32.totalorder %s30, 1
        %s3928 = scalar_select %p3927, %s30, 1
        %s3929 = smul.addr %s3928, 2
        %s3930 = scalar_lea.vmem %s18, %s3929
      $region104: #{bi_encoder_forward.1} parent=99 // pred_fallthru
        _
    $region100: #{bi_encoder_forward.1} parent=5 // pred_fallthru
      _
  $region6: #{bi_encoder_forward.1} parent=0 // loop_footer
    %s28 = sadd.s32 1, %s24
  $region7: #{bi_encoder_forward.1} parent=0 // loop_footer_branch
    %23 = sbr.rel target = $region3
  $region8: #{bi_encoder_forward.1} parent=0 // loop_exit
    _

</llo_original>
